<compile_context>
chip_gen: v6e
topology: v6e:2x2x1
jax: 0.10.0
libtpu: 0.0.40
codegen_flags: <defaults>
</compile_context>

<pallas_src>
import functools

import jax
import jax.numpy as jnp
from jax.experimental import pallas as pl
from jax.experimental.pallas import tpu as pltpu


# ----------------------------------------------------------------------------
# Pallas kernels
# ----------------------------------------------------------------------------
def conv_pool_kernel(p_ref, w_ref, shift_ref, o_ref):
    # p_ref:     (1, 4, NP, KKC) bf16  pool-phase-banked im2col patches (one image)
    # w_ref:     (KKC, OC)       bf16  conv weight with BN scale folded in
    # shift_ref: (1, OC)         f32   conv-bias + BN shift
    # o_ref:     (1, NP, OC)     f32   pooled activation (NP = PH*PW pooled positions)
    w = w_ref[...]
    shift = shift_ref[...]

    def bank(t):
        acc = jnp.dot(p_ref[0, t], w, preferred_element_type=jnp.float32)
        return jnp.maximum(acc + shift, 0.0)          # BN affine + ReLU in f32

    # MaxPool2d(2) == elementwise max over the four conv-output phase banks.
    o_ref[0] = jnp.maximum(jnp.maximum(bank(0), bank(1)),
                           jnp.maximum(bank(2), bank(3)))


def conv_pool_fc_kernel(p_ref, w_ref, shift_ref,
                        w1_ref, b1_ref, w2_ref, b2_ref, o_ref):
    # Block 3 fused with flatten + classifier (Dropout is identity in eval mode).
    w = w_ref[...]
    shift = shift_ref[...]

    def bank(t):
        acc = jnp.dot(p_ref[0, t], w, preferred_element_type=jnp.float32)
        return jnp.maximum(acc + shift, 0.0)

    feats = jnp.maximum(jnp.maximum(bank(0), bank(1)),
                        jnp.maximum(bank(2), bank(3)))           # (1, 64) == flatten
    h = jnp.dot(feats, w1_ref[...], preferred_element_type=jnp.float32) + b1_ref[...]
    h = jnp.maximum(h, 0.0)
    o_ref[0] = jnp.dot(h, w2_ref[...], preferred_element_type=jnp.float32) + b2_ref[...]


# ----------------------------------------------------------------------------
# pallas_call wrappers
# ----------------------------------------------------------------------------
def conv_pool_block(patches, w, shift):
    B, _, NP, KKC = patches.shape
    OC = w.shape[1]
    return pl.pallas_call(
        conv_pool_kernel,
        grid=(B,),
        in_specs=[
            pl.BlockSpec((1, 4, NP, KKC), lambda b: (b, 0, 0, 0)),
            pl.BlockSpec((KKC, OC), lambda b: (0, 0)),
            pl.BlockSpec((1, OC), lambda b: (0, 0)),
        ],
        out_specs=pl.BlockSpec((1, NP, OC), lambda b: (b, 0, 0)),
        out_shape=jax.ShapeDtypeStruct((B, NP, OC), jnp.float32),
        compiler_params=pltpu.CompilerParams(dimension_semantics=("parallel",)),
    )(patches, w, shift)


def conv_pool_fc_block(patches, w, shift, w1, b1, w2, b2):
    B, _, NP, KKC = patches.shape
    OC = w.shape[1]
    return pl.pallas_call(
        conv_pool_fc_kernel,
        grid=(B,),
        in_specs=[
            pl.BlockSpec((1, 4, NP, KKC), lambda b: (b, 0, 0, 0)),
            pl.BlockSpec((KKC, OC), lambda b: (0, 0)),
            pl.BlockSpec((1, OC), lambda b: (0, 0)),
            pl.BlockSpec(w1.shape, lambda b: (0, 0)),
            pl.BlockSpec(b1.shape, lambda b: (0, 0)),
            pl.BlockSpec(w2.shape, lambda b: (0, 0)),
            pl.BlockSpec(b2.shape, lambda b: (0, 0)),
        ],
        out_specs=pl.BlockSpec((1, 1, 2), lambda b: (b, 0, 0)),
        out_shape=jax.ShapeDtypeStruct((B, 1, 2), jnp.float32),
        compiler_params=pltpu.CompilerParams(dimension_semantics=("parallel",)),
    )(patches, w, shift, w1, b1, w2, b2)


# ----------------------------------------------------------------------------
# JAX glue: pool-phase-banked im2col (stride 2, then pool-by-2 row banking)
# ----------------------------------------------------------------------------
def pool_banked_patches(x, k, pad):
    # x: (B, H, W, C) f32.  Returns ((B, 4, PH*PW, k*k*C) bf16, PH, PW) where bank
    # t = 2*r + s holds the im2col rows of conv-output positions (2y+r, 2z+s).
    # Feature order is (kh, kw, c), matching weight.transpose(2,3,1,0).reshape(-1, OC).
    B, H, W, C = x.shape
    OH = (H + 2 * pad - k) // 2 + 1
    OW = (W + 2 * pad - k) // 2 + 1
    PH, PW = OH // 2, OW // 2                   # MaxPool2d(2) floors odd extents
    xp = jnp.pad(x, ((0, 0), (pad, pad), (pad, pad), (0, 0)))
    taps = [xp[:, ki:ki + 2 * OH - 1:2, kj:kj + 2 * OW - 1:2, :]
            for ki in range(k) for kj in range(k)]         # each (B, OH, OW, C)
    cols = jnp.concatenate(taps, axis=-1)                  # (B, OH, OW, k*k*C)
    banks = [cols[:, r:2 * PH:2, s:2 * PW:2, :]            # (B, PH, PW, k*k*C)
             for r in (0, 1) for s in (0, 1)]
    p = jnp.stack(banks, axis=1).reshape(B, 4, PH * PW, k * k * C)
    return p.astype(jnp.bfloat16), PH, PW


def init_params(key):
    eps = 1e-5
    keys = list(jax.random.split(key, 16))

    def conv_block(ic, oc, k):
        kw_, kb_, kg_, kbe_ = keys.pop(), keys.pop(), keys.pop(), keys.pop()
        Wt = 0.1 * jax.random.normal(kw_, (oc, ic, k, k), jnp.float32)  # torch (OC,IC,KH,KW)
        b = 0.1 * jax.random.normal(kb_, (oc,), jnp.float32)
        gamma = 1.0 + 0.1 * jax.random.normal(kg_, (oc,), jnp.float32)
        beta = 0.1 * jax.random.normal(kbe_, (oc,), jnp.float32)
        mean = jnp.zeros((oc,), jnp.float32)   # BN eval-mode running stats
        var = jnp.ones((oc,), jnp.float32)
        scale = gamma / jnp.sqrt(var + eps)
        shift = (b - mean) * scale + beta
        w_mat = jnp.transpose(Wt, (2, 3, 1, 0)).reshape(k * k * ic, oc)
        return {"w": (w_mat * scale[None, :]).astype(jnp.bfloat16),   # BN scale folded
                "shift": shift.reshape(1, oc),
                "k": k}

    return {
        "c1": conv_block(3, 16, 7),
        "c2": conv_block(16, 32, 5),
        "c3": conv_block(32, 64, 3),
        "fc1_w": 0.1 * jax.random.normal(keys.pop(), (64, 32), jnp.float32),
        "fc1_b": 0.1 * jax.random.normal(keys.pop(), (1, 32), jnp.float32),
        "fc2_w": 0.1 * jax.random.normal(keys.pop(), (32, 2), jnp.float32),
        "fc2_b": 0.1 * jax.random.normal(keys.pop(), (1, 2), jnp.float32),
    }


def pigaze_forward(x_nchw, params):
    # NCHW (PyTorch) -> NHWC so channels sit on the 128-lane axis.
    x = jnp.transpose(x_nchw.astype(jnp.float32), (0, 2, 3, 1))
    B, H, W, C = x.shape
    assert (H, W, C) == (64, 64, 3), "PiGazeModel requires 64x64 RGB input"

    for name in ("c1", "c2"):
        blk = params[name]
        patches, ph, pw = pool_banked_patches(x, blk["k"], 1)
        pooled = conv_pool_block(patches, blk["w"], blk["shift"])     # (B, ph*pw, OC)
        x = pooled.reshape(B, ph, pw, blk["w"].shape[1])
        # Dropout(0.5) is identity in eval mode.

    blk = params["c3"]
    patches, _, _ = pool_banked_patches(x, blk["k"], 1)
    out = conv_pool_fc_block(patches, blk["w"], blk["shift"],
                             params["fc1_w"], params["fc1_b"],
                             params["fc2_w"], params["fc2_b"])        # (B, 1, 2)
    return out.reshape(B, 2)


if __name__ == "__main__":
    key = jax.random.PRNGKey(0)
    kx, kp = jax.random.split(key)
    x = jax.random.normal(kx, (2, 3, 64, 64), dtype=jnp.float32)
    params = init_params(kp)

    fwd = jax.jit(functools.partial(pigaze_forward, params=params))
    out = fwd(x)
    jax.block_until_ready(out)
    assert out.shape == (2, 2), out.shape
    assert bool(jnp.all(jnp.isfinite(out)))
    print("KERNEL_OK")
</pallas_src>

<mosaic_0001>
module attributes {stable_mosaic.version = 11 : i64} {
  func.func @conv_pool_kernel(%arg0: i32, %arg1: memref<1x4x225x147xbf16, #tpu.memory_space<vmem>>, %arg2: memref<147x16xbf16, #tpu.memory_space<vmem>>, %arg3: memref<1x16xf32, #tpu.memory_space<vmem>>, %arg4: memref<1x225x16xf32, #tpu.memory_space<vmem>>) attributes {dimension_semantics = [#tpu.dimension_semantics<parallel>], iteration_bounds = array<i64: 2>, scalar_prefetch = 0 : i64, scratch_operands = 0 : i64, tpu.core_type = #tpu.core_type<tc>, window_params = [{transform_indices = @transform_0, window_bounds = array<i64: 1, 4, 225, 147>}, {pipeline_mode = #tpu.pipeline_mode<synchronous>, transform_indices = @transform_1, window_bounds = array<i64: 147, 16>}, {pipeline_mode = #tpu.pipeline_mode<synchronous>, transform_indices = @transform_2, window_bounds = array<i64: 1, 16>}, {transform_indices = @transform_3, window_bounds = array<i64: 1, 225, 16>}]} {
    %c0 = arith.constant 0 : index
    %c0_0 = arith.constant 0 : index
    %0 = vector.load %arg2[%c0, %c0_0] : memref<147x16xbf16, #tpu.memory_space<vmem>>, vector<147x16xbf16>
    %c0_1 = arith.constant 0 : index
    %c0_2 = arith.constant 0 : index
    %1 = vector.load %arg3[%c0_1, %c0_2] : memref<1x16xf32, #tpu.memory_space<vmem>>, vector<1x16xf32>
    %c0_3 = arith.constant 0 : index
    %c0_4 = arith.constant 0 : index
    %c0_5 = arith.constant 0 : index
    %c0_6 = arith.constant 0 : index
    %2 = vector.load %arg1[%c0_3, %c0_4, %c0_5, %c0_6] : memref<1x4x225x147xbf16, #tpu.memory_space<vmem>>, vector<1x1x225x147xbf16>
    %3 = vector.shape_cast %2 : vector<1x1x225x147xbf16> to vector<225x147xbf16>
    %cst = arith.constant dense<0.000000e+00> : vector<225x16xf32>
    %4 = tpu.matmul %3, %0, %cst {dimension_numbers = #tpu.dot_dimension_numbers<[1], [0], [0], [1], [0, 0, 1, 1], [], []>} : vector<225x147xbf16>, vector<147x16xbf16>, vector<225x16xf32> -> vector<225x16xf32>
    %5 = vector.broadcast %1 : vector<1x16xf32> to vector<225x16xf32>
    %6 = arith.addf %4, %5 : vector<225x16xf32>
    %cst_7 = arith.constant 0.000000e+00 : f32
    %7 = vector.broadcast %cst_7 : f32 to vector<225x16xf32>
    %8 = arith.maximumf %6, %7 : vector<225x16xf32>
    %c0_8 = arith.constant 0 : index
    %c1 = arith.constant 1 : index
    %c0_9 = arith.constant 0 : index
    %c0_10 = arith.constant 0 : index
    %9 = vector.load %arg1[%c0_8, %c1, %c0_9, %c0_10] : memref<1x4x225x147xbf16, #tpu.memory_space<vmem>>, vector<1x1x225x147xbf16>
    %10 = vector.shape_cast %9 : vector<1x1x225x147xbf16> to vector<225x147xbf16>
    %cst_11 = arith.constant dense<0.000000e+00> : vector<225x16xf32>
    %11 = tpu.matmul %10, %0, %cst_11 {dimension_numbers = #tpu.dot_dimension_numbers<[1], [0], [0], [1], [0, 0, 1, 1], [], []>} : vector<225x147xbf16>, vector<147x16xbf16>, vector<225x16xf32> -> vector<225x16xf32>
    %12 = vector.broadcast %1 : vector<1x16xf32> to vector<225x16xf32>
    %13 = arith.addf %11, %12 : vector<225x16xf32>
    %cst_12 = arith.constant 0.000000e+00 : f32
    %14 = vector.broadcast %cst_12 : f32 to vector<225x16xf32>
    %15 = arith.maximumf %13, %14 : vector<225x16xf32>
    %16 = arith.maximumf %8, %15 : vector<225x16xf32>
    %c0_13 = arith.constant 0 : index
    %c2 = arith.constant 2 : index
    %c0_14 = arith.constant 0 : index
    %c0_15 = arith.constant 0 : index
    %17 = vector.load %arg1[%c0_13, %c2, %c0_14, %c0_15] : memref<1x4x225x147xbf16, #tpu.memory_space<vmem>>, vector<1x1x225x147xbf16>
    %18 = vector.shape_cast %17 : vector<1x1x225x147xbf16> to vector<225x147xbf16>
    %cst_16 = arith.constant dense<0.000000e+00> : vector<225x16xf32>
    %19 = tpu.matmul %18, %0, %cst_16 {dimension_numbers = #tpu.dot_dimension_numbers<[1], [0], [0], [1], [0, 0, 1, 1], [], []>} : vector<225x147xbf16>, vector<147x16xbf16>, vector<225x16xf32> -> vector<225x16xf32>
    %20 = vector.broadcast %1 : vector<1x16xf32> to vector<225x16xf32>
    %21 = arith.addf %19, %20 : vector<225x16xf32>
    %cst_17 = arith.constant 0.000000e+00 : f32
    %22 = vector.broadcast %cst_17 : f32 to vector<225x16xf32>
    %23 = arith.maximumf %21, %22 : vector<225x16xf32>
    %c0_18 = arith.constant 0 : index
    %c3 = arith.constant 3 : index
    %c0_19 = arith.constant 0 : index
    %c0_20 = arith.constant 0 : index
    %24 = vector.load %arg1[%c0_18, %c3, %c0_19, %c0_20] : memref<1x4x225x147xbf16, #tpu.memory_space<vmem>>, vector<1x1x225x147xbf16>
    %25 = vector.shape_cast %24 : vector<1x1x225x147xbf16> to vector<225x147xbf16>
    %cst_21 = arith.constant dense<0.000000e+00> : vector<225x16xf32>
    %26 = tpu.matmul %25, %0, %cst_21 {dimension_numbers = #tpu.dot_dimension_numbers<[1], [0], [0], [1], [0, 0, 1, 1], [], []>} : vector<225x147xbf16>, vector<147x16xbf16>, vector<225x16xf32> -> vector<225x16xf32>
    %27 = vector.broadcast %1 : vector<1x16xf32> to vector<225x16xf32>
    %28 = arith.addf %26, %27 : vector<225x16xf32>
    %cst_22 = arith.constant 0.000000e+00 : f32
    %29 = vector.broadcast %cst_22 : f32 to vector<225x16xf32>
    %30 = arith.maximumf %28, %29 : vector<225x16xf32>
    %31 = arith.maximumf %23, %30 : vector<225x16xf32>
    %32 = arith.maximumf %16, %31 : vector<225x16xf32>
    %c0_23 = arith.constant 0 : index
    %c0_24 = arith.constant 0 : index
    %c0_25 = arith.constant 0 : index
    %33 = vector.load %arg4[%c0_23, %c0_24, %c0_25] : memref<1x225x16xf32, #tpu.memory_space<vmem>>, vector<1x225x16xf32>
    %34 = vector.shape_cast %33 : vector<1x225x16xf32> to vector<225x16xf32>
    %35 = vector.shape_cast %32 : vector<225x16xf32> to vector<1x225x16xf32>
    tpu.vector_store %arg4[%c0_23, %c0_24, %c0_25], %35 {strides = array<i32>} : memref<1x225x16xf32, #tpu.memory_space<vmem>>, vector<1x225x16xf32>,
    return
  }
  func.func @transform_0(%arg0: i32) -> (i32, i32, i32, i32) {
    %c0_i32 = arith.constant 0 : i32
    %c0_i32_0 = arith.constant 0 : i32
    %c0_i32_1 = arith.constant 0 : i32
    %c0_i32_2 = arith.constant 0 : i32
    return %arg0, %c0_i32, %c0_i32_0, %c0_i32_1 : i32, i32, i32, i32
  }
  func.func @transform_1(%arg0: i32) -> (i32, i32) {
    %c0_i32 = arith.constant 0 : i32
    %c0_i32_0 = arith.constant 0 : i32
    %c0_i32_1 = arith.constant 0 : i32
    return %c0_i32, %c0_i32_0 : i32, i32
  }
  func.func @transform_2(%arg0: i32) -> (i32, i32) {
    %c0_i32 = arith.constant 0 : i32
    %c0_i32_0 = arith.constant 0 : i32
    %c0_i32_1 = arith.constant 0 : i32
    return %c0_i32, %c0_i32_0 : i32, i32
  }
  func.func @transform_3(%arg0: i32) -> (i32, i32, i32) {
    %c0_i32 = arith.constant 0 : i32
    %c0_i32_0 = arith.constant 0 : i32
    %c0_i32_1 = arith.constant 0 : i32
    return %arg0, %c0_i32, %c0_i32_0 : i32, i32, i32
  }
}

module attributes {stable_mosaic.version = 11 : i64} {
  func.func @conv_pool_kernel(%arg0: i32, %arg1: memref<1x4x9x400xbf16, #tpu.memory_space<vmem>>, %arg2: memref<400x32xbf16, #tpu.memory_space<vmem>>, %arg3: memref<1x32xf32, #tpu.memory_space<vmem>>, %arg4: memref<1x9x32xf32, #tpu.memory_space<vmem>>) attributes {dimension_semantics = [#tpu.dimension_semantics<parallel>], iteration_bounds = array<i64: 2>, scalar_prefetch = 0 : i64, scratch_operands = 0 : i64, tpu.core_type = #tpu.core_type<tc>, window_params = [{transform_indices = @transform_0, window_bounds = array<i64: 1, 4, 9, 400>}, {pipeline_mode = #tpu.pipeline_mode<synchronous>, transform_indices = @transform_1, window_bounds = array<i64: 400, 32>}, {pipeline_mode = #tpu.pipeline_mode<synchronous>, transform_indices = @transform_2, window_bounds = array<i64: 1, 32>}, {transform_indices = @transform_3, window_bounds = array<i64: 1, 9, 32>}]} {
    %c0 = arith.constant 0 : index
    %c0_0 = arith.constant 0 : index
    %0 = vector.load %arg2[%c0, %c0_0] : memref<400x32xbf16, #tpu.memory_space<vmem>>, vector<400x32xbf16>
    %c0_1 = arith.constant 0 : index
    %c0_2 = arith.constant 0 : index
    %1 = vector.load %arg3[%c0_1, %c0_2] : memref<1x32xf32, #tpu.memory_space<vmem>>, vector<1x32xf32>
    %c0_3 = arith.constant 0 : index
    %c0_4 = arith.constant 0 : index
    %c0_5 = arith.constant 0 : index
    %c0_6 = arith.constant 0 : index
    %2 = vector.load %arg1[%c0_3, %c0_4, %c0_5, %c0_6] : memref<1x4x9x400xbf16, #tpu.memory_space<vmem>>, vector<1x1x9x400xbf16>
    %3 = vector.shape_cast %2 : vector<1x1x9x400xbf16> to vector<9x400xbf16>
    %cst = arith.constant dense<0.000000e+00> : vector<9x32xf32>
    %4 = tpu.matmul %3, %0, %cst {dimension_numbers = #tpu.dot_dimension_numbers<[1], [0], [0], [1], [0, 0, 1, 1], [], []>} : vector<9x400xbf16>, vector<400x32xbf16>, vector<9x32xf32> -> vector<9x32xf32>
    %5 = vector.broadcast %1 : vector<1x32xf32> to vector<9x32xf32>
    %6 = arith.addf %4, %5 : vector<9x32xf32>
    %cst_7 = arith.constant 0.000000e+00 : f32
    %7 = vector.broadcast %cst_7 : f32 to vector<9x32xf32>
    %8 = arith.maximumf %6, %7 : vector<9x32xf32>
    %c0_8 = arith.constant 0 : index
    %c1 = arith.constant 1 : index
    %c0_9 = arith.constant 0 : index
    %c0_10 = arith.constant 0 : index
    %9 = vector.load %arg1[%c0_8, %c1, %c0_9, %c0_10] : memref<1x4x9x400xbf16, #tpu.memory_space<vmem>>, vector<1x1x9x400xbf16>
    %10 = vector.shape_cast %9 : vector<1x1x9x400xbf16> to vector<9x400xbf16>
    %cst_11 = arith.constant dense<0.000000e+00> : vector<9x32xf32>
    %11 = tpu.matmul %10, %0, %cst_11 {dimension_numbers = #tpu.dot_dimension_numbers<[1], [0], [0], [1], [0, 0, 1, 1], [], []>} : vector<9x400xbf16>, vector<400x32xbf16>, vector<9x32xf32> -> vector<9x32xf32>
    %12 = vector.broadcast %1 : vector<1x32xf32> to vector<9x32xf32>
    %13 = arith.addf %11, %12 : vector<9x32xf32>
    %cst_12 = arith.constant 0.000000e+00 : f32
    %14 = vector.broadcast %cst_12 : f32 to vector<9x32xf32>
    %15 = arith.maximumf %13, %14 : vector<9x32xf32>
    %16 = arith.maximumf %8, %15 : vector<9x32xf32>
    %c0_13 = arith.constant 0 : index
    %c2 = arith.constant 2 : index
    %c0_14 = arith.constant 0 : index
    %c0_15 = arith.constant 0 : index
    %17 = vector.load %arg1[%c0_13, %c2, %c0_14, %c0_15] : memref<1x4x9x400xbf16, #tpu.memory_space<vmem>>, vector<1x1x9x400xbf16>
    %18 = vector.shape_cast %17 : vector<1x1x9x400xbf16> to vector<9x400xbf16>
    %cst_16 = arith.constant dense<0.000000e+00> : vector<9x32xf32>
    %19 = tpu.matmul %18, %0, %cst_16 {dimension_numbers = #tpu.dot_dimension_numbers<[1], [0], [0], [1], [0, 0, 1, 1], [], []>} : vector<9x400xbf16>, vector<400x32xbf16>, vector<9x32xf32> -> vector<9x32xf32>
    %20 = vector.broadcast %1 : vector<1x32xf32> to vector<9x32xf32>
    %21 = arith.addf %19, %20 : vector<9x32xf32>
    %cst_17 = arith.constant 0.000000e+00 : f32
    %22 = vector.broadcast %cst_17 : f32 to vector<9x32xf32>
    %23 = arith.maximumf %21, %22 : vector<9x32xf32>
    %c0_18 = arith.constant 0 : index
    %c3 = arith.constant 3 : index
    %c0_19 = arith.constant 0 : index
    %c0_20 = arith.constant 0 : index
    %24 = vector.load %arg1[%c0_18, %c3, %c0_19, %c0_20] : memref<1x4x9x400xbf16, #tpu.memory_space<vmem>>, vector<1x1x9x400xbf16>
    %25 = vector.shape_cast %24 : vector<1x1x9x400xbf16> to vector<9x400xbf16>
    %cst_21 = arith.constant dense<0.000000e+00> : vector<9x32xf32>
    %26 = tpu.matmul %25, %0, %cst_21 {dimension_numbers = #tpu.dot_dimension_numbers<[1], [0], [0], [1], [0, 0, 1, 1], [], []>} : vector<9x400xbf16>, vector<400x32xbf16>, vector<9x32xf32> -> vector<9x32xf32>
    %27 = vector.broadcast %1 : vector<1x32xf32> to vector<9x32xf32>
    %28 = arith.addf %26, %27 : vector<9x32xf32>
    %cst_22 = arith.constant 0.000000e+00 : f32
    %29 = vector.broadcast %cst_22 : f32 to vector<9x32xf32>
    %30 = arith.maximumf %28, %29 : vector<9x32xf32>
    %31 = arith.maximumf %23, %30 : vector<9x32xf32>
    %32 = arith.maximumf %16, %31 : vector<9x32xf32>
    %c0_23 = arith.constant 0 : index
    %c0_24 = arith.constant 0 : index
    %c0_25 = arith.constant 0 : index
    %33 = vector.load %arg4[%c0_23, %c0_24, %c0_25] : memref<1x9x32xf32, #tpu.memory_space<vmem>>, vector<1x9x32xf32>
    %34 = vector.shape_cast %33 : vector<1x9x32xf32> to vector<9x32xf32>
    %35 = vector.shape_cast %32 : vector<9x32xf32> to vector<1x9x32xf32>
    tpu.vector_store %arg4[%c0_23, %c0_24, %c0_25], %35 {strides = array<i32>} : memref<1x9x32xf32, #tpu.memory_space<vmem>>, vector<1x9x32xf32>,
    return
  }
  func.func @transform_0(%arg0: i32) -> (i32, i32, i32, i32) {
    %c0_i32 = arith.constant 0 : i32
    %c0_i32_0 = arith.constant 0 : i32
    %c0_i32_1 = arith.constant 0 : i32
    %c0_i32_2 = arith.constant 0 : i32
    return %arg0, %c0_i32, %c0_i32_0, %c0_i32_1 : i32, i32, i32, i32
  }
  func.func @transform_1(%arg0: i32) -> (i32, i32) {
    %c0_i32 = arith.constant 0 : i32
    %c0_i32_0 = arith.constant 0 : i32
    %c0_i32_1 = arith.constant 0 : i32
    return %c0_i32, %c0_i32_0 : i32, i32
  }
  func.func @transform_2(%arg0: i32) -> (i32, i32) {
    %c0_i32 = arith.constant 0 : i32
    %c0_i32_0 = arith.constant 0 : i32
    %c0_i32_1 = arith.constant 0 : i32
    return %c0_i32, %c0_i32_0 : i32, i32
  }
  func.func @transform_3(%arg0: i32) -> (i32, i32, i32) {
    %c0_i32 = arith.constant 0 : i32
    %c0_i32_0 = arith.constant 0 : i32
    %c0_i32_1 = arith.constant 0 : i32
    return %arg0, %c0_i32, %c0_i32_0 : i32, i32, i32
  }
}

module attributes {stable_mosaic.version = 11 : i64} {
  func.func @conv_pool_fc_kernel(%arg0: i32, %arg1: memref<1x4x1x288xbf16, #tpu.memory_space<vmem>>, %arg2: memref<288x64xbf16, #tpu.memory_space<vmem>>, %arg3: memref<1x64xf32, #tpu.memory_space<vmem>>, %arg4: memref<64x32xf32, #tpu.memory_space<vmem>>, %arg5: memref<1x32xf32, #tpu.memory_space<vmem>>, %arg6: memref<32x2xf32, #tpu.memory_space<vmem>>, %arg7: memref<1x2xf32, #tpu.memory_space<vmem>>, %arg8: memref<1x1x2xf32, #tpu.memory_space<vmem>>) attributes {dimension_semantics = [#tpu.dimension_semantics<parallel>], iteration_bounds = array<i64: 2>, scalar_prefetch = 0 : i64, scratch_operands = 0 : i64, tpu.core_type = #tpu.core_type<tc>, window_params = [{transform_indices = @transform_0, window_bounds = array<i64: 1, 4, 1, 288>}, {pipeline_mode = #tpu.pipeline_mode<synchronous>, transform_indices = @transform_1, window_bounds = array<i64: 288, 64>}, {pipeline_mode = #tpu.pipeline_mode<synchronous>, transform_indices = @transform_2, window_bounds = array<i64: 1, 64>}, {pipeline_mode = #tpu.pipeline_mode<synchronous>, transform_indices = @transform_3, window_bounds = array<i64: 64, 32>}, {pipeline_mode = #tpu.pipeline_mode<synchronous>, transform_indices = @transform_4, window_bounds = array<i64: 1, 32>}, {pipeline_mode = #tpu.pipeline_mode<synchronous>, transform_indices = @transform_5, window_bounds = array<i64: 32, 2>}, {pipeline_mode = #tpu.pipeline_mode<synchronous>, transform_indices = @transform_6, window_bounds = array<i64: 1, 2>}, {transform_indices = @transform_7, window_bounds = array<i64: 1, 1, 2>}]} {
    %c0 = arith.constant 0 : index
    %c0_0 = arith.constant 0 : index
    %0 = vector.load %arg2[%c0, %c0_0] : memref<288x64xbf16, #tpu.memory_space<vmem>>, vector<288x64xbf16>
    %c0_1 = arith.constant 0 : index
    %c0_2 = arith.constant 0 : index
    %1 = vector.load %arg3[%c0_1, %c0_2] : memref<1x64xf32, #tpu.memory_space<vmem>>, vector<1x64xf32>
    %c0_3 = arith.constant 0 : index
    %c0_4 = arith.constant 0 : index
    %c0_5 = arith.constant 0 : index
    %c0_6 = arith.constant 0 : index
    %2 = vector.load %arg1[%c0_3, %c0_4, %c0_5, %c0_6] : memref<1x4x1x288xbf16, #tpu.memory_space<vmem>>, vector<1x1x1x288xbf16>
    %3 = vector.shape_cast %2 : vector<1x1x1x288xbf16> to vector<1x288xbf16>
    %cst = arith.constant dense<0.000000e+00> : vector<1x64xf32>
    %4 = tpu.matmul %3, %0, %cst {dimension_numbers = #tpu.dot_dimension_numbers<[1], [0], [0], [1], [0, 0, 1, 1], [], []>} : vector<1x288xbf16>, vector<288x64xbf16>, vector<1x64xf32> -> vector<1x64xf32>
    %5 = arith.addf %4, %1 : vector<1x64xf32>
    %cst_7 = arith.constant 0.000000e+00 : f32
    %6 = vector.broadcast %cst_7 : f32 to vector<1x64xf32>
    %7 = arith.maximumf %5, %6 : vector<1x64xf32>
    %c0_8 = arith.constant 0 : index
    %c1 = arith.constant 1 : index
    %c0_9 = arith.constant 0 : index
    %c0_10 = arith.constant 0 : index
    %8 = vector.load %arg1[%c0_8, %c1, %c0_9, %c0_10] : memref<1x4x1x288xbf16, #tpu.memory_space<vmem>>, vector<1x1x1x288xbf16>
    %9 = vector.shape_cast %8 : vector<1x1x1x288xbf16> to vector<1x288xbf16>
    %cst_11 = arith.constant dense<0.000000e+00> : vector<1x64xf32>
    %10 = tpu.matmul %9, %0, %cst_11 {dimension_numbers = #tpu.dot_dimension_numbers<[1], [0], [0], [1], [0, 0, 1, 1], [], []>} : vector<1x288xbf16>, vector<288x64xbf16>, vector<1x64xf32> -> vector<1x64xf32>
    %11 = arith.addf %10, %1 : vector<1x64xf32>
    %cst_12 = arith.constant 0.000000e+00 : f32
    %12 = vector.broadcast %cst_12 : f32 to vector<1x64xf32>
    %13 = arith.maximumf %11, %12 : vector<1x64xf32>
    %14 = arith.maximumf %7, %13 : vector<1x64xf32>
    %c0_13 = arith.constant 0 : index
    %c2 = arith.constant 2 : index
    %c0_14 = arith.constant 0 : index
    %c0_15 = arith.constant 0 : index
    %15 = vector.load %arg1[%c0_13, %c2, %c0_14, %c0_15] : memref<1x4x1x288xbf16, #tpu.memory_space<vmem>>, vector<1x1x1x288xbf16>
    %16 = vector.shape_cast %15 : vector<1x1x1x288xbf16> to vector<1x288xbf16>
    %cst_16 = arith.constant dense<0.000000e+00> : vector<1x64xf32>
    %17 = tpu.matmul %16, %0, %cst_16 {dimension_numbers = #tpu.dot_dimension_numbers<[1], [0], [0], [1], [0, 0, 1, 1], [], []>} : vector<1x288xbf16>, vector<288x64xbf16>, vector<1x64xf32> -> vector<1x64xf32>
    %18 = arith.addf %17, %1 : vector<1x64xf32>
    %cst_17 = arith.constant 0.000000e+00 : f32
    %19 = vector.broadcast %cst_17 : f32 to vector<1x64xf32>
    %20 = arith.maximumf %18, %19 : vector<1x64xf32>
    %c0_18 = arith.constant 0 : index
    %c3 = arith.constant 3 : index
    %c0_19 = arith.constant 0 : index
    %c0_20 = arith.constant 0 : index
    %21 = vector.load %arg1[%c0_18, %c3, %c0_19, %c0_20] : memref<1x4x1x288xbf16, #tpu.memory_space<vmem>>, vector<1x1x1x288xbf16>
    %22 = vector.shape_cast %21 : vector<1x1x1x288xbf16> to vector<1x288xbf16>
    %cst_21 = arith.constant dense<0.000000e+00> : vector<1x64xf32>
    %23 = tpu.matmul %22, %0, %cst_21 {dimension_numbers = #tpu.dot_dimension_numbers<[1], [0], [0], [1], [0, 0, 1, 1], [], []>} : vector<1x288xbf16>, vector<288x64xbf16>, vector<1x64xf32> -> vector<1x64xf32>
    %24 = arith.addf %23, %1 : vector<1x64xf32>
    %cst_22 = arith.constant 0.000000e+00 : f32
    %25 = vector.broadcast %cst_22 : f32 to vector<1x64xf32>
    %26 = arith.maximumf %24, %25 : vector<1x64xf32>
    %27 = arith.maximumf %20, %26 : vector<1x64xf32>
    %28 = arith.maximumf %14, %27 : vector<1x64xf32>
    %c0_23 = arith.constant 0 : index
    %c0_24 = arith.constant 0 : index
    %29 = vector.load %arg4[%c0_23, %c0_24] : memref<64x32xf32, #tpu.memory_space<vmem>>, vector<64x32xf32>
    %cst_25 = arith.constant dense<0.000000e+00> : vector<1x32xf32>
    %30 = tpu.matmul %28, %29, %cst_25 {dimension_numbers = #tpu.dot_dimension_numbers<[1], [0], [0], [1], [0, 0, 1, 1], [], []>} : vector<1x64xf32>, vector<64x32xf32>, vector<1x32xf32> -> vector<1x32xf32>
    %c0_26 = arith.constant 0 : index
    %c0_27 = arith.constant 0 : index
    %31 = vector.load %arg5[%c0_26, %c0_27] : memref<1x32xf32, #tpu.memory_space<vmem>>, vector<1x32xf32>
    %32 = arith.addf %30, %31 : vector<1x32xf32>
    %cst_28 = arith.constant 0.000000e+00 : f32
    %33 = vector.broadcast %cst_28 : f32 to vector<1x32xf32>
    %34 = arith.maximumf %32, %33 : vector<1x32xf32>
    %c0_29 = arith.constant 0 : index
    %c0_30 = arith.constant 0 : index
    %35 = vector.load %arg6[%c0_29, %c0_30] : memref<32x2xf32, #tpu.memory_space<vmem>>, vector<32x2xf32>
    %cst_31 = arith.constant dense<0.000000e+00> : vector<1x2xf32>
    %36 = tpu.matmul %34, %35, %cst_31 {dimension_numbers = #tpu.dot_dimension_numbers<[1], [0], [0], [1], [0, 0, 1, 1], [], []>} : vector<1x32xf32>, vector<32x2xf32>, vector<1x2xf32> -> vector<1x2xf32>
    %c0_32 = arith.constant 0 : index
    %c0_33 = arith.constant 0 : index
    %37 = vector.load %arg7[%c0_32, %c0_33] : memref<1x2xf32, #tpu.memory_space<vmem>>, vector<1x2xf32>
    %38 = arith.addf %36, %37 : vector<1x2xf32>
    %c0_34 = arith.constant 0 : index
    %c0_35 = arith.constant 0 : index
    %c0_36 = arith.constant 0 : index
    %39 = vector.load %arg8[%c0_34, %c0_35, %c0_36] : memref<1x1x2xf32, #tpu.memory_space<vmem>>, vector<1x1x2xf32>
    %40 = vector.shape_cast %39 : vector<1x1x2xf32> to vector<1x2xf32>
    %41 = vector.shape_cast %38 : vector<1x2xf32> to vector<1x1x2xf32>
    tpu.vector_store %arg8[%c0_34, %c0_35, %c0_36], %41 {strides = array<i32>} : memref<1x1x2xf32, #tpu.memory_space<vmem>>, vector<1x1x2xf32>,
    return
  }
  func.func @transform_0(%arg0: i32) -> (i32, i32, i32, i32) {
    %c0_i32 = arith.constant 0 : i32
    %c0_i32_0 = arith.constant 0 : i32
    %c0_i32_1 = arith.constant 0 : i32
    %c0_i32_2 = arith.constant 0 : i32
    return %arg0, %c0_i32, %c0_i32_0, %c0_i32_1 : i32, i32, i32, i32
  }
  func.func @transform_1(%arg0: i32) -> (i32, i32) {
    %c0_i32 = arith.constant 0 : i32
    %c0_i32_0 = arith.constant 0 : i32
    %c0_i32_1 = arith.constant 0 : i32
    return %c0_i32, %c0_i32_0 : i32, i32
  }
  func.func @transform_2(%arg0: i32) -> (i32, i32) {
    %c0_i32 = arith.constant 0 : i32
    %c0_i32_0 = arith.constant 0 : i32
    %c0_i32_1 = arith.constant 0 : i32
    return %c0_i32, %c0_i32_0 : i32, i32
  }
  func.func @transform_3(%arg0: i32) -> (i32, i32) {
    %c0_i32 = arith.constant 0 : i32
    %c0_i32_0 = arith.constant 0 : i32
    %c0_i32_1 = arith.constant 0 : i32
    return %c0_i32, %c0_i32_0 : i32, i32
  }
  func.func @transform_4(%arg0: i32) -> (i32, i32) {
    %c0_i32 = arith.constant 0 : i32
    %c0_i32_0 = arith.constant 0 : i32
    %c0_i32_1 = arith.constant 0 : i32
    return %c0_i32, %c0_i32_0 : i32, i32
  }
  func.func @transform_5(%arg0: i32) -> (i32, i32) {
    %c0_i32 = arith.constant 0 : i32
    %c0_i32_0 = arith.constant 0 : i32
    %c0_i32_1 = arith.constant 0 : i32
    return %c0_i32, %c0_i32_0 : i32, i32
  }
  func.func @transform_6(%arg0: i32) -> (i32, i32) {
    %c0_i32 = arith.constant 0 : i32
    %c0_i32_0 = arith.constant 0 : i32
    %c0_i32_1 = arith.constant 0 : i32
    return %c0_i32, %c0_i32_0 : i32, i32
  }
  func.func @transform_7(%arg0: i32) -> (i32, i32, i32) {
    %c0_i32 = arith.constant 0 : i32
    %c0_i32_0 = arith.constant 0 : i32
    %c0_i32_1 = arith.constant 0 : i32
    return %arg0, %c0_i32, %c0_i32_0 : i32, i32, i32
  }
}

</mosaic_0001>

<llo_original>
// kernel: pigaze_forward.3
$region0: #{pigaze_forward.3}
  #allocation0 [shape = 'u32[]', space=smem, size = 0x4, offset = 0x4, fixed_abs, tag = 'smem constant byte address 0x4 - core index']
  #allocation1 [shape = 'u32[144,128]{1,0:T(1,128)}', space=vmem, size = 0x12000, scoped, tag = 'internal scratch']
  %s0 = inlined_call_operand.vmem [shape: bf16[2,4,225,147], index: 0, kind: input, shape index: {}]
  %s1 = inlined_call_operand.vmem [shape: bf16[147,16], index: 1, kind: input, shape index: {}]
  %s2 = inlined_call_operand.vmem [shape: f32[1,16], index: 2, kind: input, shape index: {}]
  %s3 = inlined_call_operand.vmem [shape: f32[2,225,16], index: 3, kind: output, shape index: {}]
  %s4 = sld [smem:[#allocation0]]
  $region45: #{pigaze_forward.3} parent=0
    _
  %s6 = ssub.s32 1, %s4
  %s7 = scalar_select 0, %s6, %s4
  loop: start=0, step=1, limit=4
  $region2: #{pigaze_forward.3} parent=0 // loop_pre_header
    _
  $region3: #{pigaze_forward.3} parent=0 // loop_header
    %s9 = sphi 0, %s13
    %p10 = scmp.ge.s32.totalorder %s9, 4
    %s19 = sphi 0, %s21
    %s22 = sphi 0, %s19
    %s23 = sphi 0, %s22
    %s39 = sphi 0, %s23
    %s43 = sphi 0, %s43
    %s45 = sphi 0, %s43
    %s46 = sphi 0, %s45
    %s60 = sphi 0, %s46
    %s64 = sphi 0, %s64
    %s66 = sphi 0, %s64
    %s67 = sphi 0, %s66
    %s81 = sphi 0, %s67
    %s87 = sphi 0, %s89
    %s90 = sphi 0, %s87
    %s91 = sphi 0, %s90
    %s107 = sphi 0, %s91
  $region4: #{pigaze_forward.3} parent=0 // loop_header_branch
    %12 = sbr.rel (%p10) target = $region8
  $region5: #{pigaze_forward.3} parent=0 // loop_body
    %s14 = ssub.s32 %s9, 1
    %s15 = ssub.s32 %s9, 2
    %s16 = sadd.s32 %s9, 1
    %s17 = ssub.s32 %s9, %s16
    %p18 = scmp.eq.s32.totalorder %s17, 0
    %s20 = sadd.s32 %s19, 1
    %s21 = scalar_select %p18, %s19, %s20
    %p24 = pneg %p18
    %p25 = scmp.eq.s32.totalorder %s9, 1
    %p26 = por %p24, %p25
    %p27 = scmp.ne.s32.totalorder %s19, %s22
    %p28 = scmp.eq.s32.totalorder %s9, 0
    %p29 = por %p27, %p28
    %p30 = scmp.ne.s32.totalorder %s19, %s22
    %p31 = scmp.eq.s32.totalorder %s14, 1
    %p32 = por %p30, %p31
    %p33 = scmp.ne.s32.totalorder %s22, %s23
    %p34 = scmp.eq.s32.totalorder %s14, 0
    %p35 = por %p33, %p34
    %p36 = scmp.ne.s32.totalorder %s22, %s23
    %p37 = scmp.eq.s32.totalorder %s15, 1
    %p38 = por %p36, %p37
    %p40 = scmp.ne.s32.totalorder %s23, %s39
    %p41 = scmp.eq.s32.totalorder %s15, 0
    %p42 = por %p40, %p41
    %s44 = sadd.s32 %s43, 1
    %p47 = scmp.eq.s32.totalorder %s9, 1
    %p48 = scmp.ne.s32.totalorder %s43, %s45
    %p49 = scmp.eq.s32.totalorder %s9, 0
    %p50 = por %p48, %p49
    %p51 = scmp.ne.s32.totalorder %s43, %s45
    %p52 = scmp.eq.s32.totalorder %s14, 1
    %p53 = por %p51, %p52
    %p54 = scmp.ne.s32.totalorder %s45, %s46
    %p55 = scmp.eq.s32.totalorder %s14, 0
    %p56 = por %p54, %p55
    %p57 = scmp.ne.s32.totalorder %s45, %s46
    %p58 = scmp.eq.s32.totalorder %s15, 1
    %p59 = por %p57, %p58
    %p61 = scmp.ne.s32.totalorder %s46, %s60
    %p62 = scmp.eq.s32.totalorder %s15, 0
    %p63 = por %p61, %p62
    %s65 = sadd.s32 %s64, 1
    %p68 = scmp.eq.s32.totalorder %s9, 1
    %p69 = scmp.ne.s32.totalorder %s64, %s66
    %p70 = scmp.eq.s32.totalorder %s9, 0
    %p71 = por %p69, %p70
    %p72 = scmp.ne.s32.totalorder %s64, %s66
    %p73 = scmp.eq.s32.totalorder %s14, 1
    %p74 = por %p72, %p73
    %p75 = scmp.ne.s32.totalorder %s66, %s67
    %p76 = scmp.eq.s32.totalorder %s14, 0
    %p77 = por %p75, %p76
    %p78 = scmp.ne.s32.totalorder %s66, %s67
    %p79 = scmp.eq.s32.totalorder %s15, 1
    %p80 = por %p78, %p79
    %p82 = scmp.ne.s32.totalorder %s67, %s81
    %p83 = scmp.eq.s32.totalorder %s15, 0
    %p84 = por %p82, %p83
    %s85 = ssub.s32 %s9, %s16
    %p86 = scmp.eq.s32.totalorder %s85, 0
    %s88 = sadd.s32 %s87, 1
    %s89 = scalar_select %p86, %s87, %s88
    %p92 = pneg %p86
    %p93 = scmp.eq.s32.totalorder %s9, 1
    %p94 = por %p92, %p93
    %p95 = scmp.ne.s32.totalorder %s87, %s90
    %p96 = scmp.eq.s32.totalorder %s9, 0
    %p97 = por %p95, %p96
    %p98 = scmp.ne.s32.totalorder %s87, %s90
    %p99 = scmp.eq.s32.totalorder %s14, 1
    %p100 = por %p98, %p99
    %p101 = scmp.ne.s32.totalorder %s90, %s91
    %p102 = scmp.eq.s32.totalorder %s14, 0
    %p103 = por %p101, %p102
    %p104 = scmp.ne.s32.totalorder %s90, %s91
    %p105 = scmp.eq.s32.totalorder %s15, 1
    %p106 = por %p104, %p105
    %p108 = scmp.ne.s32.totalorder %s91, %s107
    %p109 = scmp.eq.s32.totalorder %s15, 0
    %p110 = por %p108, %p109
    %p111 = scmp.le.s32.totalorder 1, %s9
    %p112 = scmp.lt.s32.totalorder %s9, 3
    %p113 = pnand %p111, %p112
    %p114 = pneg %p113
    // Predicated region
    $region9: #{pigaze_forward.3} parent=5 // pred_check
      _
    $region10: #{pigaze_forward.3} parent=5 // pred_check_branch
      %116 = sbr.rel (%p113) target = $region12
    $region11: #{pigaze_forward.3} parent=5 // pred_region
      %s117 = ssub.s32 %s9, 1
      // Predicated region
      $region13: #{pigaze_forward.3} parent=11 // pred_check
        %p118 = pneg %p56
      $region14: #{pigaze_forward.3} parent=11 // pred_check_branch
        %120 = sbr.rel (%p118) target = $region16
      $region15: #{pigaze_forward.3} parent=11 // pred_region
        _
      $region16: #{pigaze_forward.3} parent=11 // pred_fallthru
        _
      // Predicated region
      $region17: #{pigaze_forward.3} parent=11 // pred_check
        %p121 = pneg %p77
      $region18: #{pigaze_forward.3} parent=11 // pred_check_branch
        %123 = sbr.rel (%p121) target = $region20
      $region19: #{pigaze_forward.3} parent=11 // pred_region
        _
      $region20: #{pigaze_forward.3} parent=11 // pred_fallthru
        _
    $region12: #{pigaze_forward.3} parent=5 // pred_fallthru
      _
    %p124 = scmp.lt.s32.totalorder %s9, 2
    // Predicated region
    $region21: #{pigaze_forward.3} parent=5 // pred_check
      %p125 = pneg %p124
    $region22: #{pigaze_forward.3} parent=5 // pred_check_branch
      %127 = sbr.rel (%p125) target = $region24
    $region23: #{pigaze_forward.3} parent=5 // pred_region
      // Predicated region
      $region25: #{pigaze_forward.3} parent=23 // pred_check
        %p128 = pneg %p29
      $region26: #{pigaze_forward.3} parent=23 // pred_check_branch
        %130 = sbr.rel (%p128) target = $region28
      $region27: #{pigaze_forward.3} parent=23 // pred_region
        %p131 = scmp.lt.s32.totalorder %s9, 1
        %s132 = scalar_select %p131, %s9, 1
        %s133 = smul.addr %s132, 232
        %s134 = smul.addr %s133, 4
        %s135 = scalar_lea.vmem %s0, %s134
      $region28: #{pigaze_forward.3} parent=23 // pred_fallthru
        _
    $region24: #{pigaze_forward.3} parent=5 // pred_fallthru
      _
    %p136 = scmp.le.s32.totalorder 1, %s9
    %p137 = scmp.lt.s32.totalorder %s9, 3
    %p138 = pnand %p136, %p137
    %p139 = pneg %p138
    // Predicated region
    $region29: #{pigaze_forward.3} parent=5 // pred_check
      _
    $region30: #{pigaze_forward.3} parent=5 // pred_check_branch
      %141 = sbr.rel (%p138) target = $region32
    $region31: #{pigaze_forward.3} parent=5 // pred_region
      %s142 = ssub.s32 %s9, 1
      %p143 = scmp.lt.s32.totalorder %s14, 1
      %s144 = scalar_select %p143, %s14, 1
      %s145 = smul.addr %s144, 232
      %s146 = smul.addr %s145, 4
      %s147 = scalar_lea.vmem %s0, %s146
      %p148 = pneg %p35
      %p149 = pneg %p32
      %p150 = pneg %p56
      %p151 = pneg %p53
      %p152 = pneg %p77
      %p153 = pneg %p74
      %p154 = pneg %p103
      %p155 = pneg %p100
      %p156 = scmp.lt.s32.totalorder %s14, 1
      %s157 = scalar_select %p156, %s14, 1
      %s158 = smul.addr %s157, 29
      %s159 = smul.addr %s158, 8
      %s160 = scalar_lea.vmem %s3, %s159
      %p161 = scmp.lt.s32.totalorder %s14, 1
      %s162 = scalar_select %p161, %s14, 1
      %s163 = smul.addr %s162, 232
      %s164 = smul.addr %s163, 4
      %s165 = scalar_lea.vmem %s0, %s164
      %p166 = scmp.lt.s32.totalorder %s14, 1
      %s167 = scalar_select %p166, %s14, 1
      %s168 = smul.addr %s167, 29
      %s169 = smul.addr %s168, 8
      %s170 = scalar_lea.vmem %s3, %s169
      %v172 = vld [vmem:[%s1] sm:$0xf]
      %v173 = vld [vmem:[%s1 + $0x4] sm:$0xf]
      %v174 = vld [vmem:[%s1 + $0x8] sm:$0xf]
      %v175 = vld [vmem:[%s1 + $0xc] sm:$0xf]
      %v176 = vld [vmem:[%s1 + $0x10] sm:$0xf]
      %v177 = vld [vmem:[%s1 + $0x14] sm:$0xf]
      %v178 = vld [vmem:[%s1 + $0x18] sm:$0xf]
      %v179 = vld [vmem:[%s1 + $0x1c] sm:$0xf]
      %v180 = vld [vmem:[%s1 + $0x20] sm:$0xf]
      %v181 = vld [vmem:[%s1 + $0x24] sm:$0xf]
      %v182 = vld [vmem:[%s1 + $0x28] sm:$0xf]
      %v183 = vld [vmem:[%s1 + $0x2c] sm:$0xf]
      %v184 = vld [vmem:[%s1 + $0x30] sm:$0xf]
      %v185 = vld [vmem:[%s1 + $0x34] sm:$0xf]
      %v186 = vld [vmem:[%s1 + $0x38] sm:$0xf]
      %v187 = vld [vmem:[%s1 + $0x3c] sm:$0xf]
      %v188 = vld [vmem:[%s1 + $0x40] sm:$0xf]
      %v189 = vld [vmem:[%s1 + $0x44] sm:$0xf]
      %v190 = vld [vmem:[%s1 + $0x48] sm:$0x3]
      %v191 = vld [vmem:[%s2] sm:$0x1]
      %v192 = vld [vmem:[%s165] sm:$0xff]
      %v193 = vld [vmem:[%s165 + $0x8] sm:$0xff]
      %v194 = vld [vmem:[%s165 + $0x10] sm:$0xff]
      %v195 = vld [vmem:[%s165 + $0x18] sm:$0xff]
      %v196 = vld [vmem:[%s165 + $0x20] sm:$0xff]
      %v197 = vld [vmem:[%s165 + $0x28] sm:$0xff]
      %v198 = vld [vmem:[%s165 + $0x30] sm:$0xff]
      %v199 = vld [vmem:[%s165 + $0x38] sm:$0xff]
      %v200 = vld [vmem:[%s165 + $0x40] sm:$0xff]
      %v201 = vld [vmem:[%s165 + $0x48] sm:$0xff]
      %v202 = vld [vmem:[%s165 + $0x50] sm:$0xff]
      %v203 = vld [vmem:[%s165 + $0x58] sm:$0xff]
      %v204 = vld [vmem:[%s165 + $0x60] sm:$0xff]
      %v205 = vld [vmem:[%s165 + $0x68] sm:$0xff]
      %v206 = vld [vmem:[%s165 + $0x70] sm:$0xff]
      %v207 = vld [vmem:[%s165 + $0x78] sm:$0xff]
      %v208 = vld [vmem:[%s165 + $0x80] sm:$0xff]
      %v209 = vld [vmem:[%s165 + $0x88] sm:$0xff]
      %v210 = vld [vmem:[%s165 + $0x90] sm:$0xff]
      %v211 = vld [vmem:[%s165 + $0x98] sm:$0xff]
      %v212 = vld [vmem:[%s165 + $0xa0] sm:$0xff]
      %v213 = vld [vmem:[%s165 + $0xa8] sm:$0xff]
      %v214 = vld [vmem:[%s165 + $0xb0] sm:$0xff]
      %v215 = vld [vmem:[%s165 + $0xb8] sm:$0xff]
      %v216 = vld [vmem:[%s165 + $0xc0] sm:$0xff]
      %v217 = vld [vmem:[%s165 + $0xc8] sm:$0xff]
      %v218 = vld [vmem:[%s165 + $0xd0] sm:$0xff]
      %v219 = vld [vmem:[%s165 + $0xd8] sm:$0xff]
      %v220 = vld [vmem:[%s165 + $0xe0] sm:$0x11]
      %v222 = vlaneseq
      %v223 = vshrl.u32 %v222, 7
      %v224 = vsub.s32 0, %v223
      %v225 = vrot.slane %v191, %v224
      %v256 = vunpack.c.l.b16 %v192
      %v257 = vunpack.c.h.b16 %v192
      %v258 = vunpack.c.l.b16 %v193
      %v259 = vunpack.c.h.b16 %v193
      %v260 = vunpack.c.l.b16 %v194
      %v261 = vunpack.c.h.b16 %v194
      %v262 = vunpack.c.l.b16 %v195
      %v263 = vunpack.c.h.b16 %v195
      %v264 = vunpack.c.l.b16 %v196
      %v265 = vunpack.c.h.b16 %v196
      %v266 = vunpack.c.l.b16 %v197
      %v267 = vunpack.c.h.b16 %v197
      %v268 = vunpack.c.l.b16 %v198
      %v269 = vunpack.c.h.b16 %v198
      %v270 = vunpack.c.l.b16 %v199
      %v271 = vunpack.c.h.b16 %v199
      %v272 = vunpack.c.l.b16 %v200
      %v273 = vunpack.c.h.b16 %v200
      %v274 = vunpack.c.l.b16 %v201
      %v275 = vunpack.c.h.b16 %v201
      %v276 = vunpack.c.l.b16 %v202
      %v277 = vunpack.c.h.b16 %v202
      %v278 = vunpack.c.l.b16 %v203
      %v279 = vunpack.c.h.b16 %v203
      %v280 = vunpack.c.l.b16 %v204
      %v281 = vunpack.c.h.b16 %v204
      %v282 = vunpack.c.l.b16 %v205
      %v283 = vunpack.c.h.b16 %v205
      %v284 = vunpack.c.l.b16 %v206
      %v285 = vunpack.c.h.b16 %v206
      %v286 = vunpack.c.l.b16 %v207
      %v287 = vunpack.c.h.b16 %v207
      %v288 = vunpack.c.l.b16 %v208
      %v289 = vunpack.c.h.b16 %v208
      %v290 = vunpack.c.l.b16 %v209
      %v291 = vunpack.c.h.b16 %v209
      %v292 = vunpack.c.l.b16 %v210
      %v293 = vunpack.c.h.b16 %v210
      %v294 = vunpack.c.l.b16 %v211
      %v295 = vunpack.c.h.b16 %v211
      %v296 = vunpack.c.l.b16 %v212
      %v297 = vunpack.c.h.b16 %v212
      %v298 = vunpack.c.l.b16 %v213
      %v299 = vunpack.c.h.b16 %v213
      %v300 = vunpack.c.l.b16 %v214
      %v301 = vunpack.c.h.b16 %v214
      %v302 = vunpack.c.l.b16 %v215
      %v303 = vunpack.c.h.b16 %v215
      %v304 = vunpack.c.l.b16 %v216
      %v305 = vunpack.c.h.b16 %v216
      %v306 = vunpack.c.l.b16 %v217
      %v307 = vunpack.c.h.b16 %v217
      %v308 = vunpack.c.l.b16 %v218
      %v309 = vunpack.c.h.b16 %v218
      %v310 = vunpack.c.l.b16 %v219
      %v311 = vunpack.c.h.b16 %v219
      %v312 = vunpack.c.l.b16 %v220
      %v313 = vunpack.c.h.b16 %v220
      %v314 = vpack.c.b16 %v258, %v256
      %v315 = vpack.c.b16 %v259, %v257
      %v316 = vpack.c.b16 %v262, %v260
      %v317 = vpack.c.b16 %v263, %v261
      %v318 = vpack.c.b16 %v266, %v264
      %v319 = vpack.c.b16 %v267, %v265
      %v320 = vpack.c.b16 %v270, %v268
      %v321 = vpack.c.b16 %v271, %v269
      %v322 = vpack.c.b16 %v274, %v272
      %v323 = vpack.c.b16 %v275, %v273
      %v324 = vpack.c.b16 %v278, %v276
      %v325 = vpack.c.b16 %v279, %v277
      %v326 = vpack.c.b16 %v282, %v280
      %v327 = vpack.c.b16 %v283, %v281
      %v328 = vpack.c.b16 %v286, %v284
      %v329 = vpack.c.b16 %v287, %v285
      %v330 = vpack.c.b16 %v290, %v288
      %v331 = vpack.c.b16 %v291, %v289
      %v332 = vpack.c.b16 %v294, %v292
      %v333 = vpack.c.b16 %v295, %v293
      %v334 = vpack.c.b16 %v298, %v296
      %v335 = vpack.c.b16 %v299, %v297
      %v336 = vpack.c.b16 %v302, %v300
      %v337 = vpack.c.b16 %v303, %v301
      %v338 = vpack.c.b16 %v306, %v304
      %v339 = vpack.c.b16 %v307, %v305
      %v340 = vpack.c.b16 %v310, %v308
      %v341 = vpack.c.b16 %v311, %v309
      %v342 = vpack.c.b16 %v312, %v312
      %v343 = vpack.c.b16 %v313, %v313
      %v378 = vunpack.c.l.b16 %v172
      %v379 = vunpack.c.l.b16 %v173
      %v380 = vunpack.c.l.b16 %v174
      %v381 = vunpack.c.l.b16 %v175
      %v382 = vunpack.c.l.b16 %v176
      %v383 = vunpack.c.l.b16 %v177
      %v384 = vunpack.c.l.b16 %v178
      %v385 = vunpack.c.l.b16 %v179
      %v386 = vunpack.c.l.b16 %v180
      %v387 = vunpack.c.l.b16 %v181
      %v388 = vunpack.c.l.b16 %v182
      %v389 = vunpack.c.l.b16 %v183
      %v390 = vunpack.c.l.b16 %v184
      %v391 = vunpack.c.l.b16 %v185
      %v392 = vunpack.c.l.b16 %v186
      %v393 = vunpack.c.l.b16 %v187
      %v394 = vunpack.c.l.b16 %v188
      %v395 = vunpack.c.l.b16 %v189
      %v396 = vunpack.c.l.b16 %v190
      %v397 = vpack.c.b16 %v379, %v378
      %v398 = vpack.c.b16 %v381, %v380
      %v399 = vpack.c.b16 %v383, %v382
      %v400 = vpack.c.b16 %v385, %v384
      %v401 = vpack.c.b16 %v387, %v386
      %v402 = vpack.c.b16 %v389, %v388
      %v403 = vpack.c.b16 %v391, %v390
      %v404 = vpack.c.b16 %v393, %v392
      %v405 = vpack.c.b16 %v395, %v394
      %v406 = vpack.c.b16 %v396, %v396
      %vm416 = vcmask 154624
      %v418 = vsel %vm416, %v315, 0
      %v421 = vsel %vm416, %v317, 0
      %v424 = vsel %vm416, %v319, 0
      %v427 = vsel %vm416, %v321, 0
      %v430 = vsel %vm416, %v323, 0
      %v433 = vsel %vm416, %v325, 0
      %v436 = vsel %vm416, %v327, 0
      %v439 = vsel %vm416, %v329, 0
      %v442 = vsel %vm416, %v331, 0
      %v445 = vsel %vm416, %v333, 0
      %v448 = vsel %vm416, %v335, 0
      %v451 = vsel %vm416, %v337, 0
      %v454 = vsel %vm416, %v339, 0
      %v457 = vsel %vm416, %v341, 0
      %v460 = vsel %vm416, %v343, 0
      %vm462 = vcmask 1040384
      %vm463 = vcmask 1041408
      %v464 = vsel %vm462, 4294967295, 65535
      %v465 = vsel %vm463, %v464, 0
      %v467 = vand.u32 %v406, %v465
      %469 = vmatprep.subr.bf16.mxu0 0
      %470 = vmatpush1.bf16.msra.mxu0 %v404
      %471 = vmatprep.subr.bf16.mxu0 0
      %472 = vmatpush1.bf16.msra.mxu0 %v403
      %473 = vmatprep.subr.bf16.mxu0 0
      %474 = vmatpush1.bf16.msra.mxu0 %v402
      %475 = vmatprep.subr.bf16.mxu0 0
      %476 = vmatpush1.bf16.msra.mxu0 %v401
      %477 = vmatprep.subr.bf16.mxu0 0
      %478 = vmatpush1.bf16.msra.mxu0 %v400
      %479 = vmatprep.subr.bf16.mxu0 0
      %480 = vmatpush1.bf16.msra.mxu0 %v399
      %481 = vmatprep.subr.bf16.mxu0 0
      %482 = vmatpush1.bf16.msra.mxu0 %v398
      %483 = vmatprep.subr.bf16.mxu0 0
      %484 = vmatpush1.bf16.msra.mxu0 %v397
      %485 = vmatprep.subr.bf16.mxu0 0
      %486 = vmatpush2.bf16.msra.mxu0 0
      %487 = vmatprep.subr.bf16.mxu0 0
      %488 = vmatpush2.bf16.msra.mxu0 0
      %489 = vmatprep.subr.bf16.mxu0 0
      %490 = vmatpush2.bf16.msra.mxu0 0
      %491 = vmatprep.subr.bf16.mxu0 0
      %492 = vmatpush2.bf16.msra.mxu0 0
      %493 = vmatprep.subr.bf16.mxu0 0
      %494 = vmatpush2.bf16.msra.mxu0 0
      %495 = vmatprep.subr.bf16.mxu0 0
      %496 = vmatpush2.bf16.msra.mxu0 0
      %497 = vmatprep.subr.bf16.mxu0 0
      %498 = vmatpush2.bf16.msra.mxu0 %v467
      %499 = vmatprep.subr.bf16.mxu0 0
      %500 = vmatpush2.bf16.msra.mxu0 %v405
      %501 = vmatprep.mubr.bf16.mxu0 %v418
      %502 = vmatmul.mubr.bf16.gmra.mxu0 %v314
      %v503 = vpop.f32.mrf.mxu0
      %v504 = vadd.f32 %v225, %v503
      %v505 = vpop.f32.mrf.mxu0
      %v506 = vpop.f32.mrf.mxu0
      %v507 = vadd.f32 %v225, %v506
      %v508 = vpop.f32.mrf.mxu0
      %509 = vmatprep.mubr.bf16.mxu0 %v421
      %510 = vmatmul.mubr.bf16.gmra.mxu0 %v316
      %v511 = vpop.f32.mrf.mxu0
      %v512 = vadd.f32 %v225, %v511
      %v513 = vpop.f32.mrf.mxu0
      %v514 = vpop.f32.mrf.mxu0
      %v515 = vadd.f32 %v225, %v514
      %v516 = vpop.f32.mrf.mxu0
      %517 = vmatprep.mubr.bf16.mxu0 %v424
      %518 = vmatmul.mubr.bf16.gmra.mxu0 %v318
      %v519 = vpop.f32.mrf.mxu0
      %v520 = vadd.f32 %v225, %v519
      %v521 = vpop.f32.mrf.mxu0
      %v522 = vpop.f32.mrf.mxu0
      %v523 = vadd.f32 %v225, %v522
      %v524 = vpop.f32.mrf.mxu0
      %525 = vmatprep.mubr.bf16.mxu0 %v427
      %526 = vmatmul.mubr.bf16.gmra.mxu0 %v320
      %v527 = vpop.f32.mrf.mxu0
      %v528 = vadd.f32 %v225, %v527
      %v529 = vpop.f32.mrf.mxu0
      %v530 = vpop.f32.mrf.mxu0
      %v531 = vadd.f32 %v225, %v530
      %v532 = vpop.f32.mrf.mxu0
      %533 = vmatprep.mubr.bf16.mxu0 %v430
      %534 = vmatmul.mubr.bf16.gmra.mxu0 %v322
      %v535 = vpop.f32.mrf.mxu0
      %v536 = vadd.f32 %v225, %v535
      %v537 = vpop.f32.mrf.mxu0
      %v538 = vpop.f32.mrf.mxu0
      %v539 = vadd.f32 %v225, %v538
      %v540 = vpop.f32.mrf.mxu0
      %541 = vmatprep.mubr.bf16.mxu0 %v433
      %542 = vmatmul.mubr.bf16.gmra.mxu0 %v324
      %v543 = vpop.f32.mrf.mxu0
      %v544 = vadd.f32 %v225, %v543
      %v545 = vpop.f32.mrf.mxu0
      %v546 = vpop.f32.mrf.mxu0
      %v547 = vadd.f32 %v225, %v546
      %v548 = vpop.f32.mrf.mxu0
      %549 = vmatprep.mubr.bf16.mxu0 %v436
      %550 = vmatmul.mubr.bf16.gmra.mxu0 %v326
      %v551 = vpop.f32.mrf.mxu0
      %v552 = vadd.f32 %v225, %v551
      %v553 = vpop.f32.mrf.mxu0
      %v554 = vpop.f32.mrf.mxu0
      %v555 = vadd.f32 %v225, %v554
      %v556 = vpop.f32.mrf.mxu0
      %557 = vmatprep.mubr.bf16.mxu0 %v439
      %558 = vmatmul.mubr.bf16.gmra.mxu0 %v328
      %v559 = vpop.f32.mrf.mxu0
      %v560 = vadd.f32 %v225, %v559
      %v561 = vpop.f32.mrf.mxu0
      %v562 = vpop.f32.mrf.mxu0
      %v563 = vadd.f32 %v225, %v562
      %v564 = vpop.f32.mrf.mxu0
      %565 = vmatprep.mubr.bf16.mxu0 %v442
      %566 = vmatmul.mubr.bf16.gmra.mxu0 %v330
      %v567 = vpop.f32.mrf.mxu0
      %v568 = vadd.f32 %v225, %v567
      %v569 = vpop.f32.mrf.mxu0
      %v570 = vpop.f32.mrf.mxu0
      %v571 = vadd.f32 %v225, %v570
      %v572 = vpop.f32.mrf.mxu0
      %573 = vmatprep.mubr.bf16.mxu0 %v445
      %574 = vmatmul.mubr.bf16.gmra.mxu0 %v332
      %v575 = vpop.f32.mrf.mxu0
      %v576 = vadd.f32 %v225, %v575
      %v577 = vpop.f32.mrf.mxu0
      %v578 = vpop.f32.mrf.mxu0
      %v579 = vadd.f32 %v225, %v578
      %v580 = vpop.f32.mrf.mxu0
      %581 = vmatprep.mubr.bf16.mxu0 %v448
      %582 = vmatmul.mubr.bf16.gmra.mxu0 %v334
      %v583 = vpop.f32.mrf.mxu0
      %v584 = vadd.f32 %v225, %v583
      %v585 = vpop.f32.mrf.mxu0
      %v586 = vpop.f32.mrf.mxu0
      %v587 = vadd.f32 %v225, %v586
      %v588 = vpop.f32.mrf.mxu0
      %589 = vmatprep.mubr.bf16.mxu0 %v451
      %590 = vmatmul.mubr.bf16.gmra.mxu0 %v336
      %v591 = vpop.f32.mrf.mxu0
      %v592 = vadd.f32 %v225, %v591
      %v593 = vpop.f32.mrf.mxu0
      %v594 = vpop.f32.mrf.mxu0
      %v595 = vadd.f32 %v225, %v594
      %v596 = vpop.f32.mrf.mxu0
      %597 = vmatprep.mubr.bf16.mxu0 %v454
      %598 = vmatmul.mubr.bf16.gmra.mxu0 %v338
      %v599 = vpop.f32.mrf.mxu0
      %v600 = vadd.f32 %v225, %v599
      %v601 = vpop.f32.mrf.mxu0
      %v602 = vpop.f32.mrf.mxu0
      %v603 = vadd.f32 %v225, %v602
      %v604 = vpop.f32.mrf.mxu0
      %605 = vmatprep.mubr.bf16.mxu0 %v457
      %606 = vmatmul.mubr.bf16.gmra.mxu0 %v340
      %v607 = vpop.f32.mrf.mxu0
      %v608 = vadd.f32 %v225, %v607
      %v609 = vpop.f32.mrf.mxu0
      %v610 = vpop.f32.mrf.mxu0
      %v611 = vadd.f32 %v225, %v610
      %v612 = vpop.f32.mrf.mxu0
      %613 = vmatprep.mubr.bf16.mxu0 %v460
      %614 = vmatmul.mubr.bf16.gmra.mxu0 %v342
      %v615 = vpop.f32.mrf.mxu0
      %v616 = vadd.f32 %v225, %v615
      %v617 = vpop.f32.mrf.mxu0
      %v618 = vpop.f32.mrf.mxu0
      %v619 = vpop.f32.mrf.mxu0
      %620 = vdwg.mxu0
      %v621 = vmax.f32 %v504, 0.0
      %v622 = vmax.f32 %v507, 0.0
      %v623 = vmax.f32 %v512, 0.0
      %v624 = vmax.f32 %v515, 0.0
      %v625 = vmax.f32 %v520, 0.0
      %v626 = vmax.f32 %v523, 0.0
      %v627 = vmax.f32 %v528, 0.0
      %v628 = vmax.f32 %v531, 0.0
      %v629 = vmax.f32 %v536, 0.0
      %v630 = vmax.f32 %v539, 0.0
      %v631 = vmax.f32 %v544, 0.0
      %v632 = vmax.f32 %v547, 0.0
      %v633 = vmax.f32 %v552, 0.0
      %v634 = vmax.f32 %v555, 0.0
      %v635 = vmax.f32 %v560, 0.0
      %v636 = vmax.f32 %v563, 0.0
      %v637 = vmax.f32 %v568, 0.0
      %v638 = vmax.f32 %v571, 0.0
      %v639 = vmax.f32 %v576, 0.0
      %v640 = vmax.f32 %v579, 0.0
      %v641 = vmax.f32 %v584, 0.0
      %v642 = vmax.f32 %v587, 0.0
      %v643 = vmax.f32 %v592, 0.0
      %v644 = vmax.f32 %v595, 0.0
      %v645 = vmax.f32 %v600, 0.0
      %v646 = vmax.f32 %v603, 0.0
      %v647 = vmax.f32 %v608, 0.0
      %v648 = vmax.f32 %v611, 0.0
      %v649 = vmax.f32 %v616, 0.0
      %s650 = scalar_lea.vmem %s165, 232
      %v651 = vld [vmem:[%s650] sm:$0xff]
      %v652 = vld [vmem:[%s650 + $0x8] sm:$0xff]
      %v653 = vld [vmem:[%s650 + $0x10] sm:$0xff]
      %v654 = vld [vmem:[%s650 + $0x18] sm:$0xff]
      %v655 = vld [vmem:[%s650 + $0x20] sm:$0xff]
      %v656 = vld [vmem:[%s650 + $0x28] sm:$0xff]
      %v657 = vld [vmem:[%s650 + $0x30] sm:$0xff]
      %v658 = vld [vmem:[%s650 + $0x38] sm:$0xff]
      %v659 = vld [vmem:[%s650 + $0x40] sm:$0xff]
      %v660 = vld [vmem:[%s650 + $0x48] sm:$0xff]
      %v661 = vld [vmem:[%s650 + $0x50] sm:$0xff]
      %v662 = vld [vmem:[%s650 + $0x58] sm:$0xff]
      %v663 = vld [vmem:[%s650 + $0x60] sm:$0xff]
      %v664 = vld [vmem:[%s650 + $0x68] sm:$0xff]
      %v665 = vld [vmem:[%s650 + $0x70] sm:$0xff]
      %v666 = vld [vmem:[%s650 + $0x78] sm:$0xff]
      %v667 = vld [vmem:[%s650 + $0x80] sm:$0xff]
      %v668 = vld [vmem:[%s650 + $0x88] sm:$0xff]
      %v669 = vld [vmem:[%s650 + $0x90] sm:$0xff]
      %v670 = vld [vmem:[%s650 + $0x98] sm:$0xff]
      %v671 = vld [vmem:[%s650 + $0xa0] sm:$0xff]
      %v672 = vld [vmem:[%s650 + $0xa8] sm:$0xff]
      %v673 = vld [vmem:[%s650 + $0xb0] sm:$0xff]
      %v674 = vld [vmem:[%s650 + $0xb8] sm:$0xff]
      %v675 = vld [vmem:[%s650 + $0xc0] sm:$0xff]
      %v676 = vld [vmem:[%s650 + $0xc8] sm:$0xff]
      %v677 = vld [vmem:[%s650 + $0xd0] sm:$0xff]
      %v678 = vld [vmem:[%s650 + $0xd8] sm:$0xff]
      %v679 = vld [vmem:[%s650 + $0xe0] sm:$0x11]
      %v709 = vunpack.c.l.b16 %v651
      %v710 = vunpack.c.h.b16 %v651
      %v711 = vunpack.c.l.b16 %v652
      %v712 = vunpack.c.h.b16 %v652
      %v713 = vunpack.c.l.b16 %v653
      %v714 = vunpack.c.h.b16 %v653
      %v715 = vunpack.c.l.b16 %v654
      %v716 = vunpack.c.h.b16 %v654
      %v717 = vunpack.c.l.b16 %v655
      %v718 = vunpack.c.h.b16 %v655
      %v719 = vunpack.c.l.b16 %v656
      %v720 = vunpack.c.h.b16 %v656
      %v721 = vunpack.c.l.b16 %v657
      %v722 = vunpack.c.h.b16 %v657
      %v723 = vunpack.c.l.b16 %v658
      %v724 = vunpack.c.h.b16 %v658
      %v725 = vunpack.c.l.b16 %v659
      %v726 = vunpack.c.h.b16 %v659
      %v727 = vunpack.c.l.b16 %v660
      %v728 = vunpack.c.h.b16 %v660
      %v729 = vunpack.c.l.b16 %v661
      %v730 = vunpack.c.h.b16 %v661
      %v731 = vunpack.c.l.b16 %v662
      %v732 = vunpack.c.h.b16 %v662
      %v733 = vunpack.c.l.b16 %v663
      %v734 = vunpack.c.h.b16 %v663
      %v735 = vunpack.c.l.b16 %v664
      %v736 = vunpack.c.h.b16 %v664
      %v737 = vunpack.c.l.b16 %v665
      %v738 = vunpack.c.h.b16 %v665
      %v739 = vunpack.c.l.b16 %v666
      %v740 = vunpack.c.h.b16 %v666
      %v741 = vunpack.c.l.b16 %v667
      %v742 = vunpack.c.h.b16 %v667
      %v743 = vunpack.c.l.b16 %v668
      %v744 = vunpack.c.h.b16 %v668
      %v745 = vunpack.c.l.b16 %v669
      %v746 = vunpack.c.h.b16 %v669
      %v747 = vunpack.c.l.b16 %v670
      %v748 = vunpack.c.h.b16 %v670
      %v749 = vunpack.c.l.b16 %v671
      %v750 = vunpack.c.h.b16 %v671
      %v751 = vunpack.c.l.b16 %v672
      %v752 = vunpack.c.h.b16 %v672
      %v753 = vunpack.c.l.b16 %v673
      %v754 = vunpack.c.h.b16 %v673
      %v755 = vunpack.c.l.b16 %v674
      %v756 = vunpack.c.h.b16 %v674
      %v757 = vunpack.c.l.b16 %v675
      %v758 = vunpack.c.h.b16 %v675
      %v759 = vunpack.c.l.b16 %v676
      %v760 = vunpack.c.h.b16 %v676
      %v761 = vunpack.c.l.b16 %v677
      %v762 = vunpack.c.h.b16 %v677
      %v763 = vunpack.c.l.b16 %v678
      %v764 = vunpack.c.h.b16 %v678
      %v765 = vunpack.c.l.b16 %v679
      %v766 = vunpack.c.h.b16 %v679
      %v767 = vpack.c.b16 %v711, %v709
      %v768 = vpack.c.b16 %v712, %v710
      %v769 = vpack.c.b16 %v715, %v713
      %v770 = vpack.c.b16 %v716, %v714
      %v771 = vpack.c.b16 %v719, %v717
      %v772 = vpack.c.b16 %v720, %v718
      %v773 = vpack.c.b16 %v723, %v721
      %v774 = vpack.c.b16 %v724, %v722
      %v775 = vpack.c.b16 %v727, %v725
      %v776 = vpack.c.b16 %v728, %v726
      %v777 = vpack.c.b16 %v731, %v729
      %v778 = vpack.c.b16 %v732, %v730
      %v779 = vpack.c.b16 %v735, %v733
      %v780 = vpack.c.b16 %v736, %v734
      %v781 = vpack.c.b16 %v739, %v737
      %v782 = vpack.c.b16 %v740, %v738
      %v783 = vpack.c.b16 %v743, %v741
      %v784 = vpack.c.b16 %v744, %v742
      %v785 = vpack.c.b16 %v747, %v745
      %v786 = vpack.c.b16 %v748, %v746
      %v787 = vpack.c.b16 %v751, %v749
      %v788 = vpack.c.b16 %v752, %v750
      %v789 = vpack.c.b16 %v755, %v753
      %v790 = vpack.c.b16 %v756, %v754
      %v791 = vpack.c.b16 %v759, %v757
      %v792 = vpack.c.b16 %v760, %v758
      %v793 = vpack.c.b16 %v763, %v761
      %v794 = vpack.c.b16 %v764, %v762
      %v795 = vpack.c.b16 %v765, %v765
      %v796 = vpack.c.b16 %v766, %v766
      %v813 = vsel %vm416, %v768, 0
      %v816 = vsel %vm416, %v770, 0
      %v819 = vsel %vm416, %v772, 0
      %v822 = vsel %vm416, %v774, 0
      %v825 = vsel %vm416, %v776, 0
      %v828 = vsel %vm416, %v778, 0
      %v831 = vsel %vm416, %v780, 0
      %v834 = vsel %vm416, %v782, 0
      %v837 = vsel %vm416, %v784, 0
      %v840 = vsel %vm416, %v786, 0
      %v843 = vsel %vm416, %v788, 0
      %v846 = vsel %vm416, %v790, 0
      %v849 = vsel %vm416, %v792, 0
      %v852 = vsel %vm416, %v794, 0
      %v855 = vsel %vm416, %v796, 0
      %857 = vmatprep.subr.bf16.mxu0 0
      %858 = vmatpush1.bf16.msra.mxu0 %v404
      %859 = vmatprep.subr.bf16.mxu0 0
      %860 = vmatpush1.bf16.msra.mxu0 %v403
      %861 = vmatprep.subr.bf16.mxu0 0
      %862 = vmatpush1.bf16.msra.mxu0 %v402
      %863 = vmatprep.subr.bf16.mxu0 0
      %864 = vmatpush1.bf16.msra.mxu0 %v401
      %865 = vmatprep.subr.bf16.mxu0 0
      %866 = vmatpush1.bf16.msra.mxu0 %v400
      %867 = vmatprep.subr.bf16.mxu0 0
      %868 = vmatpush1.bf16.msra.mxu0 %v399
      %869 = vmatprep.subr.bf16.mxu0 0
      %870 = vmatpush1.bf16.msra.mxu0 %v398
      %871 = vmatprep.subr.bf16.mxu0 0
      %872 = vmatpush1.bf16.msra.mxu0 %v397
      %873 = vmatprep.subr.bf16.mxu0 0
      %874 = vmatpush2.bf16.msra.mxu0 0
      %875 = vmatprep.subr.bf16.mxu0 0
      %876 = vmatpush2.bf16.msra.mxu0 0
      %877 = vmatprep.subr.bf16.mxu0 0
      %878 = vmatpush2.bf16.msra.mxu0 0
      %879 = vmatprep.subr.bf16.mxu0 0
      %880 = vmatpush2.bf16.msra.mxu0 0
      %881 = vmatprep.subr.bf16.mxu0 0
      %882 = vmatpush2.bf16.msra.mxu0 0
      %883 = vmatprep.subr.bf16.mxu0 0
      %884 = vmatpush2.bf16.msra.mxu0 0
      %885 = vmatprep.subr.bf16.mxu0 0
      %886 = vmatpush2.bf16.msra.mxu0 %v467
      %887 = vmatprep.subr.bf16.mxu0 0
      %888 = vmatpush2.bf16.msra.mxu0 %v405
      %889 = vmatprep.mubr.bf16.mxu0 %v813
      %890 = vmatmul.mubr.bf16.gmra.mxu0 %v767
      %v891 = vpop.f32.mrf.mxu0
      %v892 = vadd.f32 %v225, %v891
      %v893 = vpop.f32.mrf.mxu0
      %v894 = vpop.f32.mrf.mxu0
      %v895 = vadd.f32 %v225, %v894
      %v896 = vpop.f32.mrf.mxu0
      %897 = vmatprep.mubr.bf16.mxu0 %v816
      %898 = vmatmul.mubr.bf16.gmra.mxu0 %v769
      %v899 = vpop.f32.mrf.mxu0
      %v900 = vadd.f32 %v225, %v899
      %v901 = vpop.f32.mrf.mxu0
      %v902 = vpop.f32.mrf.mxu0
      %v903 = vadd.f32 %v225, %v902
      %v904 = vpop.f32.mrf.mxu0
      %905 = vmatprep.mubr.bf16.mxu0 %v819
      %906 = vmatmul.mubr.bf16.gmra.mxu0 %v771
      %v907 = vpop.f32.mrf.mxu0
      %v908 = vadd.f32 %v225, %v907
      %v909 = vpop.f32.mrf.mxu0
      %v910 = vpop.f32.mrf.mxu0
      %v911 = vadd.f32 %v225, %v910
      %v912 = vpop.f32.mrf.mxu0
      %913 = vmatprep.mubr.bf16.mxu0 %v822
      %914 = vmatmul.mubr.bf16.gmra.mxu0 %v773
      %v915 = vpop.f32.mrf.mxu0
      %v916 = vadd.f32 %v225, %v915
      %v917 = vpop.f32.mrf.mxu0
      %v918 = vpop.f32.mrf.mxu0
      %v919 = vadd.f32 %v225, %v918
      %v920 = vpop.f32.mrf.mxu0
      %921 = vmatprep.mubr.bf16.mxu0 %v825
      %922 = vmatmul.mubr.bf16.gmra.mxu0 %v775
      %v923 = vpop.f32.mrf.mxu0
      %v924 = vadd.f32 %v225, %v923
      %v925 = vpop.f32.mrf.mxu0
      %v926 = vpop.f32.mrf.mxu0
      %v927 = vadd.f32 %v225, %v926
      %v928 = vpop.f32.mrf.mxu0
      %929 = vmatprep.mubr.bf16.mxu0 %v828
      %930 = vmatmul.mubr.bf16.gmra.mxu0 %v777
      %v931 = vpop.f32.mrf.mxu0
      %v932 = vadd.f32 %v225, %v931
      %v933 = vpop.f32.mrf.mxu0
      %v934 = vpop.f32.mrf.mxu0
      %v935 = vadd.f32 %v225, %v934
      %v936 = vpop.f32.mrf.mxu0
      %937 = vmatprep.mubr.bf16.mxu0 %v831
      %938 = vmatmul.mubr.bf16.gmra.mxu0 %v779
      %v939 = vpop.f32.mrf.mxu0
      %v940 = vadd.f32 %v225, %v939
      %v941 = vpop.f32.mrf.mxu0
      %v942 = vpop.f32.mrf.mxu0
      %v943 = vadd.f32 %v225, %v942
      %v944 = vpop.f32.mrf.mxu0
      %945 = vmatprep.mubr.bf16.mxu0 %v834
      %946 = vmatmul.mubr.bf16.gmra.mxu0 %v781
      %v947 = vpop.f32.mrf.mxu0
      %v948 = vadd.f32 %v225, %v947
      %v949 = vpop.f32.mrf.mxu0
      %v950 = vpop.f32.mrf.mxu0
      %v951 = vadd.f32 %v225, %v950
      %v952 = vpop.f32.mrf.mxu0
      %953 = vmatprep.mubr.bf16.mxu0 %v837
      %954 = vmatmul.mubr.bf16.gmra.mxu0 %v783
      %v955 = vpop.f32.mrf.mxu0
      %v956 = vadd.f32 %v225, %v955
      %v957 = vpop.f32.mrf.mxu0
      %v958 = vpop.f32.mrf.mxu0
      %v959 = vadd.f32 %v225, %v958
      %v960 = vpop.f32.mrf.mxu0
      %961 = vmatprep.mubr.bf16.mxu0 %v840
      %962 = vmatmul.mubr.bf16.gmra.mxu0 %v785
      %v963 = vpop.f32.mrf.mxu0
      %v964 = vadd.f32 %v225, %v963
      %v965 = vpop.f32.mrf.mxu0
      %v966 = vpop.f32.mrf.mxu0
      %v967 = vadd.f32 %v225, %v966
      %v968 = vpop.f32.mrf.mxu0
      %969 = vmatprep.mubr.bf16.mxu0 %v843
      %970 = vmatmul.mubr.bf16.gmra.mxu0 %v787
      %v971 = vpop.f32.mrf.mxu0
      %v972 = vadd.f32 %v225, %v971
      %v973 = vpop.f32.mrf.mxu0
      %v974 = vpop.f32.mrf.mxu0
      %v975 = vadd.f32 %v225, %v974
      %v976 = vpop.f32.mrf.mxu0
      %977 = vmatprep.mubr.bf16.mxu0 %v846
      %978 = vmatmul.mubr.bf16.gmra.mxu0 %v789
      %v979 = vpop.f32.mrf.mxu0
      %v980 = vadd.f32 %v225, %v979
      %v981 = vpop.f32.mrf.mxu0
      %v982 = vpop.f32.mrf.mxu0
      %v983 = vadd.f32 %v225, %v982
      %v984 = vpop.f32.mrf.mxu0
      %985 = vmatprep.mubr.bf16.mxu0 %v849
      %986 = vmatmul.mubr.bf16.gmra.mxu0 %v791
      %v987 = vpop.f32.mrf.mxu0
      %v988 = vadd.f32 %v225, %v987
      %v989 = vpop.f32.mrf.mxu0
      %v990 = vpop.f32.mrf.mxu0
      %v991 = vadd.f32 %v225, %v990
      %v992 = vpop.f32.mrf.mxu0
      %993 = vmatprep.mubr.bf16.mxu0 %v852
      %994 = vmatmul.mubr.bf16.gmra.mxu0 %v793
      %v995 = vpop.f32.mrf.mxu0
      %v996 = vadd.f32 %v225, %v995
      %v997 = vpop.f32.mrf.mxu0
      %v998 = vpop.f32.mrf.mxu0
      %v999 = vadd.f32 %v225, %v998
      %v1000 = vpop.f32.mrf.mxu0
      %1001 = vmatprep.mubr.bf16.mxu0 %v855
      %1002 = vmatmul.mubr.bf16.gmra.mxu0 %v795
      %v1003 = vpop.f32.mrf.mxu0
      %v1004 = vadd.f32 %v225, %v1003
      %v1005 = vpop.f32.mrf.mxu0
      %v1006 = vpop.f32.mrf.mxu0
      %v1007 = vpop.f32.mrf.mxu0
      %1008 = vdwg.mxu0
      %v1009 = vmax.f32 %v892, 0.0
      %v1010 = vmax.f32 %v895, 0.0
      %v1011 = vmax.f32 %v900, 0.0
      %v1012 = vmax.f32 %v903, 0.0
      %v1013 = vmax.f32 %v908, 0.0
      %v1014 = vmax.f32 %v911, 0.0
      %v1015 = vmax.f32 %v916, 0.0
      %v1016 = vmax.f32 %v919, 0.0
      %v1017 = vmax.f32 %v924, 0.0
      %v1018 = vmax.f32 %v927, 0.0
      %v1019 = vmax.f32 %v932, 0.0
      %v1020 = vmax.f32 %v935, 0.0
      %v1021 = vmax.f32 %v940, 0.0
      %v1022 = vmax.f32 %v943, 0.0
      %v1023 = vmax.f32 %v948, 0.0
      %v1024 = vmax.f32 %v951, 0.0
      %v1025 = vmax.f32 %v956, 0.0
      %v1026 = vmax.f32 %v959, 0.0
      %v1027 = vmax.f32 %v964, 0.0
      %v1028 = vmax.f32 %v967, 0.0
      %v1029 = vmax.f32 %v972, 0.0
      %v1030 = vmax.f32 %v975, 0.0
      %v1031 = vmax.f32 %v980, 0.0
      %v1032 = vmax.f32 %v983, 0.0
      %v1033 = vmax.f32 %v988, 0.0
      %v1034 = vmax.f32 %v991, 0.0
      %v1035 = vmax.f32 %v996, 0.0
      %v1036 = vmax.f32 %v999, 0.0
      %v1037 = vmax.f32 %v1004, 0.0
      %v1038 = vmax.f32 %v621, %v1009
      %v1039 = vmax.f32 %v622, %v1010
      %v1040 = vmax.f32 %v623, %v1011
      %v1041 = vmax.f32 %v624, %v1012
      %v1042 = vmax.f32 %v625, %v1013
      %v1043 = vmax.f32 %v626, %v1014
      %v1044 = vmax.f32 %v627, %v1015
      %v1045 = vmax.f32 %v628, %v1016
      %v1046 = vmax.f32 %v629, %v1017
      %v1047 = vmax.f32 %v630, %v1018
      %v1048 = vmax.f32 %v631, %v1019
      %v1049 = vmax.f32 %v632, %v1020
      %v1050 = vmax.f32 %v633, %v1021
      %v1051 = vmax.f32 %v634, %v1022
      %v1052 = vmax.f32 %v635, %v1023
      %v1053 = vmax.f32 %v636, %v1024
      %v1054 = vmax.f32 %v637, %v1025
      %v1055 = vmax.f32 %v638, %v1026
      %v1056 = vmax.f32 %v639, %v1027
      %v1057 = vmax.f32 %v640, %v1028
      %v1058 = vmax.f32 %v641, %v1029
      %v1059 = vmax.f32 %v642, %v1030
      %v1060 = vmax.f32 %v643, %v1031
      %v1061 = vmax.f32 %v644, %v1032
      %v1062 = vmax.f32 %v645, %v1033
      %v1063 = vmax.f32 %v646, %v1034
      %v1064 = vmax.f32 %v647, %v1035
      %v1065 = vmax.f32 %v648, %v1036
      %v1066 = vmax.f32 %v649, %v1037
      %s1067 = scalar_lea.vmem %s165, 464
      %v1068 = vld [vmem:[%s1067] sm:$0xff]
      %v1069 = vld [vmem:[%s1067 + $0x8] sm:$0xff]
      %v1070 = vld [vmem:[%s1067 + $0x10] sm:$0xff]
      %v1071 = vld [vmem:[%s1067 + $0x18] sm:$0xff]
      %v1072 = vld [vmem:[%s1067 + $0x20] sm:$0xff]
      %v1073 = vld [vmem:[%s1067 + $0x28] sm:$0xff]
      %v1074 = vld [vmem:[%s1067 + $0x30] sm:$0xff]
      %v1075 = vld [vmem:[%s1067 + $0x38] sm:$0xff]
      %v1076 = vld [vmem:[%s1067 + $0x40] sm:$0xff]
      %v1077 = vld [vmem:[%s1067 + $0x48] sm:$0xff]
      %v1078 = vld [vmem:[%s1067 + $0x50] sm:$0xff]
      %v1079 = vld [vmem:[%s1067 + $0x58] sm:$0xff]
      %v1080 = vld [vmem:[%s1067 + $0x60] sm:$0xff]
      %v1081 = vld [vmem:[%s1067 + $0x68] sm:$0xff]
      %v1082 = vld [vmem:[%s1067 + $0x70] sm:$0xff]
      %v1083 = vld [vmem:[%s1067 + $0x78] sm:$0xff]
      %v1084 = vld [vmem:[%s1067 + $0x80] sm:$0xff]
      %v1085 = vld [vmem:[%s1067 + $0x88] sm:$0xff]
      %v1086 = vld [vmem:[%s1067 + $0x90] sm:$0xff]
      %v1087 = vld [vmem:[%s1067 + $0x98] sm:$0xff]
      %v1088 = vld [vmem:[%s1067 + $0xa0] sm:$0xff]
      %v1089 = vld [vmem:[%s1067 + $0xa8] sm:$0xff]
      %v1090 = vld [vmem:[%s1067 + $0xb0] sm:$0xff]
      %v1091 = vld [vmem:[%s1067 + $0xb8] sm:$0xff]
      %v1092 = vld [vmem:[%s1067 + $0xc0] sm:$0xff]
      %v1093 = vld [vmem:[%s1067 + $0xc8] sm:$0xff]
      %v1094 = vld [vmem:[%s1067 + $0xd0] sm:$0xff]
      %v1095 = vld [vmem:[%s1067 + $0xd8] sm:$0xff]
      %v1096 = vld [vmem:[%s1067 + $0xe0] sm:$0x11]
      %v1126 = vunpack.c.l.b16 %v1068
      %v1127 = vunpack.c.h.b16 %v1068
      %v1128 = vunpack.c.l.b16 %v1069
      %v1129 = vunpack.c.h.b16 %v1069
      %v1130 = vunpack.c.l.b16 %v1070
      %v1131 = vunpack.c.h.b16 %v1070
      %v1132 = vunpack.c.l.b16 %v1071
      %v1133 = vunpack.c.h.b16 %v1071
      %v1134 = vunpack.c.l.b16 %v1072
      %v1135 = vunpack.c.h.b16 %v1072
      %v1136 = vunpack.c.l.b16 %v1073
      %v1137 = vunpack.c.h.b16 %v1073
      %v1138 = vunpack.c.l.b16 %v1074
      %v1139 = vunpack.c.h.b16 %v1074
      %v1140 = vunpack.c.l.b16 %v1075
      %v1141 = vunpack.c.h.b16 %v1075
      %v1142 = vunpack.c.l.b16 %v1076
      %v1143 = vunpack.c.h.b16 %v1076
      %v1144 = vunpack.c.l.b16 %v1077
      %v1145 = vunpack.c.h.b16 %v1077
      %v1146 = vunpack.c.l.b16 %v1078
      %v1147 = vunpack.c.h.b16 %v1078
      %v1148 = vunpack.c.l.b16 %v1079
      %v1149 = vunpack.c.h.b16 %v1079
      %v1150 = vunpack.c.l.b16 %v1080
      %v1151 = vunpack.c.h.b16 %v1080
      %v1152 = vunpack.c.l.b16 %v1081
      %v1153 = vunpack.c.h.b16 %v1081
      %v1154 = vunpack.c.l.b16 %v1082
      %v1155 = vunpack.c.h.b16 %v1082
      %v1156 = vunpack.c.l.b16 %v1083
      %v1157 = vunpack.c.h.b16 %v1083
      %v1158 = vunpack.c.l.b16 %v1084
      %v1159 = vunpack.c.h.b16 %v1084
      %v1160 = vunpack.c.l.b16 %v1085
      %v1161 = vunpack.c.h.b16 %v1085
      %v1162 = vunpack.c.l.b16 %v1086
      %v1163 = vunpack.c.h.b16 %v1086
      %v1164 = vunpack.c.l.b16 %v1087
      %v1165 = vunpack.c.h.b16 %v1087
      %v1166 = vunpack.c.l.b16 %v1088
      %v1167 = vunpack.c.h.b16 %v1088
      %v1168 = vunpack.c.l.b16 %v1089
      %v1169 = vunpack.c.h.b16 %v1089
      %v1170 = vunpack.c.l.b16 %v1090
      %v1171 = vunpack.c.h.b16 %v1090
      %v1172 = vunpack.c.l.b16 %v1091
      %v1173 = vunpack.c.h.b16 %v1091
      %v1174 = vunpack.c.l.b16 %v1092
      %v1175 = vunpack.c.h.b16 %v1092
      %v1176 = vunpack.c.l.b16 %v1093
      %v1177 = vunpack.c.h.b16 %v1093
      %v1178 = vunpack.c.l.b16 %v1094
      %v1179 = vunpack.c.h.b16 %v1094
      %v1180 = vunpack.c.l.b16 %v1095
      %v1181 = vunpack.c.h.b16 %v1095
      %v1182 = vunpack.c.l.b16 %v1096
      %v1183 = vunpack.c.h.b16 %v1096
      %v1184 = vpack.c.b16 %v1128, %v1126
      %v1185 = vpack.c.b16 %v1129, %v1127
      %v1186 = vpack.c.b16 %v1132, %v1130
      %v1187 = vpack.c.b16 %v1133, %v1131
      %v1188 = vpack.c.b16 %v1136, %v1134
      %v1189 = vpack.c.b16 %v1137, %v1135
      %v1190 = vpack.c.b16 %v1140, %v1138
      %v1191 = vpack.c.b16 %v1141, %v1139
      %v1192 = vpack.c.b16 %v1144, %v1142
      %v1193 = vpack.c.b16 %v1145, %v1143
      %v1194 = vpack.c.b16 %v1148, %v1146
      %v1195 = vpack.c.b16 %v1149, %v1147
      %v1196 = vpack.c.b16 %v1152, %v1150
      %v1197 = vpack.c.b16 %v1153, %v1151
      %v1198 = vpack.c.b16 %v1156, %v1154
      %v1199 = vpack.c.b16 %v1157, %v1155
      %v1200 = vpack.c.b16 %v1160, %v1158
      %v1201 = vpack.c.b16 %v1161, %v1159
      %v1202 = vpack.c.b16 %v1164, %v1162
      %v1203 = vpack.c.b16 %v1165, %v1163
      %v1204 = vpack.c.b16 %v1168, %v1166
      %v1205 = vpack.c.b16 %v1169, %v1167
      %v1206 = vpack.c.b16 %v1172, %v1170
      %v1207 = vpack.c.b16 %v1173, %v1171
      %v1208 = vpack.c.b16 %v1176, %v1174
      %v1209 = vpack.c.b16 %v1177, %v1175
      %v1210 = vpack.c.b16 %v1180, %v1178
      %v1211 = vpack.c.b16 %v1181, %v1179
      %v1212 = vpack.c.b16 %v1182, %v1182
      %v1213 = vpack.c.b16 %v1183, %v1183
      %v1230 = vsel %vm416, %v1185, 0
      %v1233 = vsel %vm416, %v1187, 0
      %v1236 = vsel %vm416, %v1189, 0
      %v1239 = vsel %vm416, %v1191, 0
      %v1242 = vsel %vm416, %v1193, 0
      %v1245 = vsel %vm416, %v1195, 0
      %v1248 = vsel %vm416, %v1197, 0
      %v1251 = vsel %vm416, %v1199, 0
      %v1254 = vsel %vm416, %v1201, 0
      %v1257 = vsel %vm416, %v1203, 0
      %v1260 = vsel %vm416, %v1205, 0
      %v1263 = vsel %vm416, %v1207, 0
      %v1266 = vsel %vm416, %v1209, 0
      %v1269 = vsel %vm416, %v1211, 0
      %v1272 = vsel %vm416, %v1213, 0
      %1274 = vmatprep.subr.bf16.mxu0 0
      %1275 = vmatpush1.bf16.msra.mxu0 %v404
      %1276 = vmatprep.subr.bf16.mxu0 0
      %1277 = vmatpush1.bf16.msra.mxu0 %v403
      %1278 = vmatprep.subr.bf16.mxu0 0
      %1279 = vmatpush1.bf16.msra.mxu0 %v402
      %1280 = vmatprep.subr.bf16.mxu0 0
      %1281 = vmatpush1.bf16.msra.mxu0 %v401
      %1282 = vmatprep.subr.bf16.mxu0 0
      %1283 = vmatpush1.bf16.msra.mxu0 %v400
      %1284 = vmatprep.subr.bf16.mxu0 0
      %1285 = vmatpush1.bf16.msra.mxu0 %v399
      %1286 = vmatprep.subr.bf16.mxu0 0
      %1287 = vmatpush1.bf16.msra.mxu0 %v398
      %1288 = vmatprep.subr.bf16.mxu0 0
      %1289 = vmatpush1.bf16.msra.mxu0 %v397
      %1290 = vmatprep.subr.bf16.mxu0 0
      %1291 = vmatpush2.bf16.msra.mxu0 0
      %1292 = vmatprep.subr.bf16.mxu0 0
      %1293 = vmatpush2.bf16.msra.mxu0 0
      %1294 = vmatprep.subr.bf16.mxu0 0
      %1295 = vmatpush2.bf16.msra.mxu0 0
      %1296 = vmatprep.subr.bf16.mxu0 0
      %1297 = vmatpush2.bf16.msra.mxu0 0
      %1298 = vmatprep.subr.bf16.mxu0 0
      %1299 = vmatpush2.bf16.msra.mxu0 0
      %1300 = vmatprep.subr.bf16.mxu0 0
      %1301 = vmatpush2.bf16.msra.mxu0 0
      %1302 = vmatprep.subr.bf16.mxu0 0
      %1303 = vmatpush2.bf16.msra.mxu0 %v467
      %1304 = vmatprep.subr.bf16.mxu0 0
      %1305 = vmatpush2.bf16.msra.mxu0 %v405
      %1306 = vmatprep.mubr.bf16.mxu0 %v1230
      %1307 = vmatmul.mubr.bf16.gmra.mxu0 %v1184
      %v1308 = vpop.f32.mrf.mxu0
      %v1309 = vadd.f32 %v225, %v1308
      %v1310 = vpop.f32.mrf.mxu0
      %v1311 = vpop.f32.mrf.mxu0
      %v1312 = vadd.f32 %v225, %v1311
      %v1313 = vpop.f32.mrf.mxu0
      %1314 = vmatprep.mubr.bf16.mxu0 %v1233
      %1315 = vmatmul.mubr.bf16.gmra.mxu0 %v1186
      %v1316 = vpop.f32.mrf.mxu0
      %v1317 = vadd.f32 %v225, %v1316
      %v1318 = vpop.f32.mrf.mxu0
      %v1319 = vpop.f32.mrf.mxu0
      %v1320 = vadd.f32 %v225, %v1319
      %v1321 = vpop.f32.mrf.mxu0
      %1322 = vmatprep.mubr.bf16.mxu0 %v1236
      %1323 = vmatmul.mubr.bf16.gmra.mxu0 %v1188
      %v1324 = vpop.f32.mrf.mxu0
      %v1325 = vadd.f32 %v225, %v1324
      %v1326 = vpop.f32.mrf.mxu0
      %v1327 = vpop.f32.mrf.mxu0
      %v1328 = vadd.f32 %v225, %v1327
      %v1329 = vpop.f32.mrf.mxu0
      %1330 = vmatprep.mubr.bf16.mxu0 %v1239
      %1331 = vmatmul.mubr.bf16.gmra.mxu0 %v1190
      %v1332 = vpop.f32.mrf.mxu0
      %v1333 = vadd.f32 %v225, %v1332
      %v1334 = vpop.f32.mrf.mxu0
      %v1335 = vpop.f32.mrf.mxu0
      %v1336 = vadd.f32 %v225, %v1335
      %v1337 = vpop.f32.mrf.mxu0
      %1338 = vmatprep.mubr.bf16.mxu0 %v1242
      %1339 = vmatmul.mubr.bf16.gmra.mxu0 %v1192
      %v1340 = vpop.f32.mrf.mxu0
      %v1341 = vadd.f32 %v225, %v1340
      %v1342 = vpop.f32.mrf.mxu0
      %v1343 = vpop.f32.mrf.mxu0
      %v1344 = vadd.f32 %v225, %v1343
      %v1345 = vpop.f32.mrf.mxu0
      %1346 = vmatprep.mubr.bf16.mxu0 %v1245
      %1347 = vmatmul.mubr.bf16.gmra.mxu0 %v1194
      %v1348 = vpop.f32.mrf.mxu0
      %v1349 = vadd.f32 %v225, %v1348
      %v1350 = vpop.f32.mrf.mxu0
      %v1351 = vpop.f32.mrf.mxu0
      %v1352 = vadd.f32 %v225, %v1351
      %v1353 = vpop.f32.mrf.mxu0
      %1354 = vmatprep.mubr.bf16.mxu0 %v1248
      %1355 = vmatmul.mubr.bf16.gmra.mxu0 %v1196
      %v1356 = vpop.f32.mrf.mxu0
      %v1357 = vadd.f32 %v225, %v1356
      %v1358 = vpop.f32.mrf.mxu0
      %v1359 = vpop.f32.mrf.mxu0
      %v1360 = vadd.f32 %v225, %v1359
      %v1361 = vpop.f32.mrf.mxu0
      %1362 = vmatprep.mubr.bf16.mxu0 %v1251
      %1363 = vmatmul.mubr.bf16.gmra.mxu0 %v1198
      %v1364 = vpop.f32.mrf.mxu0
      %v1365 = vadd.f32 %v225, %v1364
      %v1366 = vpop.f32.mrf.mxu0
      %v1367 = vpop.f32.mrf.mxu0
      %v1368 = vadd.f32 %v225, %v1367
      %v1369 = vpop.f32.mrf.mxu0
      %1370 = vmatprep.mubr.bf16.mxu0 %v1254
      %1371 = vmatmul.mubr.bf16.gmra.mxu0 %v1200
      %v1372 = vpop.f32.mrf.mxu0
      %v1373 = vadd.f32 %v225, %v1372
      %v1374 = vpop.f32.mrf.mxu0
      %v1375 = vpop.f32.mrf.mxu0
      %v1376 = vadd.f32 %v225, %v1375
      %v1377 = vpop.f32.mrf.mxu0
      %1378 = vmatprep.mubr.bf16.mxu0 %v1257
      %1379 = vmatmul.mubr.bf16.gmra.mxu0 %v1202
      %v1380 = vpop.f32.mrf.mxu0
      %v1381 = vadd.f32 %v225, %v1380
      %v1382 = vpop.f32.mrf.mxu0
      %v1383 = vpop.f32.mrf.mxu0
      %v1384 = vadd.f32 %v225, %v1383
      %v1385 = vpop.f32.mrf.mxu0
      %1386 = vmatprep.mubr.bf16.mxu0 %v1260
      %1387 = vmatmul.mubr.bf16.gmra.mxu0 %v1204
      %v1388 = vpop.f32.mrf.mxu0
      %v1389 = vadd.f32 %v225, %v1388
      %v1390 = vpop.f32.mrf.mxu0
      %v1391 = vpop.f32.mrf.mxu0
      %v1392 = vadd.f32 %v225, %v1391
      %v1393 = vpop.f32.mrf.mxu0
      %1394 = vmatprep.mubr.bf16.mxu0 %v1263
      %1395 = vmatmul.mubr.bf16.gmra.mxu0 %v1206
      %v1396 = vpop.f32.mrf.mxu0
      %v1397 = vadd.f32 %v225, %v1396
      %v1398 = vpop.f32.mrf.mxu0
      %v1399 = vpop.f32.mrf.mxu0
      %v1400 = vadd.f32 %v225, %v1399
      %v1401 = vpop.f32.mrf.mxu0
      %1402 = vmatprep.mubr.bf16.mxu0 %v1266
      %1403 = vmatmul.mubr.bf16.gmra.mxu0 %v1208
      %v1404 = vpop.f32.mrf.mxu0
      %v1405 = vadd.f32 %v225, %v1404
      %v1406 = vpop.f32.mrf.mxu0
      %v1407 = vpop.f32.mrf.mxu0
      %v1408 = vadd.f32 %v225, %v1407
      %v1409 = vpop.f32.mrf.mxu0
      %1410 = vmatprep.mubr.bf16.mxu0 %v1269
      %1411 = vmatmul.mubr.bf16.gmra.mxu0 %v1210
      %v1412 = vpop.f32.mrf.mxu0
      %v1413 = vadd.f32 %v225, %v1412
      %v1414 = vpop.f32.mrf.mxu0
      %v1415 = vpop.f32.mrf.mxu0
      %v1416 = vadd.f32 %v225, %v1415
      %v1417 = vpop.f32.mrf.mxu0
      %1418 = vmatprep.mubr.bf16.mxu0 %v1272
      %1419 = vmatmul.mubr.bf16.gmra.mxu0 %v1212
      %v1420 = vpop.f32.mrf.mxu0
      %v1421 = vadd.f32 %v225, %v1420
      %v1422 = vpop.f32.mrf.mxu0
      %v1423 = vpop.f32.mrf.mxu0
      %v1424 = vpop.f32.mrf.mxu0
      %1425 = vdwg.mxu0
      %v1426 = vmax.f32 %v1309, 0.0
      %v1427 = vmax.f32 %v1312, 0.0
      %v1428 = vmax.f32 %v1317, 0.0
      %v1429 = vmax.f32 %v1320, 0.0
      %v1430 = vmax.f32 %v1325, 0.0
      %v1431 = vmax.f32 %v1328, 0.0
      %v1432 = vmax.f32 %v1333, 0.0
      %v1433 = vmax.f32 %v1336, 0.0
      %v1434 = vmax.f32 %v1341, 0.0
      %v1435 = vmax.f32 %v1344, 0.0
      %v1436 = vmax.f32 %v1349, 0.0
      %v1437 = vmax.f32 %v1352, 0.0
      %v1438 = vmax.f32 %v1357, 0.0
      %v1439 = vmax.f32 %v1360, 0.0
      %v1440 = vmax.f32 %v1365, 0.0
      %v1441 = vmax.f32 %v1368, 0.0
      %v1442 = vmax.f32 %v1373, 0.0
      %v1443 = vmax.f32 %v1376, 0.0
      %v1444 = vmax.f32 %v1381, 0.0
      %v1445 = vmax.f32 %v1384, 0.0
      %v1446 = vmax.f32 %v1389, 0.0
      %v1447 = vmax.f32 %v1392, 0.0
      %v1448 = vmax.f32 %v1397, 0.0
      %v1449 = vmax.f32 %v1400, 0.0
      %v1450 = vmax.f32 %v1405, 0.0
      %v1451 = vmax.f32 %v1408, 0.0
      %v1452 = vmax.f32 %v1413, 0.0
      %v1453 = vmax.f32 %v1416, 0.0
      %v1454 = vmax.f32 %v1421, 0.0
      %s1455 = scalar_lea.vmem %s165, 696
      %v1456 = vld [vmem:[%s1455] sm:$0xff]
      %v1457 = vld [vmem:[%s1455 + $0x8] sm:$0xff]
      %v1458 = vld [vmem:[%s1455 + $0x10] sm:$0xff]
      %v1459 = vld [vmem:[%s1455 + $0x18] sm:$0xff]
      %v1460 = vld [vmem:[%s1455 + $0x20] sm:$0xff]
      %v1461 = vld [vmem:[%s1455 + $0x28] sm:$0xff]
      %v1462 = vld [vmem:[%s1455 + $0x30] sm:$0xff]
      %v1463 = vld [vmem:[%s1455 + $0x38] sm:$0xff]
      %v1464 = vld [vmem:[%s1455 + $0x40] sm:$0xff]
      %v1465 = vld [vmem:[%s1455 + $0x48] sm:$0xff]
      %v1466 = vld [vmem:[%s1455 + $0x50] sm:$0xff]
      %v1467 = vld [vmem:[%s1455 + $0x58] sm:$0xff]
      %v1468 = vld [vmem:[%s1455 + $0x60] sm:$0xff]
      %v1469 = vld [vmem:[%s1455 + $0x68] sm:$0xff]
      %v1470 = vld [vmem:[%s1455 + $0x70] sm:$0xff]
      %v1471 = vld [vmem:[%s1455 + $0x78] sm:$0xff]
      %v1472 = vld [vmem:[%s1455 + $0x80] sm:$0xff]
      %v1473 = vld [vmem:[%s1455 + $0x88] sm:$0xff]
      %v1474 = vld [vmem:[%s1455 + $0x90] sm:$0xff]
      %v1475 = vld [vmem:[%s1455 + $0x98] sm:$0xff]
      %v1476 = vld [vmem:[%s1455 + $0xa0] sm:$0xff]
      %v1477 = vld [vmem:[%s1455 + $0xa8] sm:$0xff]
      %v1478 = vld [vmem:[%s1455 + $0xb0] sm:$0xff]
      %v1479 = vld [vmem:[%s1455 + $0xb8] sm:$0xff]
      %v1480 = vld [vmem:[%s1455 + $0xc0] sm:$0xff]
      %v1481 = vld [vmem:[%s1455 + $0xc8] sm:$0xff]
      %v1482 = vld [vmem:[%s1455 + $0xd0] sm:$0xff]
      %v1483 = vld [vmem:[%s1455 + $0xd8] sm:$0xff]
      %v1484 = vld [vmem:[%s1455 + $0xe0] sm:$0x11]
      %v1514 = vunpack.c.l.b16 %v1456
      %v1515 = vunpack.c.h.b16 %v1456
      %v1516 = vunpack.c.l.b16 %v1457
      %v1517 = vunpack.c.h.b16 %v1457
      %v1518 = vunpack.c.l.b16 %v1458
      %v1519 = vunpack.c.h.b16 %v1458
      %v1520 = vunpack.c.l.b16 %v1459
      %v1521 = vunpack.c.h.b16 %v1459
      %v1522 = vunpack.c.l.b16 %v1460
      %v1523 = vunpack.c.h.b16 %v1460
      %v1524 = vunpack.c.l.b16 %v1461
      %v1525 = vunpack.c.h.b16 %v1461
      %v1526 = vunpack.c.l.b16 %v1462
      %v1527 = vunpack.c.h.b16 %v1462
      %v1528 = vunpack.c.l.b16 %v1463
      %v1529 = vunpack.c.h.b16 %v1463
      %v1530 = vunpack.c.l.b16 %v1464
      %v1531 = vunpack.c.h.b16 %v1464
      %v1532 = vunpack.c.l.b16 %v1465
      %v1533 = vunpack.c.h.b16 %v1465
      %v1534 = vunpack.c.l.b16 %v1466
      %v1535 = vunpack.c.h.b16 %v1466
      %v1536 = vunpack.c.l.b16 %v1467
      %v1537 = vunpack.c.h.b16 %v1467
      %v1538 = vunpack.c.l.b16 %v1468
      %v1539 = vunpack.c.h.b16 %v1468
      %v1540 = vunpack.c.l.b16 %v1469
      %v1541 = vunpack.c.h.b16 %v1469
      %v1542 = vunpack.c.l.b16 %v1470
      %v1543 = vunpack.c.h.b16 %v1470
      %v1544 = vunpack.c.l.b16 %v1471
      %v1545 = vunpack.c.h.b16 %v1471
      %v1546 = vunpack.c.l.b16 %v1472
      %v1547 = vunpack.c.h.b16 %v1472
      %v1548 = vunpack.c.l.b16 %v1473
      %v1549 = vunpack.c.h.b16 %v1473
      %v1550 = vunpack.c.l.b16 %v1474
      %v1551 = vunpack.c.h.b16 %v1474
      %v1552 = vunpack.c.l.b16 %v1475
      %v1553 = vunpack.c.h.b16 %v1475
      %v1554 = vunpack.c.l.b16 %v1476
      %v1555 = vunpack.c.h.b16 %v1476
      %v1556 = vunpack.c.l.b16 %v1477
      %v1557 = vunpack.c.h.b16 %v1477
      %v1558 = vunpack.c.l.b16 %v1478
      %v1559 = vunpack.c.h.b16 %v1478
      %v1560 = vunpack.c.l.b16 %v1479
      %v1561 = vunpack.c.h.b16 %v1479
      %v1562 = vunpack.c.l.b16 %v1480
      %v1563 = vunpack.c.h.b16 %v1480
      %v1564 = vunpack.c.l.b16 %v1481
      %v1565 = vunpack.c.h.b16 %v1481
      %v1566 = vunpack.c.l.b16 %v1482
      %v1567 = vunpack.c.h.b16 %v1482
      %v1568 = vunpack.c.l.b16 %v1483
      %v1569 = vunpack.c.h.b16 %v1483
      %v1570 = vunpack.c.l.b16 %v1484
      %v1571 = vunpack.c.h.b16 %v1484
      %v1572 = vpack.c.b16 %v1516, %v1514
      %v1573 = vpack.c.b16 %v1517, %v1515
      %v1574 = vpack.c.b16 %v1520, %v1518
      %v1575 = vpack.c.b16 %v1521, %v1519
      %v1576 = vpack.c.b16 %v1524, %v1522
      %v1577 = vpack.c.b16 %v1525, %v1523
      %v1578 = vpack.c.b16 %v1528, %v1526
      %v1579 = vpack.c.b16 %v1529, %v1527
      %v1580 = vpack.c.b16 %v1532, %v1530
      %v1581 = vpack.c.b16 %v1533, %v1531
      %v1582 = vpack.c.b16 %v1536, %v1534
      %v1583 = vpack.c.b16 %v1537, %v1535
      %v1584 = vpack.c.b16 %v1540, %v1538
      %v1585 = vpack.c.b16 %v1541, %v1539
      %v1586 = vpack.c.b16 %v1544, %v1542
      %v1587 = vpack.c.b16 %v1545, %v1543
      %v1588 = vpack.c.b16 %v1548, %v1546
      %v1589 = vpack.c.b16 %v1549, %v1547
      %v1590 = vpack.c.b16 %v1552, %v1550
      %v1591 = vpack.c.b16 %v1553, %v1551
      %v1592 = vpack.c.b16 %v1556, %v1554
      %v1593 = vpack.c.b16 %v1557, %v1555
      %v1594 = vpack.c.b16 %v1560, %v1558
      %v1595 = vpack.c.b16 %v1561, %v1559
      %v1596 = vpack.c.b16 %v1564, %v1562
      %v1597 = vpack.c.b16 %v1565, %v1563
      %v1598 = vpack.c.b16 %v1568, %v1566
      %v1599 = vpack.c.b16 %v1569, %v1567
      %v1600 = vpack.c.b16 %v1570, %v1570
      %v1601 = vpack.c.b16 %v1571, %v1571
      %v1618 = vsel %vm416, %v1573, 0
      %v1621 = vsel %vm416, %v1575, 0
      %v1624 = vsel %vm416, %v1577, 0
      %v1627 = vsel %vm416, %v1579, 0
      %v1630 = vsel %vm416, %v1581, 0
      %v1633 = vsel %vm416, %v1583, 0
      %v1636 = vsel %vm416, %v1585, 0
      %v1639 = vsel %vm416, %v1587, 0
      %v1642 = vsel %vm416, %v1589, 0
      %v1645 = vsel %vm416, %v1591, 0
      %v1648 = vsel %vm416, %v1593, 0
      %v1651 = vsel %vm416, %v1595, 0
      %v1654 = vsel %vm416, %v1597, 0
      %v1657 = vsel %vm416, %v1599, 0
      %v1660 = vsel %vm416, %v1601, 0
      %1662 = vmatprep.subr.bf16.mxu0 0
      %1663 = vmatpush1.bf16.msra.mxu0 %v404
      %1664 = vmatprep.subr.bf16.mxu0 0
      %1665 = vmatpush1.bf16.msra.mxu0 %v403
      %1666 = vmatprep.subr.bf16.mxu0 0
      %1667 = vmatpush1.bf16.msra.mxu0 %v402
      %1668 = vmatprep.subr.bf16.mxu0 0
      %1669 = vmatpush1.bf16.msra.mxu0 %v401
      %1670 = vmatprep.subr.bf16.mxu0 0
      %1671 = vmatpush1.bf16.msra.mxu0 %v400
      %1672 = vmatprep.subr.bf16.mxu0 0
      %1673 = vmatpush1.bf16.msra.mxu0 %v399
      %1674 = vmatprep.subr.bf16.mxu0 0
      %1675 = vmatpush1.bf16.msra.mxu0 %v398
      %1676 = vmatprep.subr.bf16.mxu0 0
      %1677 = vmatpush1.bf16.msra.mxu0 %v397
      %1678 = vmatprep.subr.bf16.mxu0 0
      %1679 = vmatpush2.bf16.msra.mxu0 0
      %1680 = vmatprep.subr.bf16.mxu0 0
      %1681 = vmatpush2.bf16.msra.mxu0 0
      %1682 = vmatprep.subr.bf16.mxu0 0
      %1683 = vmatpush2.bf16.msra.mxu0 0
      %1684 = vmatprep.subr.bf16.mxu0 0
      %1685 = vmatpush2.bf16.msra.mxu0 0
      %1686 = vmatprep.subr.bf16.mxu0 0
      %1687 = vmatpush2.bf16.msra.mxu0 0
      %1688 = vmatprep.subr.bf16.mxu0 0
      %1689 = vmatpush2.bf16.msra.mxu0 0
      %1690 = vmatprep.subr.bf16.mxu0 0
      %1691 = vmatpush2.bf16.msra.mxu0 %v467
      %1692 = vmatprep.subr.bf16.mxu0 0
      %1693 = vmatpush2.bf16.msra.mxu0 %v405
      %1694 = vmatprep.mubr.bf16.mxu0 %v1618
      %1695 = vmatmul.mubr.bf16.gmra.mxu0 %v1572
      %v1696 = vpop.f32.mrf.mxu0
      %v1697 = vadd.f32 %v225, %v1696
      %v1698 = vpop.f32.mrf.mxu0
      %v1699 = vpop.f32.mrf.mxu0
      %v1700 = vadd.f32 %v225, %v1699
      %v1701 = vpop.f32.mrf.mxu0
      %1702 = vmatprep.mubr.bf16.mxu0 %v1621
      %1703 = vmatmul.mubr.bf16.gmra.mxu0 %v1574
      %v1704 = vpop.f32.mrf.mxu0
      %v1705 = vadd.f32 %v225, %v1704
      %v1706 = vpop.f32.mrf.mxu0
      %v1707 = vpop.f32.mrf.mxu0
      %v1708 = vadd.f32 %v225, %v1707
      %v1709 = vpop.f32.mrf.mxu0
      %1710 = vmatprep.mubr.bf16.mxu0 %v1624
      %1711 = vmatmul.mubr.bf16.gmra.mxu0 %v1576
      %v1712 = vpop.f32.mrf.mxu0
      %v1713 = vadd.f32 %v225, %v1712
      %v1714 = vpop.f32.mrf.mxu0
      %v1715 = vpop.f32.mrf.mxu0
      %v1716 = vadd.f32 %v225, %v1715
      %v1717 = vpop.f32.mrf.mxu0
      %1718 = vmatprep.mubr.bf16.mxu0 %v1627
      %1719 = vmatmul.mubr.bf16.gmra.mxu0 %v1578
      %v1720 = vpop.f32.mrf.mxu0
      %v1721 = vadd.f32 %v225, %v1720
      %v1722 = vpop.f32.mrf.mxu0
      %v1723 = vpop.f32.mrf.mxu0
      %v1724 = vadd.f32 %v225, %v1723
      %v1725 = vpop.f32.mrf.mxu0
      %1726 = vmatprep.mubr.bf16.mxu0 %v1630
      %1727 = vmatmul.mubr.bf16.gmra.mxu0 %v1580
      %v1728 = vpop.f32.mrf.mxu0
      %v1729 = vadd.f32 %v225, %v1728
      %v1730 = vpop.f32.mrf.mxu0
      %v1731 = vpop.f32.mrf.mxu0
      %v1732 = vadd.f32 %v225, %v1731
      %v1733 = vpop.f32.mrf.mxu0
      %1734 = vmatprep.mubr.bf16.mxu0 %v1633
      %1735 = vmatmul.mubr.bf16.gmra.mxu0 %v1582
      %v1736 = vpop.f32.mrf.mxu0
      %v1737 = vadd.f32 %v225, %v1736
      %v1738 = vpop.f32.mrf.mxu0
      %v1739 = vpop.f32.mrf.mxu0
      %v1740 = vadd.f32 %v225, %v1739
      %v1741 = vpop.f32.mrf.mxu0
      %1742 = vmatprep.mubr.bf16.mxu0 %v1636
      %1743 = vmatmul.mubr.bf16.gmra.mxu0 %v1584
      %v1744 = vpop.f32.mrf.mxu0
      %v1745 = vadd.f32 %v225, %v1744
      %v1746 = vpop.f32.mrf.mxu0
      %v1747 = vpop.f32.mrf.mxu0
      %v1748 = vadd.f32 %v225, %v1747
      %v1749 = vpop.f32.mrf.mxu0
      %1750 = vmatprep.mubr.bf16.mxu0 %v1639
      %1751 = vmatmul.mubr.bf16.gmra.mxu0 %v1586
      %v1752 = vpop.f32.mrf.mxu0
      %v1753 = vadd.f32 %v225, %v1752
      %v1754 = vpop.f32.mrf.mxu0
      %v1755 = vpop.f32.mrf.mxu0
      %v1756 = vadd.f32 %v225, %v1755
      %v1757 = vpop.f32.mrf.mxu0
      %1758 = vmatprep.mubr.bf16.mxu0 %v1642
      %1759 = vmatmul.mubr.bf16.gmra.mxu0 %v1588
      %v1760 = vpop.f32.mrf.mxu0
      %v1761 = vadd.f32 %v225, %v1760
      %v1762 = vpop.f32.mrf.mxu0
      %v1763 = vpop.f32.mrf.mxu0
      %v1764 = vadd.f32 %v225, %v1763
      %v1765 = vpop.f32.mrf.mxu0
      %1766 = vmatprep.mubr.bf16.mxu0 %v1645
      %1767 = vmatmul.mubr.bf16.gmra.mxu0 %v1590
      %v1768 = vpop.f32.mrf.mxu0
      %v1769 = vadd.f32 %v225, %v1768
      %v1770 = vpop.f32.mrf.mxu0
      %v1771 = vpop.f32.mrf.mxu0
      %v1772 = vadd.f32 %v225, %v1771
      %v1773 = vpop.f32.mrf.mxu0
      %1774 = vmatprep.mubr.bf16.mxu0 %v1648
      %1775 = vmatmul.mubr.bf16.gmra.mxu0 %v1592
      %v1776 = vpop.f32.mrf.mxu0
      %v1777 = vadd.f32 %v225, %v1776
      %v1778 = vpop.f32.mrf.mxu0
      %v1779 = vpop.f32.mrf.mxu0
      %v1780 = vadd.f32 %v225, %v1779
      %v1781 = vpop.f32.mrf.mxu0
      %1782 = vmatprep.mubr.bf16.mxu0 %v1651
      %1783 = vmatmul.mubr.bf16.gmra.mxu0 %v1594
      %v1784 = vpop.f32.mrf.mxu0
      %v1785 = vadd.f32 %v225, %v1784
      %v1786 = vpop.f32.mrf.mxu0
      %v1787 = vpop.f32.mrf.mxu0
      %v1788 = vadd.f32 %v225, %v1787
      %v1789 = vpop.f32.mrf.mxu0
      %1790 = vmatprep.mubr.bf16.mxu0 %v1654
      %1791 = vmatmul.mubr.bf16.gmra.mxu0 %v1596
      %v1792 = vpop.f32.mrf.mxu0
      %v1793 = vadd.f32 %v225, %v1792
      %v1794 = vpop.f32.mrf.mxu0
      %v1795 = vpop.f32.mrf.mxu0
      %v1796 = vadd.f32 %v225, %v1795
      %v1797 = vpop.f32.mrf.mxu0
      %1798 = vmatprep.mubr.bf16.mxu0 %v1657
      %1799 = vmatmul.mubr.bf16.gmra.mxu0 %v1598
      %v1800 = vpop.f32.mrf.mxu0
      %v1801 = vadd.f32 %v225, %v1800
      %v1802 = vpop.f32.mrf.mxu0
      %v1803 = vpop.f32.mrf.mxu0
      %v1804 = vadd.f32 %v225, %v1803
      %v1805 = vpop.f32.mrf.mxu0
      %1806 = vmatprep.mubr.bf16.mxu0 %v1660
      %1807 = vmatmul.mubr.bf16.gmra.mxu0 %v1600
      %v1808 = vpop.f32.mrf.mxu0
      %v1809 = vadd.f32 %v225, %v1808
      %v1810 = vpop.f32.mrf.mxu0
      %v1811 = vpop.f32.mrf.mxu0
      %v1812 = vpop.f32.mrf.mxu0
      %1813 = vdwg.mxu0
      %v1814 = vmax.f32 %v1697, 0.0
      %v1815 = vmax.f32 %v1700, 0.0
      %v1816 = vmax.f32 %v1705, 0.0
      %v1817 = vmax.f32 %v1708, 0.0
      %v1818 = vmax.f32 %v1713, 0.0
      %v1819 = vmax.f32 %v1716, 0.0
      %v1820 = vmax.f32 %v1721, 0.0
      %v1821 = vmax.f32 %v1724, 0.0
      %v1822 = vmax.f32 %v1729, 0.0
      %v1823 = vmax.f32 %v1732, 0.0
      %v1824 = vmax.f32 %v1737, 0.0
      %v1825 = vmax.f32 %v1740, 0.0
      %v1826 = vmax.f32 %v1745, 0.0
      %v1827 = vmax.f32 %v1748, 0.0
      %v1828 = vmax.f32 %v1753, 0.0
      %v1829 = vmax.f32 %v1756, 0.0
      %v1830 = vmax.f32 %v1761, 0.0
      %v1831 = vmax.f32 %v1764, 0.0
      %v1832 = vmax.f32 %v1769, 0.0
      %v1833 = vmax.f32 %v1772, 0.0
      %v1834 = vmax.f32 %v1777, 0.0
      %v1835 = vmax.f32 %v1780, 0.0
      %v1836 = vmax.f32 %v1785, 0.0
      %v1837 = vmax.f32 %v1788, 0.0
      %v1838 = vmax.f32 %v1793, 0.0
      %v1839 = vmax.f32 %v1796, 0.0
      %v1840 = vmax.f32 %v1801, 0.0
      %v1841 = vmax.f32 %v1804, 0.0
      %v1842 = vmax.f32 %v1809, 0.0
      %v1843 = vmax.f32 %v1426, %v1814
      %v1844 = vmax.f32 %v1427, %v1815
      %v1845 = vmax.f32 %v1428, %v1816
      %v1846 = vmax.f32 %v1429, %v1817
      %v1847 = vmax.f32 %v1430, %v1818
      %v1848 = vmax.f32 %v1431, %v1819
      %v1849 = vmax.f32 %v1432, %v1820
      %v1850 = vmax.f32 %v1433, %v1821
      %v1851 = vmax.f32 %v1434, %v1822
      %v1852 = vmax.f32 %v1435, %v1823
      %v1853 = vmax.f32 %v1436, %v1824
      %v1854 = vmax.f32 %v1437, %v1825
      %v1855 = vmax.f32 %v1438, %v1826
      %v1856 = vmax.f32 %v1439, %v1827
      %v1857 = vmax.f32 %v1440, %v1828
      %v1858 = vmax.f32 %v1441, %v1829
      %v1859 = vmax.f32 %v1442, %v1830
      %v1860 = vmax.f32 %v1443, %v1831
      %v1861 = vmax.f32 %v1444, %v1832
      %v1862 = vmax.f32 %v1445, %v1833
      %v1863 = vmax.f32 %v1446, %v1834
      %v1864 = vmax.f32 %v1447, %v1835
      %v1865 = vmax.f32 %v1448, %v1836
      %v1866 = vmax.f32 %v1449, %v1837
      %v1867 = vmax.f32 %v1450, %v1838
      %v1868 = vmax.f32 %v1451, %v1839
      %v1869 = vmax.f32 %v1452, %v1840
      %v1870 = vmax.f32 %v1453, %v1841
      %v1871 = vmax.f32 %v1454, %v1842
      %v1872 = vmax.f32 %v1038, %v1843
      %v1873 = vmax.f32 %v1039, %v1844
      %v1874 = vmax.f32 %v1040, %v1845
      %v1875 = vmax.f32 %v1041, %v1846
      %v1876 = vmax.f32 %v1042, %v1847
      %v1877 = vmax.f32 %v1043, %v1848
      %v1878 = vmax.f32 %v1044, %v1849
      %v1879 = vmax.f32 %v1045, %v1850
      %v1880 = vmax.f32 %v1046, %v1851
      %v1881 = vmax.f32 %v1047, %v1852
      %v1882 = vmax.f32 %v1048, %v1853
      %v1883 = vmax.f32 %v1049, %v1854
      %v1884 = vmax.f32 %v1050, %v1855
      %v1885 = vmax.f32 %v1051, %v1856
      %v1886 = vmax.f32 %v1052, %v1857
      %v1887 = vmax.f32 %v1053, %v1858
      %v1888 = vmax.f32 %v1054, %v1859
      %v1889 = vmax.f32 %v1055, %v1860
      %v1890 = vmax.f32 %v1056, %v1861
      %v1891 = vmax.f32 %v1057, %v1862
      %v1892 = vmax.f32 %v1058, %v1863
      %v1893 = vmax.f32 %v1059, %v1864
      %v1894 = vmax.f32 %v1060, %v1865
      %v1895 = vmax.f32 %v1061, %v1866
      %v1896 = vmax.f32 %v1062, %v1867
      %v1897 = vmax.f32 %v1063, %v1868
      %v1898 = vmax.f32 %v1064, %v1869
      %v1899 = vmax.f32 %v1065, %v1870
      %v1900 = vmax.f32 %v1066, %v1871
      %vm1901 = vcmask 130048
      %1902 = vst.msk [vmem:[%s170] sm:$0xff] %vm1901, %v1872
      %1903 = vst.msk [vmem:[%s170 + $0x8] sm:$0xff] %vm1901, %v1873
      %1904 = vst.msk [vmem:[%s170 + $0x10] sm:$0xff] %vm1901, %v1874
      %1905 = vst.msk [vmem:[%s170 + $0x18] sm:$0xff] %vm1901, %v1875
      %1906 = vst.msk [vmem:[%s170 + $0x20] sm:$0xff] %vm1901, %v1876
      %1907 = vst.msk [vmem:[%s170 + $0x28] sm:$0xff] %vm1901, %v1877
      %1908 = vst.msk [vmem:[%s170 + $0x30] sm:$0xff] %vm1901, %v1878
      %1909 = vst.msk [vmem:[%s170 + $0x38] sm:$0xff] %vm1901, %v1879
      %1910 = vst.msk [vmem:[%s170 + $0x40] sm:$0xff] %vm1901, %v1880
      %1911 = vst.msk [vmem:[%s170 + $0x48] sm:$0xff] %vm1901, %v1881
      %1912 = vst.msk [vmem:[%s170 + $0x50] sm:$0xff] %vm1901, %v1882
      %1913 = vst.msk [vmem:[%s170 + $0x58] sm:$0xff] %vm1901, %v1883
      %1914 = vst.msk [vmem:[%s170 + $0x60] sm:$0xff] %vm1901, %v1884
      %1915 = vst.msk [vmem:[%s170 + $0x68] sm:$0xff] %vm1901, %v1885
      %1916 = vst.msk [vmem:[%s170 + $0x70] sm:$0xff] %vm1901, %v1886
      %1917 = vst.msk [vmem:[%s170 + $0x78] sm:$0xff] %vm1901, %v1887
      %1918 = vst.msk [vmem:[%s170 + $0x80] sm:$0xff] %vm1901, %v1888
      %1919 = vst.msk [vmem:[%s170 + $0x88] sm:$0xff] %vm1901, %v1889
      %1920 = vst.msk [vmem:[%s170 + $0x90] sm:$0xff] %vm1901, %v1890
      %1921 = vst.msk [vmem:[%s170 + $0x98] sm:$0xff] %vm1901, %v1891
      %1922 = vst.msk [vmem:[%s170 + $0xa0] sm:$0xff] %vm1901, %v1892
      %1923 = vst.msk [vmem:[%s170 + $0xa8] sm:$0xff] %vm1901, %v1893
      %1924 = vst.msk [vmem:[%s170 + $0xb0] sm:$0xff] %vm1901, %v1894
      %1925 = vst.msk [vmem:[%s170 + $0xb8] sm:$0xff] %vm1901, %v1895
      %1926 = vst.msk [vmem:[%s170 + $0xc0] sm:$0xff] %vm1901, %v1896
      %1927 = vst.msk [vmem:[%s170 + $0xc8] sm:$0xff] %vm1901, %v1897
      %1928 = vst.msk [vmem:[%s170 + $0xd0] sm:$0xff] %vm1901, %v1898
      %1929 = vst.msk [vmem:[%s170 + $0xd8] sm:$0xff] %vm1901, %v1899
      %vm1930 = vcmask 122880
      %1931 = vst.msk [vmem:[%s170 + $0xe0] sm:$0x1] %vm1930, %v1900
      %p1932 = scmp.lt.s32.totalorder %s14, 1
      %s1933 = scalar_select %p1932, %s14, 1
      %s1934 = smul.addr %s1933, 29
      %s1935 = smul.addr %s1934, 8
      %s1936 = scalar_lea.vmem %s3, %s1935
      // Predicated region
      $region33: #{pigaze_forward.3} parent=31 // pred_check
        %p1937 = pneg %p100
      $region34: #{pigaze_forward.3} parent=31 // pred_check_branch
        %1939 = sbr.rel (%p1937) target = $region36
      $region35: #{pigaze_forward.3} parent=31 // pred_region
        _
      $region36: #{pigaze_forward.3} parent=31 // pred_fallthru
        _
    $region32: #{pigaze_forward.3} parent=5 // pred_fallthru
      _
    %p1940 = scmp.le.s32.totalorder 2, %s9
    // Predicated region
    $region37: #{pigaze_forward.3} parent=5 // pred_check
      %p1941 = pneg %p1940
    $region38: #{pigaze_forward.3} parent=5 // pred_check_branch
      %1943 = sbr.rel (%p1941) target = $region40
    $region39: #{pigaze_forward.3} parent=5 // pred_region
      %s1944 = ssub.s32 %s9, 2
      // Predicated region
      $region41: #{pigaze_forward.3} parent=39 // pred_check
        %p1945 = pneg %p106
      $region42: #{pigaze_forward.3} parent=39 // pred_check_branch
        %1947 = sbr.rel (%p1945) target = $region44
      $region43: #{pigaze_forward.3} parent=39 // pred_region
        %p1948 = scmp.lt.s32.totalorder %s15, 1
        %s1949 = scalar_select %p1948, %s15, 1
        %s1950 = smul.addr %s1949, 29
        %s1951 = smul.addr %s1950, 8
        %s1952 = scalar_lea.vmem %s3, %s1951
      $region44: #{pigaze_forward.3} parent=39 // pred_fallthru
        _
    $region40: #{pigaze_forward.3} parent=5 // pred_fallthru
      _
  $region6: #{pigaze_forward.3} parent=0 // loop_footer
    %s13 = sadd.s32 1, %s9
  $region7: #{pigaze_forward.3} parent=0 // loop_footer_branch
    %8 = sbr.rel target = $region3
  $region8: #{pigaze_forward.3} parent=0 // loop_exit
    _

// kernel: pigaze_forward.4
$region0: #{pigaze_forward.4}
  #allocation0 [shape = 'u32[]', space=smem, size = 0x4, offset = 0x4, fixed_abs, tag = 'smem constant byte address 0x4 - core index']
  #allocation1 [shape = 'u32[144,128]{1,0:T(1,128)}', space=vmem, size = 0x12000, scoped, tag = 'internal scratch']
  %s0 = inlined_call_operand.vmem [shape: bf16[2,4,9,400], index: 0, kind: input, shape index: {}]
  %s1 = inlined_call_operand.vmem [shape: bf16[400,32], index: 1, kind: input, shape index: {}]
  %s2 = inlined_call_operand.vmem [shape: f32[1,32], index: 2, kind: input, shape index: {}]
  %s3 = inlined_call_operand.vmem [shape: f32[2,9,32], index: 3, kind: output, shape index: {}]
  %s4 = sld [smem:[#allocation0]]
  $region45: #{pigaze_forward.4} parent=0
    _
  %s6 = ssub.s32 1, %s4
  %s7 = scalar_select 0, %s6, %s4
  loop: start=0, step=1, limit=4
  $region2: #{pigaze_forward.4} parent=0 // loop_pre_header
    _
  $region3: #{pigaze_forward.4} parent=0 // loop_header
    %s9 = sphi 0, %s13
    %p10 = scmp.ge.s32.totalorder %s9, 4
    %s19 = sphi 0, %s21
    %s22 = sphi 0, %s19
    %s23 = sphi 0, %s22
    %s39 = sphi 0, %s23
    %s43 = sphi 0, %s43
    %s45 = sphi 0, %s43
    %s46 = sphi 0, %s45
    %s60 = sphi 0, %s46
    %s64 = sphi 0, %s64
    %s66 = sphi 0, %s64
    %s67 = sphi 0, %s66
    %s81 = sphi 0, %s67
    %s87 = sphi 0, %s89
    %s90 = sphi 0, %s87
    %s91 = sphi 0, %s90
    %s107 = sphi 0, %s91
  $region4: #{pigaze_forward.4} parent=0 // loop_header_branch
    %12 = sbr.rel (%p10) target = $region8
  $region5: #{pigaze_forward.4} parent=0 // loop_body
    %s14 = ssub.s32 %s9, 1
    %s15 = ssub.s32 %s9, 2
    %s16 = sadd.s32 %s9, 1
    %s17 = ssub.s32 %s9, %s16
    %p18 = scmp.eq.s32.totalorder %s17, 0
    %s20 = sadd.s32 %s19, 1
    %s21 = scalar_select %p18, %s19, %s20
    %p24 = pneg %p18
    %p25 = scmp.eq.s32.totalorder %s9, 1
    %p26 = por %p24, %p25
    %p27 = scmp.ne.s32.totalorder %s19, %s22
    %p28 = scmp.eq.s32.totalorder %s9, 0
    %p29 = por %p27, %p28
    %p30 = scmp.ne.s32.totalorder %s19, %s22
    %p31 = scmp.eq.s32.totalorder %s14, 1
    %p32 = por %p30, %p31
    %p33 = scmp.ne.s32.totalorder %s22, %s23
    %p34 = scmp.eq.s32.totalorder %s14, 0
    %p35 = por %p33, %p34
    %p36 = scmp.ne.s32.totalorder %s22, %s23
    %p37 = scmp.eq.s32.totalorder %s15, 1
    %p38 = por %p36, %p37
    %p40 = scmp.ne.s32.totalorder %s23, %s39
    %p41 = scmp.eq.s32.totalorder %s15, 0
    %p42 = por %p40, %p41
    %s44 = sadd.s32 %s43, 1
    %p47 = scmp.eq.s32.totalorder %s9, 1
    %p48 = scmp.ne.s32.totalorder %s43, %s45
    %p49 = scmp.eq.s32.totalorder %s9, 0
    %p50 = por %p48, %p49
    %p51 = scmp.ne.s32.totalorder %s43, %s45
    %p52 = scmp.eq.s32.totalorder %s14, 1
    %p53 = por %p51, %p52
    %p54 = scmp.ne.s32.totalorder %s45, %s46
    %p55 = scmp.eq.s32.totalorder %s14, 0
    %p56 = por %p54, %p55
    %p57 = scmp.ne.s32.totalorder %s45, %s46
    %p58 = scmp.eq.s32.totalorder %s15, 1
    %p59 = por %p57, %p58
    %p61 = scmp.ne.s32.totalorder %s46, %s60
    %p62 = scmp.eq.s32.totalorder %s15, 0
    %p63 = por %p61, %p62
    %s65 = sadd.s32 %s64, 1
    %p68 = scmp.eq.s32.totalorder %s9, 1
    %p69 = scmp.ne.s32.totalorder %s64, %s66
    %p70 = scmp.eq.s32.totalorder %s9, 0
    %p71 = por %p69, %p70
    %p72 = scmp.ne.s32.totalorder %s64, %s66
    %p73 = scmp.eq.s32.totalorder %s14, 1
    %p74 = por %p72, %p73
    %p75 = scmp.ne.s32.totalorder %s66, %s67
    %p76 = scmp.eq.s32.totalorder %s14, 0
    %p77 = por %p75, %p76
    %p78 = scmp.ne.s32.totalorder %s66, %s67
    %p79 = scmp.eq.s32.totalorder %s15, 1
    %p80 = por %p78, %p79
    %p82 = scmp.ne.s32.totalorder %s67, %s81
    %p83 = scmp.eq.s32.totalorder %s15, 0
    %p84 = por %p82, %p83
    %s85 = ssub.s32 %s9, %s16
    %p86 = scmp.eq.s32.totalorder %s85, 0
    %s88 = sadd.s32 %s87, 1
    %s89 = scalar_select %p86, %s87, %s88
    %p92 = pneg %p86
    %p93 = scmp.eq.s32.totalorder %s9, 1
    %p94 = por %p92, %p93
    %p95 = scmp.ne.s32.totalorder %s87, %s90
    %p96 = scmp.eq.s32.totalorder %s9, 0
    %p97 = por %p95, %p96
    %p98 = scmp.ne.s32.totalorder %s87, %s90
    %p99 = scmp.eq.s32.totalorder %s14, 1
    %p100 = por %p98, %p99
    %p101 = scmp.ne.s32.totalorder %s90, %s91
    %p102 = scmp.eq.s32.totalorder %s14, 0
    %p103 = por %p101, %p102
    %p104 = scmp.ne.s32.totalorder %s90, %s91
    %p105 = scmp.eq.s32.totalorder %s15, 1
    %p106 = por %p104, %p105
    %p108 = scmp.ne.s32.totalorder %s91, %s107
    %p109 = scmp.eq.s32.totalorder %s15, 0
    %p110 = por %p108, %p109
    %p111 = scmp.le.s32.totalorder 1, %s9
    %p112 = scmp.lt.s32.totalorder %s9, 3
    %p113 = pnand %p111, %p112
    %p114 = pneg %p113
    // Predicated region
    $region9: #{pigaze_forward.4} parent=5 // pred_check
      _
    $region10: #{pigaze_forward.4} parent=5 // pred_check_branch
      %116 = sbr.rel (%p113) target = $region12
    $region11: #{pigaze_forward.4} parent=5 // pred_region
      %s117 = ssub.s32 %s9, 1
      // Predicated region
      $region13: #{pigaze_forward.4} parent=11 // pred_check
        %p118 = pneg %p56
      $region14: #{pigaze_forward.4} parent=11 // pred_check_branch
        %120 = sbr.rel (%p118) target = $region16
      $region15: #{pigaze_forward.4} parent=11 // pred_region
        _
      $region16: #{pigaze_forward.4} parent=11 // pred_fallthru
        _
      // Predicated region
      $region17: #{pigaze_forward.4} parent=11 // pred_check
        %p121 = pneg %p77
      $region18: #{pigaze_forward.4} parent=11 // pred_check_branch
        %123 = sbr.rel (%p121) target = $region20
      $region19: #{pigaze_forward.4} parent=11 // pred_region
        _
      $region20: #{pigaze_forward.4} parent=11 // pred_fallthru
        _
    $region12: #{pigaze_forward.4} parent=5 // pred_fallthru
      _
    %p124 = scmp.lt.s32.totalorder %s9, 2
    // Predicated region
    $region21: #{pigaze_forward.4} parent=5 // pred_check
      %p125 = pneg %p124
    $region22: #{pigaze_forward.4} parent=5 // pred_check_branch
      %127 = sbr.rel (%p125) target = $region24
    $region23: #{pigaze_forward.4} parent=5 // pred_region
      // Predicated region
      $region25: #{pigaze_forward.4} parent=23 // pred_check
        %p128 = pneg %p29
      $region26: #{pigaze_forward.4} parent=23 // pred_check_branch
        %130 = sbr.rel (%p128) target = $region28
      $region27: #{pigaze_forward.4} parent=23 // pred_region
        %p131 = scmp.lt.s32.totalorder %s9, 1
        %s132 = scalar_select %p131, %s9, 1
        %s133 = smul.addr %s132, 32
        %s134 = smul.addr %s133, 4
        %s135 = scalar_lea.vmem %s0, %s134
      $region28: #{pigaze_forward.4} parent=23 // pred_fallthru
        _
    $region24: #{pigaze_forward.4} parent=5 // pred_fallthru
      _
    %p136 = scmp.le.s32.totalorder 1, %s9
    %p137 = scmp.lt.s32.totalorder %s9, 3
    %p138 = pnand %p136, %p137
    %p139 = pneg %p138
    // Predicated region
    $region29: #{pigaze_forward.4} parent=5 // pred_check
      _
    $region30: #{pigaze_forward.4} parent=5 // pred_check_branch
      %141 = sbr.rel (%p138) target = $region32
    $region31: #{pigaze_forward.4} parent=5 // pred_region
      %s142 = ssub.s32 %s9, 1
      %p143 = scmp.lt.s32.totalorder %s14, 1
      %s144 = scalar_select %p143, %s14, 1
      %s145 = smul.addr %s144, 32
      %s146 = smul.addr %s145, 4
      %s147 = scalar_lea.vmem %s0, %s146
      %p148 = pneg %p35
      %p149 = pneg %p32
      %p150 = pneg %p56
      %p151 = pneg %p53
      %p152 = pneg %p77
      %p153 = pneg %p74
      %p154 = pneg %p103
      %p155 = pneg %p100
      %p156 = scmp.lt.s32.totalorder %s14, 1
      %s157 = scalar_select %p156, %s14, 1
      %s158 = smul.addr %s157, 2
      %s159 = smul.addr %s158, 8
      %s160 = scalar_lea.vmem %s3, %s159
      %p161 = scmp.lt.s32.totalorder %s14, 1
      %s162 = scalar_select %p161, %s14, 1
      %s163 = smul.addr %s162, 32
      %s164 = smul.addr %s163, 4
      %s165 = scalar_lea.vmem %s0, %s164
      %p166 = scmp.lt.s32.totalorder %s14, 1
      %s167 = scalar_select %p166, %s14, 1
      %s168 = smul.addr %s167, 2
      %s169 = smul.addr %s168, 8
      %s170 = scalar_lea.vmem %s3, %s169
      %v172 = vld [vmem:[%s1] sm:$0xf]
      %v173 = vld [vmem:[%s1 + $0x4] sm:$0xf]
      %v174 = vld [vmem:[%s1 + $0x8] sm:$0xf]
      %v175 = vld [vmem:[%s1 + $0xc] sm:$0xf]
      %v176 = vld [vmem:[%s1 + $0x10] sm:$0xf]
      %v177 = vld [vmem:[%s1 + $0x14] sm:$0xf]
      %v178 = vld [vmem:[%s1 + $0x18] sm:$0xf]
      %v179 = vld [vmem:[%s1 + $0x1c] sm:$0xf]
      %v180 = vld [vmem:[%s1 + $0x20] sm:$0xf]
      %v181 = vld [vmem:[%s1 + $0x24] sm:$0xf]
      %v182 = vld [vmem:[%s1 + $0x28] sm:$0xf]
      %v183 = vld [vmem:[%s1 + $0x2c] sm:$0xf]
      %v184 = vld [vmem:[%s1 + $0x30] sm:$0xf]
      %v185 = vld [vmem:[%s1 + $0x34] sm:$0xf]
      %v186 = vld [vmem:[%s1 + $0x38] sm:$0xf]
      %v187 = vld [vmem:[%s1 + $0x3c] sm:$0xf]
      %v188 = vld [vmem:[%s1 + $0x40] sm:$0xf]
      %v189 = vld [vmem:[%s1 + $0x44] sm:$0xf]
      %v190 = vld [vmem:[%s1 + $0x48] sm:$0xf]
      %v191 = vld [vmem:[%s1 + $0x4c] sm:$0xf]
      %v192 = vld [vmem:[%s1 + $0x50] sm:$0xf]
      %v193 = vld [vmem:[%s1 + $0x54] sm:$0xf]
      %v194 = vld [vmem:[%s1 + $0x58] sm:$0xf]
      %v195 = vld [vmem:[%s1 + $0x5c] sm:$0xf]
      %v196 = vld [vmem:[%s1 + $0x60] sm:$0xf]
      %v197 = vld [vmem:[%s1 + $0x64] sm:$0xf]
      %v198 = vld [vmem:[%s1 + $0x68] sm:$0xf]
      %v199 = vld [vmem:[%s1 + $0x6c] sm:$0xf]
      %v200 = vld [vmem:[%s1 + $0x70] sm:$0xf]
      %v201 = vld [vmem:[%s1 + $0x74] sm:$0xf]
      %v202 = vld [vmem:[%s1 + $0x78] sm:$0xf]
      %v203 = vld [vmem:[%s1 + $0x7c] sm:$0xf]
      %v204 = vld [vmem:[%s1 + $0x80] sm:$0xf]
      %v205 = vld [vmem:[%s1 + $0x84] sm:$0xf]
      %v206 = vld [vmem:[%s1 + $0x88] sm:$0xf]
      %v207 = vld [vmem:[%s1 + $0x8c] sm:$0xf]
      %v208 = vld [vmem:[%s1 + $0x90] sm:$0xf]
      %v209 = vld [vmem:[%s1 + $0x94] sm:$0xf]
      %v210 = vld [vmem:[%s1 + $0x98] sm:$0xf]
      %v211 = vld [vmem:[%s1 + $0x9c] sm:$0xf]
      %v212 = vld [vmem:[%s1 + $0xa0] sm:$0xf]
      %v213 = vld [vmem:[%s1 + $0xa4] sm:$0xf]
      %v214 = vld [vmem:[%s1 + $0xa8] sm:$0xf]
      %v215 = vld [vmem:[%s1 + $0xac] sm:$0xf]
      %v216 = vld [vmem:[%s1 + $0xb0] sm:$0xf]
      %v217 = vld [vmem:[%s1 + $0xb4] sm:$0xf]
      %v218 = vld [vmem:[%s1 + $0xb8] sm:$0xf]
      %v219 = vld [vmem:[%s1 + $0xbc] sm:$0xf]
      %v220 = vld [vmem:[%s1 + $0xc0] sm:$0xf]
      %v221 = vld [vmem:[%s1 + $0xc4] sm:$0xf]
      %v222 = vld [vmem:[%s2] sm:$0x1]
      %v223 = vld [vmem:[%s165] sm:$0xff]
      %v224 = vld [vmem:[%s165 + $0x8] sm:$0xff]
      %v225 = vld [vmem:[%s165 + $0x10] sm:$0x11]
      %v226 = vld [vmem:[%s165 + $0x18] sm:$0x11]
      %v228 = vlaneseq
      %v229 = vshrl.u32 %v228, 7
      %v230 = vsub.s32 0, %v229
      %v231 = vrot.slane %v222, %v230
      %v237 = vunpack.c.l.b16 %v223
      %v238 = vunpack.c.h.b16 %v223
      %v239 = vunpack.c.l.b16 %v224
      %v240 = vunpack.c.h.b16 %v224
      %v241 = vunpack.c.l.b16 %v225
      %v242 = vunpack.c.h.b16 %v225
      %v243 = vunpack.c.l.b16 %v226
      %v244 = vunpack.c.h.b16 %v226
      %v245 = vpack.c.b16 %v241, %v237
      %v246 = vpack.c.b16 %v242, %v238
      %v247 = vpack.c.b16 %v243, %v239
      %v248 = vpack.c.b16 %v244, %v240
      %v302 = vunpack.c.l.b16 %v172
      %v303 = vunpack.c.l.b16 %v173
      %v304 = vunpack.c.l.b16 %v174
      %v305 = vunpack.c.l.b16 %v175
      %v306 = vunpack.c.l.b16 %v176
      %v307 = vunpack.c.l.b16 %v177
      %v308 = vunpack.c.l.b16 %v178
      %v309 = vunpack.c.l.b16 %v179
      %v310 = vunpack.c.l.b16 %v180
      %v311 = vunpack.c.l.b16 %v181
      %v312 = vunpack.c.l.b16 %v182
      %v313 = vunpack.c.l.b16 %v183
      %v314 = vunpack.c.l.b16 %v184
      %v315 = vunpack.c.l.b16 %v185
      %v316 = vunpack.c.l.b16 %v186
      %v317 = vunpack.c.l.b16 %v187
      %v318 = vunpack.c.l.b16 %v188
      %v319 = vunpack.c.l.b16 %v189
      %v320 = vunpack.c.l.b16 %v190
      %v321 = vunpack.c.l.b16 %v191
      %v322 = vunpack.c.l.b16 %v192
      %v323 = vunpack.c.l.b16 %v193
      %v324 = vunpack.c.l.b16 %v194
      %v325 = vunpack.c.l.b16 %v195
      %v326 = vunpack.c.l.b16 %v196
      %v327 = vunpack.c.l.b16 %v197
      %v328 = vunpack.c.l.b16 %v198
      %v329 = vunpack.c.l.b16 %v199
      %v330 = vunpack.c.l.b16 %v200
      %v331 = vunpack.c.l.b16 %v201
      %v332 = vunpack.c.l.b16 %v202
      %v333 = vunpack.c.l.b16 %v203
      %v334 = vunpack.c.l.b16 %v204
      %v335 = vunpack.c.l.b16 %v205
      %v336 = vunpack.c.l.b16 %v206
      %v337 = vunpack.c.l.b16 %v207
      %v338 = vunpack.c.l.b16 %v208
      %v339 = vunpack.c.l.b16 %v209
      %v340 = vunpack.c.l.b16 %v210
      %v341 = vunpack.c.l.b16 %v211
      %v342 = vunpack.c.l.b16 %v212
      %v343 = vunpack.c.l.b16 %v213
      %v344 = vunpack.c.l.b16 %v214
      %v345 = vunpack.c.l.b16 %v215
      %v346 = vunpack.c.l.b16 %v216
      %v347 = vunpack.c.l.b16 %v217
      %v348 = vunpack.c.l.b16 %v218
      %v349 = vunpack.c.l.b16 %v219
      %v350 = vunpack.c.l.b16 %v220
      %v351 = vunpack.c.l.b16 %v221
      %v352 = vpack.c.b16 %v303, %v302
      %v353 = vpack.c.b16 %v305, %v304
      %v354 = vpack.c.b16 %v307, %v306
      %v355 = vpack.c.b16 %v309, %v308
      %v356 = vpack.c.b16 %v311, %v310
      %v357 = vpack.c.b16 %v313, %v312
      %v358 = vpack.c.b16 %v315, %v314
      %v359 = vpack.c.b16 %v317, %v316
      %v360 = vpack.c.b16 %v319, %v318
      %v361 = vpack.c.b16 %v321, %v320
      %v362 = vpack.c.b16 %v323, %v322
      %v363 = vpack.c.b16 %v325, %v324
      %v364 = vpack.c.b16 %v327, %v326
      %v365 = vpack.c.b16 %v329, %v328
      %v366 = vpack.c.b16 %v331, %v330
      %v367 = vpack.c.b16 %v333, %v332
      %v368 = vpack.c.b16 %v335, %v334
      %v369 = vpack.c.b16 %v337, %v336
      %v370 = vpack.c.b16 %v339, %v338
      %v371 = vpack.c.b16 %v341, %v340
      %v372 = vpack.c.b16 %v343, %v342
      %v373 = vpack.c.b16 %v345, %v344
      %v374 = vpack.c.b16 %v347, %v346
      %v375 = vpack.c.b16 %v349, %v348
      %v376 = vpack.c.b16 %v351, %v350
      %vm402 = vcmask 130048
      %v404 = vsel %vm402, %v248, 0
      %406 = vmatprep.subr.bf16.mxu0 0
      %407 = vmatpush1.bf16.msra.mxu0 %v359
      %408 = vmatprep.subr.bf16.mxu0 0
      %409 = vmatpush1.bf16.msra.mxu0 %v358
      %410 = vmatprep.subr.bf16.mxu0 0
      %411 = vmatpush1.bf16.msra.mxu0 %v357
      %412 = vmatprep.subr.bf16.mxu0 0
      %413 = vmatpush1.bf16.msra.mxu0 %v356
      %414 = vmatprep.subr.bf16.mxu0 0
      %415 = vmatpush1.bf16.msra.mxu0 %v355
      %416 = vmatprep.subr.bf16.mxu0 0
      %417 = vmatpush1.bf16.msra.mxu0 %v354
      %418 = vmatprep.subr.bf16.mxu0 0
      %419 = vmatpush1.bf16.msra.mxu0 %v353
      %420 = vmatprep.subr.bf16.mxu0 0
      %421 = vmatpush1.bf16.msra.mxu0 %v352
      %422 = vmatprep.subr.bf16.mxu0 0
      %423 = vmatpush2.bf16.msra.mxu0 %v367
      %424 = vmatprep.subr.bf16.mxu0 0
      %425 = vmatpush2.bf16.msra.mxu0 %v366
      %426 = vmatprep.subr.bf16.mxu0 0
      %427 = vmatpush2.bf16.msra.mxu0 %v365
      %428 = vmatprep.subr.bf16.mxu0 0
      %429 = vmatpush2.bf16.msra.mxu0 %v364
      %430 = vmatprep.subr.bf16.mxu0 0
      %431 = vmatpush2.bf16.msra.mxu0 %v363
      %432 = vmatprep.subr.bf16.mxu0 0
      %433 = vmatpush2.bf16.msra.mxu0 %v362
      %434 = vmatprep.subr.bf16.mxu0 0
      %435 = vmatpush2.bf16.msra.mxu0 %v361
      %436 = vmatprep.subr.bf16.mxu0 0
      %437 = vmatpush2.bf16.msra.mxu0 %v360
      %438 = vmatprep.mubr.bf16.mxu0 %v246
      %439 = vmatmul.mubr.bf16.gmra.mxu0 %v245
      %v440 = vpop.f32.mrf.mxu0
      %v441 = vadd.f32 %v231, %v440
      %v442 = vpop.f32.mrf.mxu0
      %v443 = vpop.f32.mrf.mxu0
      %v444 = vadd.f32 %v231, %v443
      %v445 = vpop.f32.mrf.mxu0
      %446 = vdwg.mxu0
      %447 = vmatprep.subr.bf16.mxu0 0
      %448 = vmatpush1.bf16.msra.mxu0 %v375
      %449 = vmatprep.subr.bf16.mxu0 0
      %450 = vmatpush1.bf16.msra.mxu0 %v374
      %451 = vmatprep.subr.bf16.mxu0 0
      %452 = vmatpush1.bf16.msra.mxu0 %v373
      %453 = vmatprep.subr.bf16.mxu0 0
      %454 = vmatpush1.bf16.msra.mxu0 %v372
      %455 = vmatprep.subr.bf16.mxu0 0
      %456 = vmatpush1.bf16.msra.mxu0 %v371
      %457 = vmatprep.subr.bf16.mxu0 0
      %458 = vmatpush1.bf16.msra.mxu0 %v370
      %459 = vmatprep.subr.bf16.mxu0 0
      %460 = vmatpush1.bf16.msra.mxu0 %v369
      %461 = vmatprep.subr.bf16.mxu0 0
      %462 = vmatpush1.bf16.msra.mxu0 %v368
      %463 = vmatprep.subr.bf16.mxu0 0
      %464 = vmatpush2.bf16.msra.mxu0 0
      %465 = vmatprep.subr.bf16.mxu0 0
      %466 = vmatpush2.bf16.msra.mxu0 0
      %467 = vmatprep.subr.bf16.mxu0 0
      %468 = vmatpush2.bf16.msra.mxu0 0
      %469 = vmatprep.subr.bf16.mxu0 0
      %470 = vmatpush2.bf16.msra.mxu0 0
      %471 = vmatprep.subr.bf16.mxu0 0
      %472 = vmatpush2.bf16.msra.mxu0 0
      %473 = vmatprep.subr.bf16.mxu0 0
      %474 = vmatpush2.bf16.msra.mxu0 0
      %475 = vmatprep.subr.bf16.mxu0 0
      %476 = vmatpush2.bf16.msra.mxu0 0
      %477 = vmatprep.subr.bf16.mxu0 0
      %478 = vmatpush2.bf16.msra.mxu0 %v376
      %479 = vmatprep.mubr.bf16.mxu0 %v404
      %480 = vmatmul.mubr.bf16.gmra.mxu0 %v247
      %v481 = vpop.f32.mrf.mxu0
      %v482 = vadd.f32 %v441, %v481
      %v483 = vpop.f32.mrf.mxu0
      %v484 = vpop.f32.mrf.mxu0
      %v485 = vadd.f32 %v444, %v484
      %v486 = vpop.f32.mrf.mxu0
      %487 = vdwg.mxu0
      %v488 = vmax.f32 %v482, 0.0
      %v489 = vmax.f32 %v485, 0.0
      %s490 = scalar_lea.vmem %s165, 32
      %v491 = vld [vmem:[%s490] sm:$0xff]
      %v492 = vld [vmem:[%s490 + $0x8] sm:$0xff]
      %v493 = vld [vmem:[%s490 + $0x10] sm:$0x11]
      %v494 = vld [vmem:[%s490 + $0x18] sm:$0x11]
      %v499 = vunpack.c.l.b16 %v491
      %v500 = vunpack.c.h.b16 %v491
      %v501 = vunpack.c.l.b16 %v492
      %v502 = vunpack.c.h.b16 %v492
      %v503 = vunpack.c.l.b16 %v493
      %v504 = vunpack.c.h.b16 %v493
      %v505 = vunpack.c.l.b16 %v494
      %v506 = vunpack.c.h.b16 %v494
      %v507 = vpack.c.b16 %v503, %v499
      %v508 = vpack.c.b16 %v504, %v500
      %v509 = vpack.c.b16 %v505, %v501
      %v510 = vpack.c.b16 %v506, %v502
      %v515 = vsel %vm402, %v510, 0
      %517 = vmatprep.subr.bf16.mxu0 0
      %518 = vmatpush1.bf16.msra.mxu0 %v359
      %519 = vmatprep.subr.bf16.mxu0 0
      %520 = vmatpush1.bf16.msra.mxu0 %v358
      %521 = vmatprep.subr.bf16.mxu0 0
      %522 = vmatpush1.bf16.msra.mxu0 %v357
      %523 = vmatprep.subr.bf16.mxu0 0
      %524 = vmatpush1.bf16.msra.mxu0 %v356
      %525 = vmatprep.subr.bf16.mxu0 0
      %526 = vmatpush1.bf16.msra.mxu0 %v355
      %527 = vmatprep.subr.bf16.mxu0 0
      %528 = vmatpush1.bf16.msra.mxu0 %v354
      %529 = vmatprep.subr.bf16.mxu0 0
      %530 = vmatpush1.bf16.msra.mxu0 %v353
      %531 = vmatprep.subr.bf16.mxu0 0
      %532 = vmatpush1.bf16.msra.mxu0 %v352
      %533 = vmatprep.subr.bf16.mxu0 0
      %534 = vmatpush2.bf16.msra.mxu0 %v367
      %535 = vmatprep.subr.bf16.mxu0 0
      %536 = vmatpush2.bf16.msra.mxu0 %v366
      %537 = vmatprep.subr.bf16.mxu0 0
      %538 = vmatpush2.bf16.msra.mxu0 %v365
      %539 = vmatprep.subr.bf16.mxu0 0
      %540 = vmatpush2.bf16.msra.mxu0 %v364
      %541 = vmatprep.subr.bf16.mxu0 0
      %542 = vmatpush2.bf16.msra.mxu0 %v363
      %543 = vmatprep.subr.bf16.mxu0 0
      %544 = vmatpush2.bf16.msra.mxu0 %v362
      %545 = vmatprep.subr.bf16.mxu0 0
      %546 = vmatpush2.bf16.msra.mxu0 %v361
      %547 = vmatprep.subr.bf16.mxu0 0
      %548 = vmatpush2.bf16.msra.mxu0 %v360
      %549 = vmatprep.mubr.bf16.mxu0 %v508
      %550 = vmatmul.mubr.bf16.gmra.mxu0 %v507
      %v551 = vpop.f32.mrf.mxu0
      %v552 = vadd.f32 %v231, %v551
      %v553 = vpop.f32.mrf.mxu0
      %v554 = vpop.f32.mrf.mxu0
      %v555 = vadd.f32 %v231, %v554
      %v556 = vpop.f32.mrf.mxu0
      %557 = vdwg.mxu0
      %558 = vmatprep.subr.bf16.mxu0 0
      %559 = vmatpush1.bf16.msra.mxu0 %v375
      %560 = vmatprep.subr.bf16.mxu0 0
      %561 = vmatpush1.bf16.msra.mxu0 %v374
      %562 = vmatprep.subr.bf16.mxu0 0
      %563 = vmatpush1.bf16.msra.mxu0 %v373
      %564 = vmatprep.subr.bf16.mxu0 0
      %565 = vmatpush1.bf16.msra.mxu0 %v372
      %566 = vmatprep.subr.bf16.mxu0 0
      %567 = vmatpush1.bf16.msra.mxu0 %v371
      %568 = vmatprep.subr.bf16.mxu0 0
      %569 = vmatpush1.bf16.msra.mxu0 %v370
      %570 = vmatprep.subr.bf16.mxu0 0
      %571 = vmatpush1.bf16.msra.mxu0 %v369
      %572 = vmatprep.subr.bf16.mxu0 0
      %573 = vmatpush1.bf16.msra.mxu0 %v368
      %574 = vmatprep.subr.bf16.mxu0 0
      %575 = vmatpush2.bf16.msra.mxu0 0
      %576 = vmatprep.subr.bf16.mxu0 0
      %577 = vmatpush2.bf16.msra.mxu0 0
      %578 = vmatprep.subr.bf16.mxu0 0
      %579 = vmatpush2.bf16.msra.mxu0 0
      %580 = vmatprep.subr.bf16.mxu0 0
      %581 = vmatpush2.bf16.msra.mxu0 0
      %582 = vmatprep.subr.bf16.mxu0 0
      %583 = vmatpush2.bf16.msra.mxu0 0
      %584 = vmatprep.subr.bf16.mxu0 0
      %585 = vmatpush2.bf16.msra.mxu0 0
      %586 = vmatprep.subr.bf16.mxu0 0
      %587 = vmatpush2.bf16.msra.mxu0 0
      %588 = vmatprep.subr.bf16.mxu0 0
      %589 = vmatpush2.bf16.msra.mxu0 %v376
      %590 = vmatprep.mubr.bf16.mxu0 %v515
      %591 = vmatmul.mubr.bf16.gmra.mxu0 %v509
      %v592 = vpop.f32.mrf.mxu0
      %v593 = vadd.f32 %v552, %v592
      %v594 = vpop.f32.mrf.mxu0
      %v595 = vpop.f32.mrf.mxu0
      %v596 = vadd.f32 %v555, %v595
      %v597 = vpop.f32.mrf.mxu0
      %598 = vdwg.mxu0
      %v599 = vmax.f32 %v593, 0.0
      %v600 = vmax.f32 %v596, 0.0
      %v601 = vmax.f32 %v488, %v599
      %v602 = vmax.f32 %v489, %v600
      %s603 = scalar_lea.vmem %s165, 64
      %v604 = vld [vmem:[%s603] sm:$0xff]
      %v605 = vld [vmem:[%s603 + $0x8] sm:$0xff]
      %v606 = vld [vmem:[%s603 + $0x10] sm:$0x11]
      %v607 = vld [vmem:[%s603 + $0x18] sm:$0x11]
      %v612 = vunpack.c.l.b16 %v604
      %v613 = vunpack.c.h.b16 %v604
      %v614 = vunpack.c.l.b16 %v605
      %v615 = vunpack.c.h.b16 %v605
      %v616 = vunpack.c.l.b16 %v606
      %v617 = vunpack.c.h.b16 %v606
      %v618 = vunpack.c.l.b16 %v607
      %v619 = vunpack.c.h.b16 %v607
      %v620 = vpack.c.b16 %v616, %v612
      %v621 = vpack.c.b16 %v617, %v613
      %v622 = vpack.c.b16 %v618, %v614
      %v623 = vpack.c.b16 %v619, %v615
      %v628 = vsel %vm402, %v623, 0
      %630 = vmatprep.subr.bf16.mxu0 0
      %631 = vmatpush1.bf16.msra.mxu0 %v359
      %632 = vmatprep.subr.bf16.mxu0 0
      %633 = vmatpush1.bf16.msra.mxu0 %v358
      %634 = vmatprep.subr.bf16.mxu0 0
      %635 = vmatpush1.bf16.msra.mxu0 %v357
      %636 = vmatprep.subr.bf16.mxu0 0
      %637 = vmatpush1.bf16.msra.mxu0 %v356
      %638 = vmatprep.subr.bf16.mxu0 0
      %639 = vmatpush1.bf16.msra.mxu0 %v355
      %640 = vmatprep.subr.bf16.mxu0 0
      %641 = vmatpush1.bf16.msra.mxu0 %v354
      %642 = vmatprep.subr.bf16.mxu0 0
      %643 = vmatpush1.bf16.msra.mxu0 %v353
      %644 = vmatprep.subr.bf16.mxu0 0
      %645 = vmatpush1.bf16.msra.mxu0 %v352
      %646 = vmatprep.subr.bf16.mxu0 0
      %647 = vmatpush2.bf16.msra.mxu0 %v367
      %648 = vmatprep.subr.bf16.mxu0 0
      %649 = vmatpush2.bf16.msra.mxu0 %v366
      %650 = vmatprep.subr.bf16.mxu0 0
      %651 = vmatpush2.bf16.msra.mxu0 %v365
      %652 = vmatprep.subr.bf16.mxu0 0
      %653 = vmatpush2.bf16.msra.mxu0 %v364
      %654 = vmatprep.subr.bf16.mxu0 0
      %655 = vmatpush2.bf16.msra.mxu0 %v363
      %656 = vmatprep.subr.bf16.mxu0 0
      %657 = vmatpush2.bf16.msra.mxu0 %v362
      %658 = vmatprep.subr.bf16.mxu0 0
      %659 = vmatpush2.bf16.msra.mxu0 %v361
      %660 = vmatprep.subr.bf16.mxu0 0
      %661 = vmatpush2.bf16.msra.mxu0 %v360
      %662 = vmatprep.mubr.bf16.mxu0 %v621
      %663 = vmatmul.mubr.bf16.gmra.mxu0 %v620
      %v664 = vpop.f32.mrf.mxu0
      %v665 = vadd.f32 %v231, %v664
      %v666 = vpop.f32.mrf.mxu0
      %v667 = vpop.f32.mrf.mxu0
      %v668 = vadd.f32 %v231, %v667
      %v669 = vpop.f32.mrf.mxu0
      %670 = vdwg.mxu0
      %671 = vmatprep.subr.bf16.mxu0 0
      %672 = vmatpush1.bf16.msra.mxu0 %v375
      %673 = vmatprep.subr.bf16.mxu0 0
      %674 = vmatpush1.bf16.msra.mxu0 %v374
      %675 = vmatprep.subr.bf16.mxu0 0
      %676 = vmatpush1.bf16.msra.mxu0 %v373
      %677 = vmatprep.subr.bf16.mxu0 0
      %678 = vmatpush1.bf16.msra.mxu0 %v372
      %679 = vmatprep.subr.bf16.mxu0 0
      %680 = vmatpush1.bf16.msra.mxu0 %v371
      %681 = vmatprep.subr.bf16.mxu0 0
      %682 = vmatpush1.bf16.msra.mxu0 %v370
      %683 = vmatprep.subr.bf16.mxu0 0
      %684 = vmatpush1.bf16.msra.mxu0 %v369
      %685 = vmatprep.subr.bf16.mxu0 0
      %686 = vmatpush1.bf16.msra.mxu0 %v368
      %687 = vmatprep.subr.bf16.mxu0 0
      %688 = vmatpush2.bf16.msra.mxu0 0
      %689 = vmatprep.subr.bf16.mxu0 0
      %690 = vmatpush2.bf16.msra.mxu0 0
      %691 = vmatprep.subr.bf16.mxu0 0
      %692 = vmatpush2.bf16.msra.mxu0 0
      %693 = vmatprep.subr.bf16.mxu0 0
      %694 = vmatpush2.bf16.msra.mxu0 0
      %695 = vmatprep.subr.bf16.mxu0 0
      %696 = vmatpush2.bf16.msra.mxu0 0
      %697 = vmatprep.subr.bf16.mxu0 0
      %698 = vmatpush2.bf16.msra.mxu0 0
      %699 = vmatprep.subr.bf16.mxu0 0
      %700 = vmatpush2.bf16.msra.mxu0 0
      %701 = vmatprep.subr.bf16.mxu0 0
      %702 = vmatpush2.bf16.msra.mxu0 %v376
      %703 = vmatprep.mubr.bf16.mxu0 %v628
      %704 = vmatmul.mubr.bf16.gmra.mxu0 %v622
      %v705 = vpop.f32.mrf.mxu0
      %v706 = vadd.f32 %v665, %v705
      %v707 = vpop.f32.mrf.mxu0
      %v708 = vpop.f32.mrf.mxu0
      %v709 = vadd.f32 %v668, %v708
      %v710 = vpop.f32.mrf.mxu0
      %711 = vdwg.mxu0
      %v712 = vmax.f32 %v706, 0.0
      %v713 = vmax.f32 %v709, 0.0
      %s714 = scalar_lea.vmem %s165, 96
      %v715 = vld [vmem:[%s714] sm:$0xff]
      %v716 = vld [vmem:[%s714 + $0x8] sm:$0xff]
      %v717 = vld [vmem:[%s714 + $0x10] sm:$0x11]
      %v718 = vld [vmem:[%s714 + $0x18] sm:$0x11]
      %v723 = vunpack.c.l.b16 %v715
      %v724 = vunpack.c.h.b16 %v715
      %v725 = vunpack.c.l.b16 %v716
      %v726 = vunpack.c.h.b16 %v716
      %v727 = vunpack.c.l.b16 %v717
      %v728 = vunpack.c.h.b16 %v717
      %v729 = vunpack.c.l.b16 %v718
      %v730 = vunpack.c.h.b16 %v718
      %v731 = vpack.c.b16 %v727, %v723
      %v732 = vpack.c.b16 %v728, %v724
      %v733 = vpack.c.b16 %v729, %v725
      %v734 = vpack.c.b16 %v730, %v726
      %v739 = vsel %vm402, %v734, 0
      %741 = vmatprep.subr.bf16.mxu0 0
      %742 = vmatpush1.bf16.msra.mxu0 %v359
      %743 = vmatprep.subr.bf16.mxu0 0
      %744 = vmatpush1.bf16.msra.mxu0 %v358
      %745 = vmatprep.subr.bf16.mxu0 0
      %746 = vmatpush1.bf16.msra.mxu0 %v357
      %747 = vmatprep.subr.bf16.mxu0 0
      %748 = vmatpush1.bf16.msra.mxu0 %v356
      %749 = vmatprep.subr.bf16.mxu0 0
      %750 = vmatpush1.bf16.msra.mxu0 %v355
      %751 = vmatprep.subr.bf16.mxu0 0
      %752 = vmatpush1.bf16.msra.mxu0 %v354
      %753 = vmatprep.subr.bf16.mxu0 0
      %754 = vmatpush1.bf16.msra.mxu0 %v353
      %755 = vmatprep.subr.bf16.mxu0 0
      %756 = vmatpush1.bf16.msra.mxu0 %v352
      %757 = vmatprep.subr.bf16.mxu0 0
      %758 = vmatpush2.bf16.msra.mxu0 %v367
      %759 = vmatprep.subr.bf16.mxu0 0
      %760 = vmatpush2.bf16.msra.mxu0 %v366
      %761 = vmatprep.subr.bf16.mxu0 0
      %762 = vmatpush2.bf16.msra.mxu0 %v365
      %763 = vmatprep.subr.bf16.mxu0 0
      %764 = vmatpush2.bf16.msra.mxu0 %v364
      %765 = vmatprep.subr.bf16.mxu0 0
      %766 = vmatpush2.bf16.msra.mxu0 %v363
      %767 = vmatprep.subr.bf16.mxu0 0
      %768 = vmatpush2.bf16.msra.mxu0 %v362
      %769 = vmatprep.subr.bf16.mxu0 0
      %770 = vmatpush2.bf16.msra.mxu0 %v361
      %771 = vmatprep.subr.bf16.mxu0 0
      %772 = vmatpush2.bf16.msra.mxu0 %v360
      %773 = vmatprep.mubr.bf16.mxu0 %v732
      %774 = vmatmul.mubr.bf16.gmra.mxu0 %v731
      %v775 = vpop.f32.mrf.mxu0
      %v776 = vadd.f32 %v231, %v775
      %v777 = vpop.f32.mrf.mxu0
      %v778 = vpop.f32.mrf.mxu0
      %v779 = vadd.f32 %v231, %v778
      %v780 = vpop.f32.mrf.mxu0
      %781 = vdwg.mxu0
      %782 = vmatprep.subr.bf16.mxu0 0
      %783 = vmatpush1.bf16.msra.mxu0 %v375
      %784 = vmatprep.subr.bf16.mxu0 0
      %785 = vmatpush1.bf16.msra.mxu0 %v374
      %786 = vmatprep.subr.bf16.mxu0 0
      %787 = vmatpush1.bf16.msra.mxu0 %v373
      %788 = vmatprep.subr.bf16.mxu0 0
      %789 = vmatpush1.bf16.msra.mxu0 %v372
      %790 = vmatprep.subr.bf16.mxu0 0
      %791 = vmatpush1.bf16.msra.mxu0 %v371
      %792 = vmatprep.subr.bf16.mxu0 0
      %793 = vmatpush1.bf16.msra.mxu0 %v370
      %794 = vmatprep.subr.bf16.mxu0 0
      %795 = vmatpush1.bf16.msra.mxu0 %v369
      %796 = vmatprep.subr.bf16.mxu0 0
      %797 = vmatpush1.bf16.msra.mxu0 %v368
      %798 = vmatprep.subr.bf16.mxu0 0
      %799 = vmatpush2.bf16.msra.mxu0 0
      %800 = vmatprep.subr.bf16.mxu0 0
      %801 = vmatpush2.bf16.msra.mxu0 0
      %802 = vmatprep.subr.bf16.mxu0 0
      %803 = vmatpush2.bf16.msra.mxu0 0
      %804 = vmatprep.subr.bf16.mxu0 0
      %805 = vmatpush2.bf16.msra.mxu0 0
      %806 = vmatprep.subr.bf16.mxu0 0
      %807 = vmatpush2.bf16.msra.mxu0 0
      %808 = vmatprep.subr.bf16.mxu0 0
      %809 = vmatpush2.bf16.msra.mxu0 0
      %810 = vmatprep.subr.bf16.mxu0 0
      %811 = vmatpush2.bf16.msra.mxu0 0
      %812 = vmatprep.subr.bf16.mxu0 0
      %813 = vmatpush2.bf16.msra.mxu0 %v376
      %814 = vmatprep.mubr.bf16.mxu0 %v739
      %815 = vmatmul.mubr.bf16.gmra.mxu0 %v733
      %v816 = vpop.f32.mrf.mxu0
      %v817 = vadd.f32 %v776, %v816
      %v818 = vpop.f32.mrf.mxu0
      %v819 = vpop.f32.mrf.mxu0
      %v820 = vadd.f32 %v779, %v819
      %v821 = vpop.f32.mrf.mxu0
      %822 = vdwg.mxu0
      %v823 = vmax.f32 %v817, 0.0
      %v824 = vmax.f32 %v820, 0.0
      %v825 = vmax.f32 %v712, %v823
      %v826 = vmax.f32 %v713, %v824
      %v827 = vmax.f32 %v601, %v825
      %v828 = vmax.f32 %v602, %v826
      %vm829 = vcmask 261120
      %830 = vst.msk [vmem:[%s170] sm:$0xff] %vm829, %v827
      %vm831 = vcmask 253952
      %832 = vst.msk [vmem:[%s170 + $0x8] sm:$0x1] %vm831, %v828
      %p833 = scmp.lt.s32.totalorder %s14, 1
      %s834 = scalar_select %p833, %s14, 1
      %s835 = smul.addr %s834, 2
      %s836 = smul.addr %s835, 8
      %s837 = scalar_lea.vmem %s3, %s836
      // Predicated region
      $region33: #{pigaze_forward.4} parent=31 // pred_check
        %p838 = pneg %p100
      $region34: #{pigaze_forward.4} parent=31 // pred_check_branch
        %840 = sbr.rel (%p838) target = $region36
      $region35: #{pigaze_forward.4} parent=31 // pred_region
        _
      $region36: #{pigaze_forward.4} parent=31 // pred_fallthru
        _
    $region32: #{pigaze_forward.4} parent=5 // pred_fallthru
      _
    %p841 = scmp.le.s32.totalorder 2, %s9
    // Predicated region
    $region37: #{pigaze_forward.4} parent=5 // pred_check
      %p842 = pneg %p841
    $region38: #{pigaze_forward.4} parent=5 // pred_check_branch
      %844 = sbr.rel (%p842) target = $region40
    $region39: #{pigaze_forward.4} parent=5 // pred_region
      %s845 = ssub.s32 %s9, 2
      // Predicated region
      $region41: #{pigaze_forward.4} parent=39 // pred_check
        %p846 = pneg %p106
      $region42: #{pigaze_forward.4} parent=39 // pred_check_branch
        %848 = sbr.rel (%p846) target = $region44
      $region43: #{pigaze_forward.4} parent=39 // pred_region
        %p849 = scmp.lt.s32.totalorder %s15, 1
        %s850 = scalar_select %p849, %s15, 1
        %s851 = smul.addr %s850, 2
        %s852 = smul.addr %s851, 8
        %s853 = scalar_lea.vmem %s3, %s852
      $region44: #{pigaze_forward.4} parent=39 // pred_fallthru
        _
    $region40: #{pigaze_forward.4} parent=5 // pred_fallthru
      _
  $region6: #{pigaze_forward.4} parent=0 // loop_footer
    %s13 = sadd.s32 1, %s9
  $region7: #{pigaze_forward.4} parent=0 // loop_footer_branch
    %8 = sbr.rel target = $region3
  $region8: #{pigaze_forward.4} parent=0 // loop_exit
    _

// kernel: pigaze_forward.5
$region0: #{pigaze_forward.5}
  #allocation0 [shape = 'u32[]', space=smem, size = 0x4, offset = 0x4, fixed_abs, tag = 'smem constant byte address 0x4 - core index']
  #allocation1 [shape = 'u32[144,128]{1,0:T(1,128)}', space=vmem, size = 0x12000, scoped, tag = 'internal scratch']
  %s0 = inlined_call_operand.vmem [shape: bf16[2,4,1,288], index: 0, kind: input, shape index: {}]
  %s1 = inlined_call_operand.vmem [shape: bf16[288,64], index: 1, kind: input, shape index: {}]
  %s2 = inlined_call_operand.vmem [shape: f32[1,64], index: 2, kind: input, shape index: {}]
  %s3 = inlined_call_operand.vmem [shape: f32[64,32], index: 3, kind: input, shape index: {}]
  %s4 = inlined_call_operand.vmem [shape: f32[1,32], index: 4, kind: input, shape index: {}]
  %s5 = inlined_call_operand.vmem [shape: f32[32,2], index: 5, kind: input, shape index: {}]
  %s6 = inlined_call_operand.vmem [shape: f32[1,2], index: 6, kind: input, shape index: {}]
  %s7 = inlined_call_operand.hbm [shape: f32[2,1,2], index: 7, kind: output, shape index: {}]
  %s8 = sld [smem:[#allocation0]]
  $region61: #{pigaze_forward.5} parent=0
    _
  %s10 = ssub.s32 1, %s8
  %s11 = scalar_select 0, %s10, %s8
  $region1: #{pigaze_forward.5} parent=0
    #allocation2 [shape = 'u8[1024]{0}', space=vmem, size = 0x400, scoped, tag = 'output window, operand 0']
    #allocation3 [shape = 's32[2]{0}', space=sflag, size = 0x8, scoped, tag = 'scoped memory for pigaze_forward.5']
    %12 = vsyncpa [#allocation3], 0
    %s13 = scalar_lea.sflag [#allocation3], 1
    %14 = vsyncpa %s13, 0
    loop: start=0, step=1, limit=4
    $region2: #{pigaze_forward.5} parent=1 // loop_pre_header
      _
    $region3: #{pigaze_forward.5} parent=1 // loop_header
      %s16 = sphi 0, %s20
      %p17 = scmp.ge.s32.totalorder %s16, 4
      %s26 = sphi 0, %s28
      %s29 = sphi 0, %s26
      %s30 = sphi 0, %s29
      %s46 = sphi 0, %s30
      %s50 = sphi 0, %s50
      %s52 = sphi 0, %s50
      %s53 = sphi 0, %s52
      %s67 = sphi 0, %s53
      %s71 = sphi 0, %s71
      %s73 = sphi 0, %s71
      %s74 = sphi 0, %s73
      %s88 = sphi 0, %s74
      %s92 = sphi 0, %s92
      %s94 = sphi 0, %s92
      %s95 = sphi 0, %s94
      %s109 = sphi 0, %s95
      %s113 = sphi 0, %s113
      %s115 = sphi 0, %s113
      %s116 = sphi 0, %s115
      %s130 = sphi 0, %s116
      %s134 = sphi 0, %s134
      %s136 = sphi 0, %s134
      %s137 = sphi 0, %s136
      %s151 = sphi 0, %s137
      %s155 = sphi 0, %s155
      %s157 = sphi 0, %s155
      %s158 = sphi 0, %s157
      %s172 = sphi 0, %s158
      %s178 = sphi 0, %s180
      %s181 = sphi 0, %s178
      %s182 = sphi 0, %s181
      %s198 = sphi 0, %s182
    $region4: #{pigaze_forward.5} parent=1 // loop_header_branch
      %19 = sbr.rel (%p17) target = $region8
    $region5: #{pigaze_forward.5} parent=1 // loop_body
      %s21 = ssub.s32 %s16, 1
      %s22 = ssub.s32 %s16, 2
      %s23 = sadd.s32 %s16, 1
      %s24 = ssub.s32 %s16, %s23
      %p25 = scmp.eq.s32.totalorder %s24, 0
      %s27 = sadd.s32 %s26, 1
      %s28 = scalar_select %p25, %s26, %s27
      %p31 = pneg %p25
      %p32 = scmp.eq.s32.totalorder %s16, 1
      %p33 = por %p31, %p32
      %p34 = scmp.ne.s32.totalorder %s26, %s29
      %p35 = scmp.eq.s32.totalorder %s16, 0
      %p36 = por %p34, %p35
      %p37 = scmp.ne.s32.totalorder %s26, %s29
      %p38 = scmp.eq.s32.totalorder %s21, 1
      %p39 = por %p37, %p38
      %p40 = scmp.ne.s32.totalorder %s29, %s30
      %p41 = scmp.eq.s32.totalorder %s21, 0
      %p42 = por %p40, %p41
      %p43 = scmp.ne.s32.totalorder %s29, %s30
      %p44 = scmp.eq.s32.totalorder %s22, 1
      %p45 = por %p43, %p44
      %p47 = scmp.ne.s32.totalorder %s30, %s46
      %p48 = scmp.eq.s32.totalorder %s22, 0
      %p49 = por %p47, %p48
      %s51 = sadd.s32 %s50, 1
      %p54 = scmp.eq.s32.totalorder %s16, 1
      %p55 = scmp.ne.s32.totalorder %s50, %s52
      %p56 = scmp.eq.s32.totalorder %s16, 0
      %p57 = por %p55, %p56
      %p58 = scmp.ne.s32.totalorder %s50, %s52
      %p59 = scmp.eq.s32.totalorder %s21, 1
      %p60 = por %p58, %p59
      %p61 = scmp.ne.s32.totalorder %s52, %s53
      %p62 = scmp.eq.s32.totalorder %s21, 0
      %p63 = por %p61, %p62
      %p64 = scmp.ne.s32.totalorder %s52, %s53
      %p65 = scmp.eq.s32.totalorder %s22, 1
      %p66 = por %p64, %p65
      %p68 = scmp.ne.s32.totalorder %s53, %s67
      %p69 = scmp.eq.s32.totalorder %s22, 0
      %p70 = por %p68, %p69
      %s72 = sadd.s32 %s71, 1
      %p75 = scmp.eq.s32.totalorder %s16, 1
      %p76 = scmp.ne.s32.totalorder %s71, %s73
      %p77 = scmp.eq.s32.totalorder %s16, 0
      %p78 = por %p76, %p77
      %p79 = scmp.ne.s32.totalorder %s71, %s73
      %p80 = scmp.eq.s32.totalorder %s21, 1
      %p81 = por %p79, %p80
      %p82 = scmp.ne.s32.totalorder %s73, %s74
      %p83 = scmp.eq.s32.totalorder %s21, 0
      %p84 = por %p82, %p83
      %p85 = scmp.ne.s32.totalorder %s73, %s74
      %p86 = scmp.eq.s32.totalorder %s22, 1
      %p87 = por %p85, %p86
      %p89 = scmp.ne.s32.totalorder %s74, %s88
      %p90 = scmp.eq.s32.totalorder %s22, 0
      %p91 = por %p89, %p90
      %s93 = sadd.s32 %s92, 1
      %p96 = scmp.eq.s32.totalorder %s16, 1
      %p97 = scmp.ne.s32.totalorder %s92, %s94
      %p98 = scmp.eq.s32.totalorder %s16, 0
      %p99 = por %p97, %p98
      %p100 = scmp.ne.s32.totalorder %s92, %s94
      %p101 = scmp.eq.s32.totalorder %s21, 1
      %p102 = por %p100, %p101
      %p103 = scmp.ne.s32.totalorder %s94, %s95
      %p104 = scmp.eq.s32.totalorder %s21, 0
      %p105 = por %p103, %p104
      %p106 = scmp.ne.s32.totalorder %s94, %s95
      %p107 = scmp.eq.s32.totalorder %s22, 1
      %p108 = por %p106, %p107
      %p110 = scmp.ne.s32.totalorder %s95, %s109
      %p111 = scmp.eq.s32.totalorder %s22, 0
      %p112 = por %p110, %p111
      %s114 = sadd.s32 %s113, 1
      %p117 = scmp.eq.s32.totalorder %s16, 1
      %p118 = scmp.ne.s32.totalorder %s113, %s115
      %p119 = scmp.eq.s32.totalorder %s16, 0
      %p120 = por %p118, %p119
      %p121 = scmp.ne.s32.totalorder %s113, %s115
      %p122 = scmp.eq.s32.totalorder %s21, 1
      %p123 = por %p121, %p122
      %p124 = scmp.ne.s32.totalorder %s115, %s116
      %p125 = scmp.eq.s32.totalorder %s21, 0
      %p126 = por %p124, %p125
      %p127 = scmp.ne.s32.totalorder %s115, %s116
      %p128 = scmp.eq.s32.totalorder %s22, 1
      %p129 = por %p127, %p128
      %p131 = scmp.ne.s32.totalorder %s116, %s130
      %p132 = scmp.eq.s32.totalorder %s22, 0
      %p133 = por %p131, %p132
      %s135 = sadd.s32 %s134, 1
      %p138 = scmp.eq.s32.totalorder %s16, 1
      %p139 = scmp.ne.s32.totalorder %s134, %s136
      %p140 = scmp.eq.s32.totalorder %s16, 0
      %p141 = por %p139, %p140
      %p142 = scmp.ne.s32.totalorder %s134, %s136
      %p143 = scmp.eq.s32.totalorder %s21, 1
      %p144 = por %p142, %p143
      %p145 = scmp.ne.s32.totalorder %s136, %s137
      %p146 = scmp.eq.s32.totalorder %s21, 0
      %p147 = por %p145, %p146
      %p148 = scmp.ne.s32.totalorder %s136, %s137
      %p149 = scmp.eq.s32.totalorder %s22, 1
      %p150 = por %p148, %p149
      %p152 = scmp.ne.s32.totalorder %s137, %s151
      %p153 = scmp.eq.s32.totalorder %s22, 0
      %p154 = por %p152, %p153
      %s156 = sadd.s32 %s155, 1
      %p159 = scmp.eq.s32.totalorder %s16, 1
      %p160 = scmp.ne.s32.totalorder %s155, %s157
      %p161 = scmp.eq.s32.totalorder %s16, 0
      %p162 = por %p160, %p161
      %p163 = scmp.ne.s32.totalorder %s155, %s157
      %p164 = scmp.eq.s32.totalorder %s21, 1
      %p165 = por %p163, %p164
      %p166 = scmp.ne.s32.totalorder %s157, %s158
      %p167 = scmp.eq.s32.totalorder %s21, 0
      %p168 = por %p166, %p167
      %p169 = scmp.ne.s32.totalorder %s157, %s158
      %p170 = scmp.eq.s32.totalorder %s22, 1
      %p171 = por %p169, %p170
      %p173 = scmp.ne.s32.totalorder %s158, %s172
      %p174 = scmp.eq.s32.totalorder %s22, 0
      %p175 = por %p173, %p174
      %s176 = ssub.s32 %s16, %s23
      %p177 = scmp.eq.s32.totalorder %s176, 0
      %s179 = sadd.s32 %s178, 1
      %s180 = scalar_select %p177, %s178, %s179
      %p183 = pneg %p177
      %p184 = scmp.eq.s32.totalorder %s16, 1
      %p185 = por %p183, %p184
      %p186 = scmp.ne.s32.totalorder %s178, %s181
      %p187 = scmp.eq.s32.totalorder %s16, 0
      %p188 = por %p186, %p187
      %p189 = scmp.ne.s32.totalorder %s178, %s181
      %p190 = scmp.eq.s32.totalorder %s21, 1
      %p191 = por %p189, %p190
      %p192 = scmp.ne.s32.totalorder %s181, %s182
      %p193 = scmp.eq.s32.totalorder %s21, 0
      %p194 = por %p192, %p193
      %p195 = scmp.ne.s32.totalorder %s181, %s182
      %p196 = scmp.eq.s32.totalorder %s22, 1
      %p197 = por %p195, %p196
      %p199 = scmp.ne.s32.totalorder %s182, %s198
      %p200 = scmp.eq.s32.totalorder %s22, 0
      %p201 = por %p199, %p200
      %p202 = scmp.le.s32.totalorder 1, %s16
      %p203 = scmp.lt.s32.totalorder %s16, 3
      %p204 = pnand %p202, %p203
      %p205 = pneg %p204
      // Predicated region
      $region9: #{pigaze_forward.5} parent=5 // pred_check
        _
      $region10: #{pigaze_forward.5} parent=5 // pred_check_branch
        %207 = sbr.rel (%p204) target = $region12
      $region11: #{pigaze_forward.5} parent=5 // pred_region
        %s208 = ssub.s32 %s16, 1
        // Predicated region
        $region13: #{pigaze_forward.5} parent=11 // pred_check
          %p209 = pneg %p63
        $region14: #{pigaze_forward.5} parent=11 // pred_check_branch
          %211 = sbr.rel (%p209) target = $region16
        $region15: #{pigaze_forward.5} parent=11 // pred_region
          _
        $region16: #{pigaze_forward.5} parent=11 // pred_fallthru
          _
        // Predicated region
        $region17: #{pigaze_forward.5} parent=11 // pred_check
          %p212 = pneg %p84
        $region18: #{pigaze_forward.5} parent=11 // pred_check_branch
          %214 = sbr.rel (%p212) target = $region20
        $region19: #{pigaze_forward.5} parent=11 // pred_region
          _
        $region20: #{pigaze_forward.5} parent=11 // pred_fallthru
          _
        // Predicated region
        $region21: #{pigaze_forward.5} parent=11 // pred_check
          %p215 = pneg %p105
        $region22: #{pigaze_forward.5} parent=11 // pred_check_branch
          %217 = sbr.rel (%p215) target = $region24
        $region23: #{pigaze_forward.5} parent=11 // pred_region
          _
        $region24: #{pigaze_forward.5} parent=11 // pred_fallthru
          _
        // Predicated region
        $region25: #{pigaze_forward.5} parent=11 // pred_check
          %p218 = pneg %p126
        $region26: #{pigaze_forward.5} parent=11 // pred_check_branch
          %220 = sbr.rel (%p218) target = $region28
        $region27: #{pigaze_forward.5} parent=11 // pred_region
          _
        $region28: #{pigaze_forward.5} parent=11 // pred_fallthru
          _
        // Predicated region
        $region29: #{pigaze_forward.5} parent=11 // pred_check
          %p221 = pneg %p147
        $region30: #{pigaze_forward.5} parent=11 // pred_check_branch
          %223 = sbr.rel (%p221) target = $region32
        $region31: #{pigaze_forward.5} parent=11 // pred_region
          _
        $region32: #{pigaze_forward.5} parent=11 // pred_fallthru
          _
        // Predicated region
        $region33: #{pigaze_forward.5} parent=11 // pred_check
          %p224 = pneg %p168
        $region34: #{pigaze_forward.5} parent=11 // pred_check_branch
          %226 = sbr.rel (%p224) target = $region36
        $region35: #{pigaze_forward.5} parent=11 // pred_region
          _
        $region36: #{pigaze_forward.5} parent=11 // pred_fallthru
          _
      $region12: #{pigaze_forward.5} parent=5 // pred_fallthru
        _
      %p227 = scmp.lt.s32.totalorder %s16, 2
      // Predicated region
      $region37: #{pigaze_forward.5} parent=5 // pred_check
        %p228 = pneg %p227
      $region38: #{pigaze_forward.5} parent=5 // pred_check_branch
        %230 = sbr.rel (%p228) target = $region40
      $region39: #{pigaze_forward.5} parent=5 // pred_region
        // Predicated region
        $region41: #{pigaze_forward.5} parent=39 // pred_check
          %p231 = pneg %p36
        $region42: #{pigaze_forward.5} parent=39 // pred_check_branch
          %233 = sbr.rel (%p231) target = $region44
        $region43: #{pigaze_forward.5} parent=39 // pred_region
          %p234 = scmp.lt.s32.totalorder %s16, 1
          %s235 = scalar_select %p234, %s16, 1
          %s236 = smul.addr %s235, 12
          %s237 = scalar_lea.vmem %s0, %s236
        $region44: #{pigaze_forward.5} parent=39 // pred_fallthru
          _
      $region40: #{pigaze_forward.5} parent=5 // pred_fallthru
        _
      %p238 = scmp.le.s32.totalorder 1, %s16
      %p239 = scmp.lt.s32.totalorder %s16, 3
      %p240 = pnand %p238, %p239
      %p241 = pneg %p240
      // Predicated region
      $region45: #{pigaze_forward.5} parent=5 // pred_check
        _
      $region46: #{pigaze_forward.5} parent=5 // pred_check_branch
        %243 = sbr.rel (%p240) target = $region48
      $region47: #{pigaze_forward.5} parent=5 // pred_region
        %s244 = ssub.s32 %s16, 1
        %p245 = scmp.lt.s32.totalorder %s21, 1
        %s246 = scalar_select %p245, %s21, 1
        %s247 = smul.addr %s246, 12
        %s248 = scalar_lea.vmem %s0, %s247
        %p249 = pneg %p42
        %p250 = pneg %p39
        %p251 = pneg %p63
        %p252 = pneg %p60
        %p253 = pneg %p84
        %p254 = pneg %p81
        %p255 = pneg %p105
        %p256 = pneg %p102
        %p257 = pneg %p126
        %p258 = pneg %p123
        %p259 = pneg %p147
        %p260 = pneg %p144
        %p261 = pneg %p168
        %p262 = pneg %p165
        %p263 = pneg %p194
        %p264 = pneg %p191
        %s265 = sand.u32 %s181, 1
        %s266 = scalar_lea.sflag [#allocation3], %s265
        %s267 = sand.u32 %s181, 1
        %s268 = scalar_lea.vmem [#allocation2], %s267
        %p269 = scmp.lt.s32.totalorder %s21, 1
        %s270 = scalar_select %p269, %s21, 1
        %s271 = smul.addr %s270, 12
        %s272 = scalar_lea.vmem %s0, %s271
        %v274 = vld [vmem:[%s1] sm:$0xf]
        %v275 = vld [vmem:[%s1 + $0x4] sm:$0xf]
        %v276 = vld [vmem:[%s1 + $0x8] sm:$0xf]
        %v277 = vld [vmem:[%s1 + $0xc] sm:$0xf]
        %v278 = vld [vmem:[%s1 + $0x10] sm:$0xf]
        %v279 = vld [vmem:[%s1 + $0x14] sm:$0xf]
        %v280 = vld [vmem:[%s1 + $0x18] sm:$0xf]
        %v281 = vld [vmem:[%s1 + $0x1c] sm:$0xf]
        %v282 = vld [vmem:[%s1 + $0x20] sm:$0xf]
        %v283 = vld [vmem:[%s1 + $0x24] sm:$0xf]
        %v284 = vld [vmem:[%s1 + $0x28] sm:$0xf]
        %v285 = vld [vmem:[%s1 + $0x2c] sm:$0xf]
        %v286 = vld [vmem:[%s1 + $0x30] sm:$0xf]
        %v287 = vld [vmem:[%s1 + $0x34] sm:$0xf]
        %v288 = vld [vmem:[%s1 + $0x38] sm:$0xf]
        %v289 = vld [vmem:[%s1 + $0x3c] sm:$0xf]
        %v290 = vld [vmem:[%s1 + $0x40] sm:$0xf]
        %v291 = vld [vmem:[%s1 + $0x44] sm:$0xf]
        %v292 = vld [vmem:[%s1 + $0x48] sm:$0xf]
        %v293 = vld [vmem:[%s1 + $0x4c] sm:$0xf]
        %v294 = vld [vmem:[%s1 + $0x50] sm:$0xf]
        %v295 = vld [vmem:[%s1 + $0x54] sm:$0xf]
        %v296 = vld [vmem:[%s1 + $0x58] sm:$0xf]
        %v297 = vld [vmem:[%s1 + $0x5c] sm:$0xf]
        %v298 = vld [vmem:[%s1 + $0x60] sm:$0xf]
        %v299 = vld [vmem:[%s1 + $0x64] sm:$0xf]
        %v300 = vld [vmem:[%s1 + $0x68] sm:$0xf]
        %v301 = vld [vmem:[%s1 + $0x6c] sm:$0xf]
        %v302 = vld [vmem:[%s1 + $0x70] sm:$0xf]
        %v303 = vld [vmem:[%s1 + $0x74] sm:$0xf]
        %v304 = vld [vmem:[%s1 + $0x78] sm:$0xf]
        %v305 = vld [vmem:[%s1 + $0x7c] sm:$0xf]
        %v306 = vld [vmem:[%s1 + $0x80] sm:$0xf]
        %v307 = vld [vmem:[%s1 + $0x84] sm:$0xf]
        %v308 = vld [vmem:[%s1 + $0x88] sm:$0xf]
        %v309 = vld [vmem:[%s1 + $0x8c] sm:$0xf]
        %v310 = vld [vmem:[%s2] sm:$0x1]
        %v311 = vld [vmem:[%s272] sm:$0x7]
        %v314 = vunpack.c.l.s4 1966171168
        %v315 = vunpack.c.0.s8 %v314
        %v316 = vlaneseq
        %v317 = vshrl.u32 %v316, 7
        %v318 = vsub.s32 %v315, %v317
        %v319 = vrot.slane %v311, %v318
        %v320 = vcombine.high %v319, %v319
        %v322 = vunpack.c.l.s4 1966171168
        %v323 = vunpack.c.0.s8 %v322
        %v324 = vlaneseq
        %v325 = vshrl.u32 %v324, 7
        %v326 = vsub.s32 %v323, %v325
        %v327 = vrot.slane %v319, %v326
        %v329 = vunpack.c.l.s4 1966171168
        %v330 = vunpack.c.0.s8 %v329
        %v331 = vlaneseq
        %v332 = vshrl.u32 %v331, 7
        %v333 = vsub.s32 %v330, %v332
        %v334 = vrot.slane %v320, %v333
        %v335 = vcombine.high %v327, %v327
        %v374 = vunpack.c.l.b16 %v274
        %v375 = vunpack.c.l.b16 %v275
        %v376 = vunpack.c.l.b16 %v276
        %v377 = vunpack.c.l.b16 %v277
        %v378 = vunpack.c.l.b16 %v278
        %v379 = vunpack.c.l.b16 %v279
        %v380 = vunpack.c.l.b16 %v280
        %v381 = vunpack.c.l.b16 %v281
        %v382 = vunpack.c.l.b16 %v282
        %v383 = vunpack.c.l.b16 %v283
        %v384 = vunpack.c.l.b16 %v284
        %v385 = vunpack.c.l.b16 %v285
        %v386 = vunpack.c.l.b16 %v286
        %v387 = vunpack.c.l.b16 %v287
        %v388 = vunpack.c.l.b16 %v288
        %v389 = vunpack.c.l.b16 %v289
        %v390 = vunpack.c.l.b16 %v290
        %v391 = vunpack.c.l.b16 %v291
        %v392 = vunpack.c.l.b16 %v292
        %v393 = vunpack.c.l.b16 %v293
        %v394 = vunpack.c.l.b16 %v294
        %v395 = vunpack.c.l.b16 %v295
        %v396 = vunpack.c.l.b16 %v296
        %v397 = vunpack.c.l.b16 %v297
        %v398 = vunpack.c.l.b16 %v298
        %v399 = vunpack.c.l.b16 %v299
        %v400 = vunpack.c.l.b16 %v300
        %v401 = vunpack.c.l.b16 %v301
        %v402 = vunpack.c.l.b16 %v302
        %v403 = vunpack.c.l.b16 %v303
        %v404 = vunpack.c.l.b16 %v304
        %v405 = vunpack.c.l.b16 %v305
        %v406 = vunpack.c.l.b16 %v306
        %v407 = vunpack.c.l.b16 %v307
        %v408 = vunpack.c.l.b16 %v308
        %v409 = vunpack.c.l.b16 %v309
        %v410 = vpack.c.b16 %v375, %v374
        %v411 = vpack.c.b16 %v377, %v376
        %v412 = vpack.c.b16 %v379, %v378
        %v413 = vpack.c.b16 %v381, %v380
        %v414 = vpack.c.b16 %v383, %v382
        %v415 = vpack.c.b16 %v385, %v384
        %v416 = vpack.c.b16 %v387, %v386
        %v417 = vpack.c.b16 %v389, %v388
        %v418 = vpack.c.b16 %v391, %v390
        %v419 = vpack.c.b16 %v393, %v392
        %v420 = vpack.c.b16 %v395, %v394
        %v421 = vpack.c.b16 %v397, %v396
        %v422 = vpack.c.b16 %v399, %v398
        %v423 = vpack.c.b16 %v401, %v400
        %v424 = vpack.c.b16 %v403, %v402
        %v425 = vpack.c.b16 %v405, %v404
        %v426 = vpack.c.b16 %v407, %v406
        %v427 = vpack.c.b16 %v409, %v408
        %vm446 = vcmask 261120
        %v448 = vsel %vm446, %v335, 0
        %450 = vmatprep.subr.bf16.mxu0 0
        %451 = vmatpush1.bf16.msra.mxu0 %v417
        %452 = vmatprep.subr.bf16.mxu0 0
        %453 = vmatpush1.bf16.msra.mxu0 %v416
        %454 = vmatprep.subr.bf16.mxu0 0
        %455 = vmatpush1.bf16.msra.mxu0 %v415
        %456 = vmatprep.subr.bf16.mxu0 0
        %457 = vmatpush1.bf16.msra.mxu0 %v414
        %458 = vmatprep.subr.bf16.mxu0 0
        %459 = vmatpush1.bf16.msra.mxu0 %v413
        %460 = vmatprep.subr.bf16.mxu0 0
        %461 = vmatpush1.bf16.msra.mxu0 %v412
        %462 = vmatprep.subr.bf16.mxu0 0
        %463 = vmatpush1.bf16.msra.mxu0 %v411
        %464 = vmatprep.subr.bf16.mxu0 0
        %465 = vmatpush1.bf16.msra.mxu0 %v410
        %466 = vmatprep.subr.bf16.mxu0 0
        %467 = vmatpush2.bf16.msra.mxu0 %v425
        %468 = vmatprep.subr.bf16.mxu0 0
        %469 = vmatpush2.bf16.msra.mxu0 %v424
        %470 = vmatprep.subr.bf16.mxu0 0
        %471 = vmatpush2.bf16.msra.mxu0 %v423
        %472 = vmatprep.subr.bf16.mxu0 0
        %473 = vmatpush2.bf16.msra.mxu0 %v422
        %474 = vmatprep.subr.bf16.mxu0 0
        %475 = vmatpush2.bf16.msra.mxu0 %v421
        %476 = vmatprep.subr.bf16.mxu0 0
        %477 = vmatpush2.bf16.msra.mxu0 %v420
        %478 = vmatprep.subr.bf16.mxu0 0
        %479 = vmatpush2.bf16.msra.mxu0 %v419
        %480 = vmatprep.subr.bf16.mxu0 0
        %481 = vmatpush2.bf16.msra.mxu0 %v418
        %482 = vmatprep.mubr.bf16.mxu0 %v334
        %483 = vmatmul.mubr.bf16.gmra.mxu0 %v327
        %v484 = vpop.f32.mrf.mxu0
        %v485 = vadd.f32 %v310, %v484
        %v486 = vpop.f32.mrf.mxu0
        %v487 = vpop.f32.mrf.mxu0
        %v488 = vpop.f32.mrf.mxu0
        %489 = vdwg.mxu0
        %490 = vmatprep.subr.bf16.mxu0 0
        %491 = vmatpush1.bf16.msra.mxu0 0
        %492 = vmatprep.subr.bf16.mxu0 0
        %493 = vmatpush1.bf16.msra.mxu0 0
        %494 = vmatprep.subr.bf16.mxu0 0
        %495 = vmatpush1.bf16.msra.mxu0 0
        %496 = vmatprep.subr.bf16.mxu0 0
        %497 = vmatpush1.bf16.msra.mxu0 0
        %498 = vmatprep.subr.bf16.mxu0 0
        %499 = vmatpush1.bf16.msra.mxu0 0
        %500 = vmatprep.subr.bf16.mxu0 0
        %501 = vmatpush1.bf16.msra.mxu0 0
        %502 = vmatprep.subr.bf16.mxu0 0
        %503 = vmatpush1.bf16.msra.mxu0 %v427
        %504 = vmatprep.subr.bf16.mxu0 0
        %505 = vmatpush1.bf16.msra.mxu0 %v426
        %506 = vmatprep.subr.bf16.mxu0 0
        %507 = vmatpush2.bf16.msra.mxu0 0
        %508 = vmatprep.subr.bf16.mxu0 0
        %509 = vmatpush2.bf16.msra.mxu0 0
        %510 = vmatprep.subr.bf16.mxu0 0
        %511 = vmatpush2.bf16.msra.mxu0 0
        %512 = vmatprep.subr.bf16.mxu0 0
        %513 = vmatpush2.bf16.msra.mxu0 0
        %514 = vmatprep.subr.bf16.mxu0 0
        %515 = vmatpush2.bf16.msra.mxu0 0
        %516 = vmatprep.subr.bf16.mxu0 0
        %517 = vmatpush2.bf16.msra.mxu0 0
        %518 = vmatprep.subr.bf16.mxu0 0
        %519 = vmatpush2.bf16.msra.mxu0 0
        %520 = vmatprep.subr.bf16.mxu0 0
        %521 = vmatpush2.bf16.msra.mxu0 0
        %522 = vmatprep.mubr.bf16.mxu0 0
        %523 = vmatmul.mubr.bf16.gmra.mxu0 %v448
        %v524 = vpop.f32.mrf.mxu0
        %v525 = vadd.f32 %v485, %v524
        %v526 = vpop.f32.mrf.mxu0
        %v527 = vpop.f32.mrf.mxu0
        %v528 = vpop.f32.mrf.mxu0
        %529 = vdwg.mxu0
        %v530 = vmax.f32 %v525, 0.0
        %s531 = scalar_lea.vmem %s272, 3
        %v532 = vld [vmem:[%s531] sm:$0x7]
        %v535 = vunpack.c.l.s4 1966171168
        %v536 = vunpack.c.0.s8 %v535
        %v537 = vlaneseq
        %v538 = vshrl.u32 %v537, 7
        %v539 = vsub.s32 %v536, %v538
        %v540 = vrot.slane %v532, %v539
        %v541 = vcombine.high %v540, %v540
        %v543 = vunpack.c.l.s4 1966171168
        %v544 = vunpack.c.0.s8 %v543
        %v545 = vlaneseq
        %v546 = vshrl.u32 %v545, 7
        %v547 = vsub.s32 %v544, %v546
        %v548 = vrot.slane %v540, %v547
        %v550 = vunpack.c.l.s4 1966171168
        %v551 = vunpack.c.0.s8 %v550
        %v552 = vlaneseq
        %v553 = vshrl.u32 %v552, 7
        %v554 = vsub.s32 %v551, %v553
        %v555 = vrot.slane %v541, %v554
        %v556 = vcombine.high %v548, %v548
        %v560 = vsel %vm446, %v556, 0
        %562 = vmatprep.subr.bf16.mxu0 0
        %563 = vmatpush1.bf16.msra.mxu0 %v417
        %564 = vmatprep.subr.bf16.mxu0 0
        %565 = vmatpush1.bf16.msra.mxu0 %v416
        %566 = vmatprep.subr.bf16.mxu0 0
        %567 = vmatpush1.bf16.msra.mxu0 %v415
        %568 = vmatprep.subr.bf16.mxu0 0
        %569 = vmatpush1.bf16.msra.mxu0 %v414
        %570 = vmatprep.subr.bf16.mxu0 0
        %571 = vmatpush1.bf16.msra.mxu0 %v413
        %572 = vmatprep.subr.bf16.mxu0 0
        %573 = vmatpush1.bf16.msra.mxu0 %v412
        %574 = vmatprep.subr.bf16.mxu0 0
        %575 = vmatpush1.bf16.msra.mxu0 %v411
        %576 = vmatprep.subr.bf16.mxu0 0
        %577 = vmatpush1.bf16.msra.mxu0 %v410
        %578 = vmatprep.subr.bf16.mxu0 0
        %579 = vmatpush2.bf16.msra.mxu0 %v425
        %580 = vmatprep.subr.bf16.mxu0 0
        %581 = vmatpush2.bf16.msra.mxu0 %v424
        %582 = vmatprep.subr.bf16.mxu0 0
        %583 = vmatpush2.bf16.msra.mxu0 %v423
        %584 = vmatprep.subr.bf16.mxu0 0
        %585 = vmatpush2.bf16.msra.mxu0 %v422
        %586 = vmatprep.subr.bf16.mxu0 0
        %587 = vmatpush2.bf16.msra.mxu0 %v421
        %588 = vmatprep.subr.bf16.mxu0 0
        %589 = vmatpush2.bf16.msra.mxu0 %v420
        %590 = vmatprep.subr.bf16.mxu0 0
        %591 = vmatpush2.bf16.msra.mxu0 %v419
        %592 = vmatprep.subr.bf16.mxu0 0
        %593 = vmatpush2.bf16.msra.mxu0 %v418
        %594 = vmatprep.mubr.bf16.mxu0 %v555
        %595 = vmatmul.mubr.bf16.gmra.mxu0 %v548
        %v596 = vpop.f32.mrf.mxu0
        %v597 = vadd.f32 %v310, %v596
        %v598 = vpop.f32.mrf.mxu0
        %v599 = vpop.f32.mrf.mxu0
        %v600 = vpop.f32.mrf.mxu0
        %601 = vdwg.mxu0
        %602 = vmatprep.subr.bf16.mxu0 0
        %603 = vmatpush1.bf16.msra.mxu0 0
        %604 = vmatprep.subr.bf16.mxu0 0
        %605 = vmatpush1.bf16.msra.mxu0 0
        %606 = vmatprep.subr.bf16.mxu0 0
        %607 = vmatpush1.bf16.msra.mxu0 0
        %608 = vmatprep.subr.bf16.mxu0 0
        %609 = vmatpush1.bf16.msra.mxu0 0
        %610 = vmatprep.subr.bf16.mxu0 0
        %611 = vmatpush1.bf16.msra.mxu0 0
        %612 = vmatprep.subr.bf16.mxu0 0
        %613 = vmatpush1.bf16.msra.mxu0 0
        %614 = vmatprep.subr.bf16.mxu0 0
        %615 = vmatpush1.bf16.msra.mxu0 %v427
        %616 = vmatprep.subr.bf16.mxu0 0
        %617 = vmatpush1.bf16.msra.mxu0 %v426
        %618 = vmatprep.subr.bf16.mxu0 0
        %619 = vmatpush2.bf16.msra.mxu0 0
        %620 = vmatprep.subr.bf16.mxu0 0
        %621 = vmatpush2.bf16.msra.mxu0 0
        %622 = vmatprep.subr.bf16.mxu0 0
        %623 = vmatpush2.bf16.msra.mxu0 0
        %624 = vmatprep.subr.bf16.mxu0 0
        %625 = vmatpush2.bf16.msra.mxu0 0
        %626 = vmatprep.subr.bf16.mxu0 0
        %627 = vmatpush2.bf16.msra.mxu0 0
        %628 = vmatprep.subr.bf16.mxu0 0
        %629 = vmatpush2.bf16.msra.mxu0 0
        %630 = vmatprep.subr.bf16.mxu0 0
        %631 = vmatpush2.bf16.msra.mxu0 0
        %632 = vmatprep.subr.bf16.mxu0 0
        %633 = vmatpush2.bf16.msra.mxu0 0
        %634 = vmatprep.mubr.bf16.mxu0 0
        %635 = vmatmul.mubr.bf16.gmra.mxu0 %v560
        %v636 = vpop.f32.mrf.mxu0
        %v637 = vadd.f32 %v597, %v636
        %v638 = vpop.f32.mrf.mxu0
        %v639 = vpop.f32.mrf.mxu0
        %v640 = vpop.f32.mrf.mxu0
        %641 = vdwg.mxu0
        %v642 = vmax.f32 %v637, 0.0
        %v643 = vmax.f32 %v530, %v642
        %s644 = scalar_lea.vmem %s272, 6
        %v645 = vld [vmem:[%s644] sm:$0x7]
        %v648 = vunpack.c.l.s4 1966171168
        %v649 = vunpack.c.0.s8 %v648
        %v650 = vlaneseq
        %v651 = vshrl.u32 %v650, 7
        %v652 = vsub.s32 %v649, %v651
        %v653 = vrot.slane %v645, %v652
        %v654 = vcombine.high %v653, %v653
        %v656 = vunpack.c.l.s4 1966171168
        %v657 = vunpack.c.0.s8 %v656
        %v658 = vlaneseq
        %v659 = vshrl.u32 %v658, 7
        %v660 = vsub.s32 %v657, %v659
        %v661 = vrot.slane %v653, %v660
        %v663 = vunpack.c.l.s4 1966171168
        %v664 = vunpack.c.0.s8 %v663
        %v665 = vlaneseq
        %v666 = vshrl.u32 %v665, 7
        %v667 = vsub.s32 %v664, %v666
        %v668 = vrot.slane %v654, %v667
        %v669 = vcombine.high %v661, %v661
        %v673 = vsel %vm446, %v669, 0
        %675 = vmatprep.subr.bf16.mxu0 0
        %676 = vmatpush1.bf16.msra.mxu0 %v417
        %677 = vmatprep.subr.bf16.mxu0 0
        %678 = vmatpush1.bf16.msra.mxu0 %v416
        %679 = vmatprep.subr.bf16.mxu0 0
        %680 = vmatpush1.bf16.msra.mxu0 %v415
        %681 = vmatprep.subr.bf16.mxu0 0
        %682 = vmatpush1.bf16.msra.mxu0 %v414
        %683 = vmatprep.subr.bf16.mxu0 0
        %684 = vmatpush1.bf16.msra.mxu0 %v413
        %685 = vmatprep.subr.bf16.mxu0 0
        %686 = vmatpush1.bf16.msra.mxu0 %v412
        %687 = vmatprep.subr.bf16.mxu0 0
        %688 = vmatpush1.bf16.msra.mxu0 %v411
        %689 = vmatprep.subr.bf16.mxu0 0
        %690 = vmatpush1.bf16.msra.mxu0 %v410
        %691 = vmatprep.subr.bf16.mxu0 0
        %692 = vmatpush2.bf16.msra.mxu0 %v425
        %693 = vmatprep.subr.bf16.mxu0 0
        %694 = vmatpush2.bf16.msra.mxu0 %v424
        %695 = vmatprep.subr.bf16.mxu0 0
        %696 = vmatpush2.bf16.msra.mxu0 %v423
        %697 = vmatprep.subr.bf16.mxu0 0
        %698 = vmatpush2.bf16.msra.mxu0 %v422
        %699 = vmatprep.subr.bf16.mxu0 0
        %700 = vmatpush2.bf16.msra.mxu0 %v421
        %701 = vmatprep.subr.bf16.mxu0 0
        %702 = vmatpush2.bf16.msra.mxu0 %v420
        %703 = vmatprep.subr.bf16.mxu0 0
        %704 = vmatpush2.bf16.msra.mxu0 %v419
        %705 = vmatprep.subr.bf16.mxu0 0
        %706 = vmatpush2.bf16.msra.mxu0 %v418
        %707 = vmatprep.mubr.bf16.mxu0 %v668
        %708 = vmatmul.mubr.bf16.gmra.mxu0 %v661
        %v709 = vpop.f32.mrf.mxu0
        %v710 = vadd.f32 %v310, %v709
        %v711 = vpop.f32.mrf.mxu0
        %v712 = vpop.f32.mrf.mxu0
        %v713 = vpop.f32.mrf.mxu0
        %714 = vdwg.mxu0
        %715 = vmatprep.subr.bf16.mxu0 0
        %716 = vmatpush1.bf16.msra.mxu0 0
        %717 = vmatprep.subr.bf16.mxu0 0
        %718 = vmatpush1.bf16.msra.mxu0 0
        %719 = vmatprep.subr.bf16.mxu0 0
        %720 = vmatpush1.bf16.msra.mxu0 0
        %721 = vmatprep.subr.bf16.mxu0 0
        %722 = vmatpush1.bf16.msra.mxu0 0
        %723 = vmatprep.subr.bf16.mxu0 0
        %724 = vmatpush1.bf16.msra.mxu0 0
        %725 = vmatprep.subr.bf16.mxu0 0
        %726 = vmatpush1.bf16.msra.mxu0 0
        %727 = vmatprep.subr.bf16.mxu0 0
        %728 = vmatpush1.bf16.msra.mxu0 %v427
        %729 = vmatprep.subr.bf16.mxu0 0
        %730 = vmatpush1.bf16.msra.mxu0 %v426
        %731 = vmatprep.subr.bf16.mxu0 0
        %732 = vmatpush2.bf16.msra.mxu0 0
        %733 = vmatprep.subr.bf16.mxu0 0
        %734 = vmatpush2.bf16.msra.mxu0 0
        %735 = vmatprep.subr.bf16.mxu0 0
        %736 = vmatpush2.bf16.msra.mxu0 0
        %737 = vmatprep.subr.bf16.mxu0 0
        %738 = vmatpush2.bf16.msra.mxu0 0
        %739 = vmatprep.subr.bf16.mxu0 0
        %740 = vmatpush2.bf16.msra.mxu0 0
        %741 = vmatprep.subr.bf16.mxu0 0
        %742 = vmatpush2.bf16.msra.mxu0 0
        %743 = vmatprep.subr.bf16.mxu0 0
        %744 = vmatpush2.bf16.msra.mxu0 0
        %745 = vmatprep.subr.bf16.mxu0 0
        %746 = vmatpush2.bf16.msra.mxu0 0
        %747 = vmatprep.mubr.bf16.mxu0 0
        %748 = vmatmul.mubr.bf16.gmra.mxu0 %v673
        %v749 = vpop.f32.mrf.mxu0
        %v750 = vadd.f32 %v710, %v749
        %v751 = vpop.f32.mrf.mxu0
        %v752 = vpop.f32.mrf.mxu0
        %v753 = vpop.f32.mrf.mxu0
        %754 = vdwg.mxu0
        %v755 = vmax.f32 %v750, 0.0
        %s756 = scalar_lea.vmem %s272, 9
        %v757 = vld [vmem:[%s756] sm:$0x7]
        %v760 = vunpack.c.l.s4 1966171168
        %v761 = vunpack.c.0.s8 %v760
        %v762 = vlaneseq
        %v763 = vshrl.u32 %v762, 7
        %v764 = vsub.s32 %v761, %v763
        %v765 = vrot.slane %v757, %v764
        %v766 = vcombine.high %v765, %v765
        %v768 = vunpack.c.l.s4 1966171168
        %v769 = vunpack.c.0.s8 %v768
        %v770 = vlaneseq
        %v771 = vshrl.u32 %v770, 7
        %v772 = vsub.s32 %v769, %v771
        %v773 = vrot.slane %v765, %v772
        %v775 = vunpack.c.l.s4 1966171168
        %v776 = vunpack.c.0.s8 %v775
        %v777 = vlaneseq
        %v778 = vshrl.u32 %v777, 7
        %v779 = vsub.s32 %v776, %v778
        %v780 = vrot.slane %v766, %v779
        %v781 = vcombine.high %v773, %v773
        %v785 = vsel %vm446, %v781, 0
        %787 = vmatprep.subr.bf16.mxu0 0
        %788 = vmatpush1.bf16.msra.mxu0 %v417
        %789 = vmatprep.subr.bf16.mxu0 0
        %790 = vmatpush1.bf16.msra.mxu0 %v416
        %791 = vmatprep.subr.bf16.mxu0 0
        %792 = vmatpush1.bf16.msra.mxu0 %v415
        %793 = vmatprep.subr.bf16.mxu0 0
        %794 = vmatpush1.bf16.msra.mxu0 %v414
        %795 = vmatprep.subr.bf16.mxu0 0
        %796 = vmatpush1.bf16.msra.mxu0 %v413
        %797 = vmatprep.subr.bf16.mxu0 0
        %798 = vmatpush1.bf16.msra.mxu0 %v412
        %799 = vmatprep.subr.bf16.mxu0 0
        %800 = vmatpush1.bf16.msra.mxu0 %v411
        %801 = vmatprep.subr.bf16.mxu0 0
        %802 = vmatpush1.bf16.msra.mxu0 %v410
        %803 = vmatprep.subr.bf16.mxu0 0
        %804 = vmatpush2.bf16.msra.mxu0 %v425
        %805 = vmatprep.subr.bf16.mxu0 0
        %806 = vmatpush2.bf16.msra.mxu0 %v424
        %807 = vmatprep.subr.bf16.mxu0 0
        %808 = vmatpush2.bf16.msra.mxu0 %v423
        %809 = vmatprep.subr.bf16.mxu0 0
        %810 = vmatpush2.bf16.msra.mxu0 %v422
        %811 = vmatprep.subr.bf16.mxu0 0
        %812 = vmatpush2.bf16.msra.mxu0 %v421
        %813 = vmatprep.subr.bf16.mxu0 0
        %814 = vmatpush2.bf16.msra.mxu0 %v420
        %815 = vmatprep.subr.bf16.mxu0 0
        %816 = vmatpush2.bf16.msra.mxu0 %v419
        %817 = vmatprep.subr.bf16.mxu0 0
        %818 = vmatpush2.bf16.msra.mxu0 %v418
        %819 = vmatprep.mubr.bf16.mxu0 %v780
        %820 = vmatmul.mubr.bf16.gmra.mxu0 %v773
        %v821 = vpop.f32.mrf.mxu0
        %v822 = vadd.f32 %v310, %v821
        %v823 = vpop.f32.mrf.mxu0
        %v824 = vpop.f32.mrf.mxu0
        %v825 = vpop.f32.mrf.mxu0
        %826 = vdwg.mxu0
        %827 = vmatprep.subr.bf16.mxu0 0
        %828 = vmatpush1.bf16.msra.mxu0 0
        %829 = vmatprep.subr.bf16.mxu0 0
        %830 = vmatpush1.bf16.msra.mxu0 0
        %831 = vmatprep.subr.bf16.mxu0 0
        %832 = vmatpush1.bf16.msra.mxu0 0
        %833 = vmatprep.subr.bf16.mxu0 0
        %834 = vmatpush1.bf16.msra.mxu0 0
        %835 = vmatprep.subr.bf16.mxu0 0
        %836 = vmatpush1.bf16.msra.mxu0 0
        %837 = vmatprep.subr.bf16.mxu0 0
        %838 = vmatpush1.bf16.msra.mxu0 0
        %839 = vmatprep.subr.bf16.mxu0 0
        %840 = vmatpush1.bf16.msra.mxu0 %v427
        %841 = vmatprep.subr.bf16.mxu0 0
        %842 = vmatpush1.bf16.msra.mxu0 %v426
        %843 = vmatprep.subr.bf16.mxu0 0
        %844 = vmatpush2.bf16.msra.mxu0 0
        %845 = vmatprep.subr.bf16.mxu0 0
        %846 = vmatpush2.bf16.msra.mxu0 0
        %847 = vmatprep.subr.bf16.mxu0 0
        %848 = vmatpush2.bf16.msra.mxu0 0
        %849 = vmatprep.subr.bf16.mxu0 0
        %850 = vmatpush2.bf16.msra.mxu0 0
        %851 = vmatprep.subr.bf16.mxu0 0
        %852 = vmatpush2.bf16.msra.mxu0 0
        %853 = vmatprep.subr.bf16.mxu0 0
        %854 = vmatpush2.bf16.msra.mxu0 0
        %855 = vmatprep.subr.bf16.mxu0 0
        %856 = vmatpush2.bf16.msra.mxu0 0
        %857 = vmatprep.subr.bf16.mxu0 0
        %858 = vmatpush2.bf16.msra.mxu0 0
        %859 = vmatprep.mubr.bf16.mxu0 0
        %860 = vmatmul.mubr.bf16.gmra.mxu0 %v785
        %v861 = vpop.f32.mrf.mxu0
        %v862 = vadd.f32 %v822, %v861
        %v863 = vpop.f32.mrf.mxu0
        %v864 = vpop.f32.mrf.mxu0
        %v865 = vpop.f32.mrf.mxu0
        %866 = vdwg.mxu0
        %v867 = vmax.f32 %v862, 0.0
        %v868 = vmax.f32 %v755, %v867
        %v869 = vmax.f32 %v643, %v868
        %v870 = vld [vmem:[%s3] sm:$0xff]
        %v871 = vld [vmem:[%s3 + $0x8] sm:$0xff]
        %v872 = vld [vmem:[%s3 + $0x10] sm:$0xff]
        %v873 = vld [vmem:[%s3 + $0x18] sm:$0xff]
        %v874 = vld [vmem:[%s3 + $0x20] sm:$0xff]
        %v875 = vld [vmem:[%s3 + $0x28] sm:$0xff]
        %v876 = vld [vmem:[%s3 + $0x30] sm:$0xff]
        %v877 = vld [vmem:[%s3 + $0x38] sm:$0xff]
        %v878 = vld [vmem:[%s4] sm:$0x1]
        %vm879 = vcmask 523264
        %v881 = vsel %vm879, %v869, 0
        %883 = vmatprep.subr.mxu0 0.0
        %884 = vmatpush1.msra.mxu0 0.0
        %885 = vmatprep.subr.mxu0 0.0
        %886 = vmatpush1.msra.mxu0 0.0
        %887 = vmatprep.subr.mxu0 0.0
        %888 = vmatpush1.msra.mxu0 0.0
        %889 = vmatprep.subr.mxu0 0.0
        %890 = vmatpush1.msra.mxu0 0.0
        %891 = vmatprep.subr.mxu0 0.0
        %892 = vmatpush1.msra.mxu0 0.0
        %893 = vmatprep.subr.mxu0 0.0
        %894 = vmatpush1.msra.mxu0 0.0
        %895 = vmatprep.subr.mxu0 0.0
        %896 = vmatpush1.msra.mxu0 0.0
        %897 = vmatprep.subr.mxu0 0.0
        %898 = vmatpush1.msra.mxu0 0.0
        %899 = vmatprep.subr.mxu0 0.0
        %900 = vmatpush1.msra.mxu0 %v877
        %901 = vmatprep.subr.mxu0 0.0
        %902 = vmatpush1.msra.mxu0 %v876
        %903 = vmatprep.subr.mxu0 0.0
        %904 = vmatpush1.msra.mxu0 %v875
        %905 = vmatprep.subr.mxu0 0.0
        %906 = vmatpush1.msra.mxu0 %v874
        %907 = vmatprep.subr.mxu0 0.0
        %908 = vmatpush1.msra.mxu0 %v873
        %909 = vmatprep.subr.mxu0 0.0
        %910 = vmatpush1.msra.mxu0 %v872
        %911 = vmatprep.subr.mxu0 0.0
        %912 = vmatpush1.msra.mxu0 %v871
        %913 = vmatprep.subr.mxu0 0.0
        %914 = vmatpush1.msra.mxu0 %v870
        %915 = vmatprep.subr.mxu0 0.0
        %916 = vmatpush2.msra.mxu0 0.0
        %917 = vmatprep.subr.mxu0 0.0
        %918 = vmatpush2.msra.mxu0 0.0
        %919 = vmatprep.subr.mxu0 0.0
        %920 = vmatpush2.msra.mxu0 0.0
        %921 = vmatprep.subr.mxu0 0.0
        %922 = vmatpush2.msra.mxu0 0.0
        %923 = vmatprep.subr.mxu0 0.0
        %924 = vmatpush2.msra.mxu0 0.0
        %925 = vmatprep.subr.mxu0 0.0
        %926 = vmatpush2.msra.mxu0 0.0
        %927 = vmatprep.subr.mxu0 0.0
        %928 = vmatpush2.msra.mxu0 0.0
        %929 = vmatprep.subr.mxu0 0.0
        %930 = vmatpush2.msra.mxu0 0.0
        %931 = vmatprep.subr.mxu0 0.0
        %932 = vmatpush2.msra.mxu0 0.0
        %933 = vmatprep.subr.mxu0 0.0
        %934 = vmatpush2.msra.mxu0 0.0
        %935 = vmatprep.subr.mxu0 0.0
        %936 = vmatpush2.msra.mxu0 0.0
        %937 = vmatprep.subr.mxu0 0.0
        %938 = vmatpush2.msra.mxu0 0.0
        %939 = vmatprep.subr.mxu0 0.0
        %940 = vmatpush2.msra.mxu0 0.0
        %941 = vmatprep.subr.mxu0 0.0
        %942 = vmatpush2.msra.mxu0 0.0
        %943 = vmatprep.subr.mxu0 0.0
        %944 = vmatpush2.msra.mxu0 0.0
        %945 = vmatprep.subr.mxu0 0.0
        %946 = vmatpush2.msra.mxu0 0.0
        %947 = vmatprep.mubr.f32.mxu0 0.0
        %948 = vmatmul.mubr.f32.gmra.mxu0 %v881
        %v949 = vpop.f32.mrf.mxu0
        %v950 = vadd.f32 %v878, %v949
        %v951 = vpop.f32.mrf.mxu0
        %952 = vdwg.mxu0
        %v953 = vmax.f32 %v950, 0.0
        %v954 = vld [vmem:[%s5] sm:$0xff]
        %v955 = vld [vmem:[%s5 + $0x8] sm:$0xff]
        %v956 = vld [vmem:[%s5 + $0x10] sm:$0xff]
        %v957 = vld [vmem:[%s5 + $0x18] sm:$0xff]
        %v958 = vld [vmem:[%s6] sm:$0x1]
        %v960 = vsel %vm446, %v953, 0
        %962 = vmatprep.subr.mxu0 0.0
        %963 = vmatpush1.msra.mxu0 0.0
        %964 = vmatprep.subr.mxu0 0.0
        %965 = vmatpush1.msra.mxu0 0.0
        %966 = vmatprep.subr.mxu0 0.0
        %967 = vmatpush1.msra.mxu0 0.0
        %968 = vmatprep.subr.mxu0 0.0
        %969 = vmatpush1.msra.mxu0 0.0
        %970 = vmatprep.subr.mxu0 0.0
        %971 = vmatpush1.msra.mxu0 0.0
        %972 = vmatprep.subr.mxu0 0.0
        %973 = vmatpush1.msra.mxu0 0.0
        %974 = vmatprep.subr.mxu0 0.0
        %975 = vmatpush1.msra.mxu0 0.0
        %976 = vmatprep.subr.mxu0 0.0
        %977 = vmatpush1.msra.mxu0 0.0
        %978 = vmatprep.subr.mxu0 0.0
        %979 = vmatpush1.msra.mxu0 0.0
        %980 = vmatprep.subr.mxu0 0.0
        %981 = vmatpush1.msra.mxu0 0.0
        %982 = vmatprep.subr.mxu0 0.0
        %983 = vmatpush1.msra.mxu0 0.0
        %984 = vmatprep.subr.mxu0 0.0
        %985 = vmatpush1.msra.mxu0 0.0
        %986 = vmatprep.subr.mxu0 0.0
        %987 = vmatpush1.msra.mxu0 %v957
        %988 = vmatprep.subr.mxu0 0.0
        %989 = vmatpush1.msra.mxu0 %v956
        %990 = vmatprep.subr.mxu0 0.0
        %991 = vmatpush1.msra.mxu0 %v955
        %992 = vmatprep.subr.mxu0 0.0
        %993 = vmatpush1.msra.mxu0 %v954
        %994 = vmatprep.subr.mxu0 0.0
        %995 = vmatpush2.msra.mxu0 0.0
        %996 = vmatprep.subr.mxu0 0.0
        %997 = vmatpush2.msra.mxu0 0.0
        %998 = vmatprep.subr.mxu0 0.0
        %999 = vmatpush2.msra.mxu0 0.0
        %1000 = vmatprep.subr.mxu0 0.0
        %1001 = vmatpush2.msra.mxu0 0.0
        %1002 = vmatprep.subr.mxu0 0.0
        %1003 = vmatpush2.msra.mxu0 0.0
        %1004 = vmatprep.subr.mxu0 0.0
        %1005 = vmatpush2.msra.mxu0 0.0
        %1006 = vmatprep.subr.mxu0 0.0
        %1007 = vmatpush2.msra.mxu0 0.0
        %1008 = vmatprep.subr.mxu0 0.0
        %1009 = vmatpush2.msra.mxu0 0.0
        %1010 = vmatprep.subr.mxu0 0.0
        %1011 = vmatpush2.msra.mxu0 0.0
        %1012 = vmatprep.subr.mxu0 0.0
        %1013 = vmatpush2.msra.mxu0 0.0
        %1014 = vmatprep.subr.mxu0 0.0
        %1015 = vmatpush2.msra.mxu0 0.0
        %1016 = vmatprep.subr.mxu0 0.0
        %1017 = vmatpush2.msra.mxu0 0.0
        %1018 = vmatprep.subr.mxu0 0.0
        %1019 = vmatpush2.msra.mxu0 0.0
        %1020 = vmatprep.subr.mxu0 0.0
        %1021 = vmatpush2.msra.mxu0 0.0
        %1022 = vmatprep.subr.mxu0 0.0
        %1023 = vmatpush2.msra.mxu0 0.0
        %1024 = vmatprep.subr.mxu0 0.0
        %1025 = vmatpush2.msra.mxu0 0.0
        %1026 = vmatprep.mubr.f32.mxu0 0.0
        %1027 = vmatmul.mubr.f32.gmra.mxu0 %v960
        %v1028 = vpop.f32.mrf.mxu0
        %v1029 = vadd.f32 %v958, %v1028
        %v1030 = vpop.f32.mrf.mxu0
        %1031 = vdwg.mxu0
        %vm1032 = vcmask 8192
        %1033 = vst.msk [vmem:[%s268] sm:$0x1] %vm1032, %v1029
        %s1034 = sand.u32 %s181, 1
        %s1035 = scalar_lea.sflag [#allocation3], %s1034
        %s1036 = sand.u32 %s181, 1
        %s1037 = scalar_lea.vmem [#allocation2], %s1036
        // Predicated region
        $region49: #{pigaze_forward.5} parent=47 // pred_check
          %p1038 = pneg %p191
        $region50: #{pigaze_forward.5} parent=47 // pred_check_branch
          %1040 = sbr.rel (%p1038) target = $region52
        $region51: #{pigaze_forward.5} parent=47 // pred_region
          %s1042 = ssub.s32 16, 16
          %1043 = vsyncadd %s1035, %s1042
          %s1044 = smul.addr %s21, 16
          %s1045 = scalar_lea.hbm %s7, %s1044
          %s1047 = sshll.u32 %s1037, 4
          %s1048 = int_to_ptr.vmem [resolvable:$true] %s1047
          %1050 = dma.vmem_to_hbm [thread:$0]  %s1048, 16, %s1045, %s1035
        $region52: #{pigaze_forward.5} parent=47 // pred_fallthru
          _
      $region48: #{pigaze_forward.5} parent=5 // pred_fallthru
        _
      %p1051 = scmp.le.s32.totalorder 2, %s16
      // Predicated region
      $region53: #{pigaze_forward.5} parent=5 // pred_check
        %p1052 = pneg %p1051
      $region54: #{pigaze_forward.5} parent=5 // pred_check_branch
        %1054 = sbr.rel (%p1052) target = $region56
      $region55: #{pigaze_forward.5} parent=5 // pred_region
        %s1055 = ssub.s32 %s16, 2
        // Predicated region
        $region57: #{pigaze_forward.5} parent=55 // pred_check
          %p1056 = pneg %p197
        $region58: #{pigaze_forward.5} parent=55 // pred_check_branch
          %1058 = sbr.rel (%p1056) target = $region60
        $region59: #{pigaze_forward.5} parent=55 // pred_region
          %s1059 = sand.u32 %s182, 1
          %s1060 = scalar_lea.sflag [#allocation3], %s1059
          %s1061 = sand.u32 %s182, 1
          %s1062 = scalar_lea.vmem [#allocation2], %s1061
          %1063 = dma.done %s1060, 16
        $region60: #{pigaze_forward.5} parent=55 // pred_fallthru
          _
      $region56: #{pigaze_forward.5} parent=5 // pred_fallthru
        _
    $region6: #{pigaze_forward.5} parent=1 // loop_footer
      %s20 = sadd.s32 1, %s16
    $region7: #{pigaze_forward.5} parent=1 // loop_footer_branch
      %15 = sbr.rel target = $region3
    $region8: #{pigaze_forward.5} parent=1 // loop_exit
      _
    %1064 = vsyncpa [#allocation3], 1
    %s1065 = scalar_lea.sflag [#allocation3], 1
    %1066 = vsyncpa %s1065, 1

</llo_original>
